<compile_context>
chip_gen: v7x
topology: tpu7x:2x2x1
jax: 0.10.0
libtpu: 0.0.40
codegen_flags: <defaults>
</compile_context>

<pallas_src>
import jax
import jax.numpy as jnp
from jax.experimental import pallas as pl
from jax.experimental.pallas import tpu as pltpu

# ---- model dimensions (small but consistent with the module) ----------------
B = 2            # batch
S = 8            # tokenized sequence length ("longest" padding)
H_BERT = 768     # BERT hidden size (fixed by nn.Linear(768, OUTPUT_SIZE))
H_RES = 2048     # ResNet-50 pooled feature size (input of resnet50.fc)
OUT = 256        # model_cfg.OUTPUT_SIZE
TB_MAX = 256     # max batch rows per grid step (cap chosen for v7x 64 MiB/TC)


def _round_up(x, m):
    return ((x + m - 1) // m) * m


def siamese_head_kernel(hid_ref, vf_ref, wl_ref, wr_ref, bc_ref, out_ref):
    """One batch tile of the Siamese head, entirely in VMEM.

    hid_ref : (tb, S*768)   bf16  flattened BERT last_hidden_state tile
    vf_ref  : (tb, 2048)    bf16  ResNet-50 pooled feature tile
    wl_ref  : (S*768, OUT)  bf16  == tile_S( -(lang_fc.weight.T / S) )  (mean + sub folded)
    wr_ref  : (2048, OUT)   bf16  == resnet50.fc.weight.T
    bc_ref  : (1, OUT)      f32   == fc.bias - lang_fc.bias + 1e-6 (pairwise_distance eps)
    out_ref : (1, tb)       f32   lane-dense similarity row for this tile
    """
    # fused head: diff = visual_embeds - lang_embeds + eps, single f32 accumulator.
    # The token mean runs inside the MXU (K-tiled language weight) instead of
    # as an XLU sublane reduction.
    diff = (
        jnp.dot(vf_ref[...], wr_ref[...], preferred_element_type=jnp.float32)
        + jnp.dot(hid_ref[...], wl_ref[...], preferred_element_type=jnp.float32)
        + bc_ref[...]
    )                                                           # (tb, OUT) f32

    # epilogue stays f32 (v5e has no bf16 VPU/EUP path).
    d = jnp.sqrt(jnp.sum(diff * diff, axis=-1))                 # (tb,) f32
    out_ref[...] = jnp.exp(-d)[None, :]                         # (1, tb) lane-dense


def prepare_siamese_params(w_lang, b_lang, w_resfc, b_resfc, seq):
    """ONE-TIME (model-load) parameter preparation. Do not run per forward call.

    Weights are given in (in_features, out_features) layout, i.e. the PyTorch
    nn.Linear weight transposed once on the host.
    Returns (w_lang_folded_bf16, w_res_bf16, b_comb_f32).
    """
    out_dim = w_lang.shape[1]
    # fold the 1/seq mean and the subtraction sign into the language weight,
    # then tile it `seq` times along K so the token sum becomes part of the matmul.
    w_lang_neg = -(w_lang.astype(jnp.float32) / seq)                       # (768, OUT)
    w_lang_folded = jnp.tile(w_lang_neg, (seq, 1)).astype(jnp.bfloat16)    # (seq*768, OUT)
    w_res_bf16 = w_resfc.astype(jnp.bfloat16)                              # (2048, OUT)
    # combine both biases with the pairwise_distance eps (eps is added to the
    # difference in torch's F.pairwise_distance semantics).
    b_comb = (b_resfc.astype(jnp.float32) - b_lang.astype(jnp.float32)
              + jnp.float32(1e-6)).reshape(1, out_dim)                     # (1, OUT)
    return w_lang_folded, w_res_bf16, b_comb


def siamese_forward(bert_hidden, visual_feat, w_lang_folded, w_res_bf16, b_comb):
    """Similarity head: exp(-||resfc(visual) - lang_fc(mean(bert_hidden)) + eps||)."""
    bsz, seq, hb = bert_hidden.shape
    hr = visual_feat.shape[1]
    out_dim = w_res_bf16.shape[1]
    k_lang = seq * hb
    assert w_lang_folded.shape == (k_lang, out_dim)

    # Activations stream in bf16 — halves the HBM bytes of this bandwidth-bound
    # kernel. The reshape to (B, S*768) is a free contiguous view.
    # TODO(synk): ideally the BERT / ResNet backbones emit bf16 directly so this
    # cast disappears entirely.
    hid2d = bert_hidden.reshape(bsz, k_lang).astype(jnp.bfloat16)
    vf = visual_feat.astype(jnp.bfloat16)

    # Batch tile: whole (8-rounded) batch when small, capped tile otherwise.
    tb = min(TB_MAX, _round_up(bsz, 8))
    n_tiles = pl.cdiv(bsz, tb)
    b_pad = n_tiles * tb
    if b_pad != bsz:  # only a small remainder is ever padded (never 2 -> 128)
        hid2d = jnp.pad(hid2d, ((0, b_pad - bsz), (0, 0)))
        vf = jnp.pad(vf, ((0, b_pad - bsz), (0, 0)))

    flops = 2 * b_pad * (k_lang + hr) * out_dim + 4 * b_pad * out_dim
    bytes_accessed = (hid2d.size * 2 + vf.size * 2
                      + w_lang_folded.size * 2 + w_res_bf16.size * 2
                      + b_comb.size * 4 + b_pad * 4)

    # Weights/bias never change block index -> keep them VMEM-resident and
    # single-buffered (second pipeline buffer would be dead VMEM).
    resident = dict(pipeline_mode=pl.Buffered(1))

    grid_spec = pltpu.PrefetchScalarGridSpec(
        num_scalar_prefetch=0,
        grid=(n_tiles,),
        in_specs=[
            # activations: one batch tile per grid step (double-buffered by Pallas)
            pl.BlockSpec((tb, k_lang), lambda i: (i, 0)),
            pl.BlockSpec((tb, hr), lambda i: (i, 0)),
            # weights / bias: constant block index -> resident across the grid
            pl.BlockSpec((k_lang, out_dim), lambda i: (0, 0), **resident),
            pl.BlockSpec((hr, out_dim), lambda i: (0, 0), **resident),
            pl.BlockSpec((1, out_dim), lambda i: (0, 0), **resident),
        ],
        # lane-dense similarity row: grid step i writes lanes [i*tb, (i+1)*tb)
        out_specs=pl.BlockSpec((1, tb), lambda i: (0, i)),
    )

    sim = pl.pallas_call(
        siamese_head_kernel,
        out_shape=jax.ShapeDtypeStruct((1, b_pad), jnp.float32),
        grid_spec=grid_spec,
        compiler_params=pltpu.CompilerParams(
            # batch tiles are independent -> shard across the 2 TCs on v7x
            dimension_semantics=("parallel",),
        ),
        cost_estimate=pl.CostEstimate(
            flops=int(flops),
            transcendentals=int(b_pad),
            bytes_accessed=int(bytes_accessed),
        ),
    )(hid2d, vf, w_lang_folded, w_res_bf16, b_comb)

    return sim[0, :bsz]  # (B,) similarity, matching torch.exp(-d)


def _reference(bert_hidden, w_lang, b_lang, visual_feat, w_resfc, b_resfc):
    """Plain-JAX f32 reference matching the PyTorch forward head."""
    lang = jnp.mean(bert_hidden, axis=1) @ w_lang + b_lang
    vis = visual_feat @ w_resfc + b_resfc
    return jnp.exp(-jnp.sqrt(jnp.sum((vis - lang + 1e-6) ** 2, axis=-1)))


if __name__ == "__main__":
    key = jax.random.PRNGKey(0)
    k1, k2, k3, k4, k5, k6, k7, k8 = jax.random.split(key, 8)

    # Synthetic backbone outputs (stand-ins for BertModel / resnet50 trunk).
    # TODO(synk): BERT encoder and ResNet-50 conv trunk are pretrained black
    # boxes in the original module; they are not reimplemented here.
    bert_hidden = jax.random.normal(k1, (B, S, H_BERT), dtype=jnp.float32)
    visual_feat = jax.random.normal(k2, (B, H_RES), dtype=jnp.float32)

    # Deterministic parameter init (lang_fc and resnet50.fc shapes from __init__),
    # stored in (in_features, out_features) layout.
    w_lang = jax.random.normal(k3, (H_BERT, OUT), dtype=jnp.float32) * 0.002
    b_lang = jax.random.normal(k4, (OUT,), dtype=jnp.float32) * 0.002
    w_resfc = jax.random.normal(k5, (H_RES, OUT), dtype=jnp.float32) * 0.002
    b_resfc = jax.random.normal(k6, (OUT,), dtype=jnp.float32) * 0.002

    # One-time model-load prep (folded/bf16 weights, combined bias).
    w_lang_folded, w_res_bf16, b_comb = prepare_siamese_params(
        w_lang, b_lang, w_resfc, b_resfc, S)
    w_lang_folded = jax.block_until_ready(w_lang_folded)

    fwd = jax.jit(siamese_forward)

    # --- small-batch check (module-sized example: one tiny 8-row tile) -------
    sim = fwd(bert_hidden, visual_feat, w_lang_folded, w_res_bf16, b_comb)
    sim = jax.block_until_ready(sim)
    ref = _reference(bert_hidden, w_lang, b_lang, visual_feat, w_resfc, b_resfc)
    assert sim.shape == (B,)
    # bf16 weight/activation storage -> loosened tolerance vs. the full-f32 reference.
    assert jnp.allclose(sim, ref, rtol=5e-2, atol=5e-3), (sim, ref)

    # --- batched check (multi-tile grid + ragged-tail padding + resident weights)
    BB = 320  # -> 2 grid steps of TB=256 with a padded ragged tail
    bert_hidden_b = jax.random.normal(k7, (BB, S, H_BERT), dtype=jnp.float32)
    visual_feat_b = jax.random.normal(k8, (BB, H_RES), dtype=jnp.float32)
    sim_b = fwd(bert_hidden_b, visual_feat_b, w_lang_folded, w_res_bf16, b_comb)
    sim_b = jax.block_until_ready(sim_b)
    ref_b = _reference(bert_hidden_b, w_lang, b_lang, visual_feat_b, w_resfc, b_resfc)
    assert sim_b.shape == (BB,)
    assert jnp.allclose(sim_b, ref_b, rtol=5e-2, atol=5e-3)

    print("KERNEL_OK")
</pallas_src>

<mosaic_0001>
module attributes {stable_mosaic.version = 11 : i64} {
  func.func @siamese_head_kernel(%arg0: i32, %arg1: memref<8x6144xbf16, #tpu.memory_space<vmem>>, %arg2: memref<8x2048xbf16, #tpu.memory_space<vmem>>, %arg3: memref<6144x256xbf16, #tpu.memory_space<vmem>>, %arg4: memref<2048x256xbf16, #tpu.memory_space<vmem>>, %arg5: memref<1x256xf32, #tpu.memory_space<vmem>>, %arg6: memref<1x8xf32, #tpu.memory_space<vmem>>) attributes {dimension_semantics = [#tpu.dimension_semantics<parallel>], iteration_bounds = array<i64: 1>, scalar_prefetch = 0 : i64, scratch_operands = 0 : i64, tpu.core_type = #tpu.core_type<tc>, window_params = [{transform_indices = @transform_0, window_bounds = array<i64: 8, 6144>}, {transform_indices = @transform_1, window_bounds = array<i64: 8, 2048>}, {pipeline_mode = #tpu.pipeline_mode<synchronous>, transform_indices = @transform_2, window_bounds = array<i64: 6144, 256>}, {pipeline_mode = #tpu.pipeline_mode<synchronous>, transform_indices = @transform_3, window_bounds = array<i64: 2048, 256>}, {pipeline_mode = #tpu.pipeline_mode<synchronous>, transform_indices = @transform_4, window_bounds = array<i64: 1, 256>}, {transform_indices = @transform_5, window_bounds = array<i64: 1, 8>}]} {
    %c0 = arith.constant 0 : index
    %c0_0 = arith.constant 0 : index
    %0 = vector.load %arg2[%c0, %c0_0] : memref<8x2048xbf16, #tpu.memory_space<vmem>>, vector<8x2048xbf16>
    %c0_1 = arith.constant 0 : index
    %c0_2 = arith.constant 0 : index
    %1 = vector.load %arg4[%c0_1, %c0_2] : memref<2048x256xbf16, #tpu.memory_space<vmem>>, vector<2048x256xbf16>
    %cst = arith.constant dense<0.000000e+00> : vector<8x256xf32>
    %2 = tpu.matmul %0, %1, %cst {dimension_numbers = #tpu.dot_dimension_numbers<[1], [0], [0], [1], [0, 0, 1, 1], [], []>} : vector<8x2048xbf16>, vector<2048x256xbf16>, vector<8x256xf32> -> vector<8x256xf32>
    %c0_3 = arith.constant 0 : index
    %c0_4 = arith.constant 0 : index
    %3 = vector.load %arg1[%c0_3, %c0_4] : memref<8x6144xbf16, #tpu.memory_space<vmem>>, vector<8x6144xbf16>
    %c0_5 = arith.constant 0 : index
    %c0_6 = arith.constant 0 : index
    %4 = vector.load %arg3[%c0_5, %c0_6] : memref<6144x256xbf16, #tpu.memory_space<vmem>>, vector<6144x256xbf16>
    %cst_7 = arith.constant dense<0.000000e+00> : vector<8x256xf32>
    %5 = tpu.matmul %3, %4, %cst_7 {dimension_numbers = #tpu.dot_dimension_numbers<[1], [0], [0], [1], [0, 0, 1, 1], [], []>} : vector<8x6144xbf16>, vector<6144x256xbf16>, vector<8x256xf32> -> vector<8x256xf32>
    %6 = arith.addf %2, %5 : vector<8x256xf32>
    %c0_8 = arith.constant 0 : index
    %c0_9 = arith.constant 0 : index
    %7 = vector.load %arg5[%c0_8, %c0_9] : memref<1x256xf32, #tpu.memory_space<vmem>>, vector<1x256xf32>
    %8 = vector.broadcast %7 : vector<1x256xf32> to vector<8x256xf32>
    %9 = arith.addf %6, %8 : vector<8x256xf32>
    %10 = arith.mulf %9, %9 : vector<8x256xf32>
    %cst_10 = arith.constant dense<0.000000e+00> : vector<8xf32>
    %11 = vector.multi_reduction <add>, %10, %cst_10 [1] : vector<8x256xf32> to vector<8xf32>
    %12 = math.sqrt %11 : vector<8xf32>
    %cst_11 = arith.constant 0.000000e+00 : f32
    %13 = vector.broadcast %cst_11 : f32 to vector<8xf32>
    %14 = arith.subf %13, %12 : vector<8xf32>
    %15 = math.exp %14 : vector<8xf32>
    %16 = vector.shape_cast %15 : vector<8xf32> to vector<1x8xf32>
    %c0_12 = arith.constant 0 : index
    %c0_13 = arith.constant 0 : index
    %17 = vector.load %arg6[%c0_12, %c0_13] : memref<1x8xf32, #tpu.memory_space<vmem>>, vector<1x8xf32>
    tpu.vector_store %arg6[%c0_12, %c0_13], %16 {strides = array<i32>} : memref<1x8xf32, #tpu.memory_space<vmem>>, vector<1x8xf32>,
    return
  }
  func.func @transform_0(%arg0: i32) -> (i32, i32) {
    %c0_i32 = arith.constant 0 : i32
    %c0_i32_0 = arith.constant 0 : i32
    return %arg0, %c0_i32 : i32, i32
  }
  func.func @transform_1(%arg0: i32) -> (i32, i32) {
    %c0_i32 = arith.constant 0 : i32
    %c0_i32_0 = arith.constant 0 : i32
    return %arg0, %c0_i32 : i32, i32
  }
  func.func @transform_2(%arg0: i32) -> (i32, i32) {
    %c0_i32 = arith.constant 0 : i32
    %c0_i32_0 = arith.constant 0 : i32
    %c0_i32_1 = arith.constant 0 : i32
    return %c0_i32, %c0_i32_0 : i32, i32
  }
  func.func @transform_3(%arg0: i32) -> (i32, i32) {
    %c0_i32 = arith.constant 0 : i32
    %c0_i32_0 = arith.constant 0 : i32
    %c0_i32_1 = arith.constant 0 : i32
    return %c0_i32, %c0_i32_0 : i32, i32
  }
  func.func @transform_4(%arg0: i32) -> (i32, i32) {
    %c0_i32 = arith.constant 0 : i32
    %c0_i32_0 = arith.constant 0 : i32
    %c0_i32_1 = arith.constant 0 : i32
    return %c0_i32, %c0_i32_0 : i32, i32
  }
  func.func @transform_5(%arg0: i32) -> (i32, i32) {
    %c0_i32 = arith.constant 0 : i32
    %c0_i32_0 = arith.constant 0 : i32
    return %c0_i32, %arg0 : i32, i32
  }
}

</mosaic_0001>

<llo_original>
// kernel: siamese_forward.1
$region0: #{siamese_forward.1}
  #allocation0 [shape = 'u32[]', space=smem, size = 0x4, offset = 0x4, fixed_abs, tag = 'smem constant byte address 0x4 - core index']
  #allocation1 [shape = 'u32[144,128]{1,0:T(1,128)}', space=vmem, size = 0x12000, scoped, tag = 'internal scratch']
  %s0 = inlined_call_operand.vmem [shape: bf16[8,6144], index: 0, kind: input, shape index: {}]
  %s1 = inlined_call_operand.vmem [shape: bf16[8,2048], index: 1, kind: input, shape index: {}]
  %s2 = inlined_call_operand.hbm [shape: bf16[6144,256], index: 2, kind: input, shape index: {}]
  %s3 = inlined_call_operand.hbm [shape: bf16[2048,256], index: 3, kind: input, shape index: {}]
  %s4 = inlined_call_operand.hbm [shape: f32[1,256], index: 4, kind: input, shape index: {}]
  %s5 = inlined_call_operand.vmem [shape: f32[1,8], index: 5, kind: output, shape index: {}]
  %s6 = sld [smem:[#allocation0]]
  $region42: #{siamese_forward.1} parent=0
    _
  %s8 = ssub.s32 1, %s6
  %s9 = scalar_select 0, %s8, %s6
  $region1: #{siamese_forward.1} parent=0
    #allocation2 [shape = 'u8[3145728]{0}', space=vmem, size = 0x300000, scoped, tag = 'input window, operand 2, single buffered']
    #allocation3 [shape = 's32[1]{0}', space=sflag, size = 0x4, scoped, tag = 'scoped memory for siamese_forward.1']
    #allocation4 [shape = 'u8[1048576]{0}', space=vmem, size = 0x100000, scoped, tag = 'input window, operand 3, single buffered']
    #allocation5 [shape = 's32[1]{0}', space=sflag, size = 0x4, scoped, tag = 'scoped memory for siamese_forward.1']
    #allocation6 [shape = 'u8[1024]{0}', space=vmem, size = 0x400, scoped, tag = 'input window, operand 4, single buffered']
    %10 = vsyncpa [#allocation3], 0
    %11 = vsyncpa [#allocation5], 0
    // Predicated region
    $region2: #{siamese_forward.1} parent=1 // pred_check
      _
    $region3: #{siamese_forward.1} parent=1 // pred_check_branch
      %13 = sbr.rel (0) target = $region5
    $region4: #{siamese_forward.1} parent=1 // pred_region
      _
    $region5: #{siamese_forward.1} parent=1 // pred_fallthru
      _
    // Predicated region
    $region6: #{siamese_forward.1} parent=1 // pred_check
      _
    $region7: #{siamese_forward.1} parent=1 // pred_check_branch
      %15 = sbr.rel (0) target = $region9
    $region8: #{siamese_forward.1} parent=1 // pred_region
      _
    $region9: #{siamese_forward.1} parent=1 // pred_fallthru
      _
    // Predicated region
    $region10: #{siamese_forward.1} parent=1 // pred_check
      _
    $region11: #{siamese_forward.1} parent=1 // pred_check_branch
      %17 = sbr.rel (0) target = $region13
    $region12: #{siamese_forward.1} parent=1 // pred_region
      %s19 = ssub.s32 98304, 98304
      %20 = vsyncadd [#allocation3], %s19
      %s21 = sshll.u32 [#allocation2], 4
      %s22 = int_to_ptr.vmem [resolvable:$true] %s21
      %27 = dma.hbm_to_vmem [thread:$0]  %s2, 98304, %s22, [#allocation3], 128, 128, 8
    $region13: #{siamese_forward.1} parent=1 // pred_fallthru
      _
    // Predicated region
    $region14: #{siamese_forward.1} parent=1 // pred_check
      _
    $region15: #{siamese_forward.1} parent=1 // pred_check_branch
      %29 = sbr.rel (0) target = $region17
    $region16: #{siamese_forward.1} parent=1 // pred_region
      %s31 = ssub.s32 32768, 32768
      %32 = vsyncadd [#allocation5], %s31
      %s33 = sshll.u32 [#allocation4], 4
      %s34 = int_to_ptr.vmem [resolvable:$true] %s33
      %39 = dma.hbm_to_vmem [thread:$0]  %s3, 32768, %s34, [#allocation5], 128, 128, 8
    $region17: #{siamese_forward.1} parent=1 // pred_fallthru
      _
    // Predicated region
    $region18: #{siamese_forward.1} parent=1 // pred_check
      _
    $region19: #{siamese_forward.1} parent=1 // pred_check_branch
      %41 = sbr.rel (0) target = $region21
    $region20: #{siamese_forward.1} parent=1 // pred_region
      %s43 = ssub.s32 32, 32
      %44 = vsyncadd [#allocation5], %s43
      %s46 = sshll.u32 [#allocation6], 4
      %s47 = int_to_ptr.vmem [resolvable:$true] %s46
      %49 = dma.hbm_to_vmem [thread:$0]  %s4, 32, %s47, [#allocation5]
    $region21: #{siamese_forward.1} parent=1 // pred_fallthru
      _
    // Predicated region
    $region22: #{siamese_forward.1} parent=1 // pred_check
      _
    $region23: #{siamese_forward.1} parent=1 // pred_check_branch
      %51 = sbr.rel (0) target = $region25
    $region24: #{siamese_forward.1} parent=1 // pred_region
      %52 = dma.done [#allocation3], 98304
    $region25: #{siamese_forward.1} parent=1 // pred_fallthru
      _
    // Predicated region
    $region26: #{siamese_forward.1} parent=1 // pred_check
      _
    $region27: #{siamese_forward.1} parent=1 // pred_check_branch
      %54 = sbr.rel (0) target = $region29
    $region28: #{siamese_forward.1} parent=1 // pred_region
      %55 = dma.done [#allocation5], 32768
    $region29: #{siamese_forward.1} parent=1 // pred_fallthru
      _
    // Predicated region
    $region30: #{siamese_forward.1} parent=1 // pred_check
      _
    $region31: #{siamese_forward.1} parent=1 // pred_check_branch
      %57 = sbr.rel (0) target = $region33
    $region32: #{siamese_forward.1} parent=1 // pred_region
      %58 = dma.done [#allocation5], 32
    $region33: #{siamese_forward.1} parent=1 // pred_fallthru
      _
    %v59 = vld [vmem:[%s1] sm:$0xff]
    %v60 = vld [vmem:[%s1 + $0x8] sm:$0xff]
    %v61 = vld [vmem:[%s1 + $0x10] sm:$0xff]
    %v62 = vld [vmem:[%s1 + $0x18] sm:$0xff]
    %v63 = vld [vmem:[%s1 + $0x20] sm:$0xff]
    %v64 = vld [vmem:[%s1 + $0x28] sm:$0xff]
    %v65 = vld [vmem:[%s1 + $0x30] sm:$0xff]
    %v66 = vld [vmem:[%s1 + $0x38] sm:$0xff]
    %v67 = vld [vmem:[#allocation4] sm:$0xff]
    %v68 = vld [vmem:[#allocation4 + $0x8] sm:$0xff]
    %v69 = vld [vmem:[#allocation4 + $0x10] sm:$0xff]
    %v70 = vld [vmem:[#allocation4 + $0x18] sm:$0xff]
    %v71 = vld [vmem:[#allocation4 + $0x20] sm:$0xff]
    %v72 = vld [vmem:[#allocation4 + $0x28] sm:$0xff]
    %v73 = vld [vmem:[#allocation4 + $0x30] sm:$0xff]
    %v74 = vld [vmem:[#allocation4 + $0x38] sm:$0xff]
    %v75 = vld [vmem:[#allocation4 + $0x40] sm:$0xff]
    %v76 = vld [vmem:[#allocation4 + $0x48] sm:$0xff]
    %v77 = vld [vmem:[#allocation4 + $0x50] sm:$0xff]
    %v78 = vld [vmem:[#allocation4 + $0x58] sm:$0xff]
    %v79 = vld [vmem:[#allocation4 + $0x60] sm:$0xff]
    %v80 = vld [vmem:[#allocation4 + $0x68] sm:$0xff]
    %v81 = vld [vmem:[#allocation4 + $0x70] sm:$0xff]
    %v82 = vld [vmem:[#allocation4 + $0x78] sm:$0xff]
    %v83 = vld [vmem:[#allocation4 + $0x80] sm:$0xff]
    %v84 = vld [vmem:[#allocation4 + $0x88] sm:$0xff]
    %v85 = vld [vmem:[#allocation4 + $0x90] sm:$0xff]
    %v86 = vld [vmem:[#allocation4 + $0x98] sm:$0xff]
    %v87 = vld [vmem:[#allocation4 + $0xa0] sm:$0xff]
    %v88 = vld [vmem:[#allocation4 + $0xa8] sm:$0xff]
    %v89 = vld [vmem:[#allocation4 + $0xb0] sm:$0xff]
    %v90 = vld [vmem:[#allocation4 + $0xb8] sm:$0xff]
    %v91 = vld [vmem:[#allocation4 + $0xc0] sm:$0xff]
    %v92 = vld [vmem:[#allocation4 + $0xc8] sm:$0xff]
    %v93 = vld [vmem:[#allocation4 + $0xd0] sm:$0xff]
    %v94 = vld [vmem:[#allocation4 + $0xd8] sm:$0xff]
    %v95 = vld [vmem:[#allocation4 + $0xe0] sm:$0xff]
    %v96 = vld [vmem:[#allocation4 + $0xe8] sm:$0xff]
    %v97 = vld [vmem:[#allocation4 + $0xf0] sm:$0xff]
    %v98 = vld [vmem:[#allocation4 + $0xf8] sm:$0xff]
    %v99 = vld [vmem:[#allocation4 + $0x100] sm:$0xff]
    %v100 = vld [vmem:[#allocation4 + $0x108] sm:$0xff]
    %v101 = vld [vmem:[#allocation4 + $0x110] sm:$0xff]
    %v102 = vld [vmem:[#allocation4 + $0x118] sm:$0xff]
    %v103 = vld [vmem:[#allocation4 + $0x120] sm:$0xff]
    %v104 = vld [vmem:[#allocation4 + $0x128] sm:$0xff]
    %v105 = vld [vmem:[#allocation4 + $0x130] sm:$0xff]
    %v106 = vld [vmem:[#allocation4 + $0x138] sm:$0xff]
    %v107 = vld [vmem:[#allocation4 + $0x140] sm:$0xff]
    %v108 = vld [vmem:[#allocation4 + $0x148] sm:$0xff]
    %v109 = vld [vmem:[#allocation4 + $0x150] sm:$0xff]
    %v110 = vld [vmem:[#allocation4 + $0x158] sm:$0xff]
    %v111 = vld [vmem:[#allocation4 + $0x160] sm:$0xff]
    %v112 = vld [vmem:[#allocation4 + $0x168] sm:$0xff]
    %v113 = vld [vmem:[#allocation4 + $0x170] sm:$0xff]
    %v114 = vld [vmem:[#allocation4 + $0x178] sm:$0xff]
    %v115 = vld [vmem:[#allocation4 + $0x180] sm:$0xff]
    %v116 = vld [vmem:[#allocation4 + $0x188] sm:$0xff]
    %v117 = vld [vmem:[#allocation4 + $0x190] sm:$0xff]
    %v118 = vld [vmem:[#allocation4 + $0x198] sm:$0xff]
    %v119 = vld [vmem:[#allocation4 + $0x1a0] sm:$0xff]
    %v120 = vld [vmem:[#allocation4 + $0x1a8] sm:$0xff]
    %v121 = vld [vmem:[#allocation4 + $0x1b0] sm:$0xff]
    %v122 = vld [vmem:[#allocation4 + $0x1b8] sm:$0xff]
    %v123 = vld [vmem:[#allocation4 + $0x1c0] sm:$0xff]
    %v124 = vld [vmem:[#allocation4 + $0x1c8] sm:$0xff]
    %v125 = vld [vmem:[#allocation4 + $0x1d0] sm:$0xff]
    %v126 = vld [vmem:[#allocation4 + $0x1d8] sm:$0xff]
    %v127 = vld [vmem:[#allocation4 + $0x1e0] sm:$0xff]
    %v128 = vld [vmem:[#allocation4 + $0x1e8] sm:$0xff]
    %v129 = vld [vmem:[#allocation4 + $0x1f0] sm:$0xff]
    %v130 = vld [vmem:[#allocation4 + $0x1f8] sm:$0xff]
    %v131 = vld [vmem:[#allocation4 + $0x200] sm:$0xff]
    %v132 = vld [vmem:[#allocation4 + $0x208] sm:$0xff]
    %v133 = vld [vmem:[#allocation4 + $0x210] sm:$0xff]
    %v134 = vld [vmem:[#allocation4 + $0x218] sm:$0xff]
    %v135 = vld [vmem:[#allocation4 + $0x220] sm:$0xff]
    %v136 = vld [vmem:[#allocation4 + $0x228] sm:$0xff]
    %v137 = vld [vmem:[#allocation4 + $0x230] sm:$0xff]
    %v138 = vld [vmem:[#allocation4 + $0x238] sm:$0xff]
    %v139 = vld [vmem:[#allocation4 + $0x240] sm:$0xff]
    %v140 = vld [vmem:[#allocation4 + $0x248] sm:$0xff]
    %v141 = vld [vmem:[#allocation4 + $0x250] sm:$0xff]
    %v142 = vld [vmem:[#allocation4 + $0x258] sm:$0xff]
    %v143 = vld [vmem:[#allocation4 + $0x260] sm:$0xff]
    %v144 = vld [vmem:[#allocation4 + $0x268] sm:$0xff]
    %v145 = vld [vmem:[#allocation4 + $0x270] sm:$0xff]
    %v146 = vld [vmem:[#allocation4 + $0x278] sm:$0xff]
    %v147 = vld [vmem:[#allocation4 + $0x280] sm:$0xff]
    %v148 = vld [vmem:[#allocation4 + $0x288] sm:$0xff]
    %v149 = vld [vmem:[#allocation4 + $0x290] sm:$0xff]
    %v150 = vld [vmem:[#allocation4 + $0x298] sm:$0xff]
    %v151 = vld [vmem:[#allocation4 + $0x2a0] sm:$0xff]
    %v152 = vld [vmem:[#allocation4 + $0x2a8] sm:$0xff]
    %v153 = vld [vmem:[#allocation4 + $0x2b0] sm:$0xff]
    %v154 = vld [vmem:[#allocation4 + $0x2b8] sm:$0xff]
    %v155 = vld [vmem:[#allocation4 + $0x2c0] sm:$0xff]
    %v156 = vld [vmem:[#allocation4 + $0x2c8] sm:$0xff]
    %v157 = vld [vmem:[#allocation4 + $0x2d0] sm:$0xff]
    %v158 = vld [vmem:[#allocation4 + $0x2d8] sm:$0xff]
    %v159 = vld [vmem:[#allocation4 + $0x2e0] sm:$0xff]
    %v160 = vld [vmem:[#allocation4 + $0x2e8] sm:$0xff]
    %v161 = vld [vmem:[#allocation4 + $0x2f0] sm:$0xff]
    %v162 = vld [vmem:[#allocation4 + $0x2f8] sm:$0xff]
    %v163 = vld [vmem:[#allocation4 + $0x300] sm:$0xff]
    %v164 = vld [vmem:[#allocation4 + $0x308] sm:$0xff]
    %v165 = vld [vmem:[#allocation4 + $0x310] sm:$0xff]
    %v166 = vld [vmem:[#allocation4 + $0x318] sm:$0xff]
    %v167 = vld [vmem:[#allocation4 + $0x320] sm:$0xff]
    %v168 = vld [vmem:[#allocation4 + $0x328] sm:$0xff]
    %v169 = vld [vmem:[#allocation4 + $0x330] sm:$0xff]
    %v170 = vld [vmem:[#allocation4 + $0x338] sm:$0xff]
    %v171 = vld [vmem:[#allocation4 + $0x340] sm:$0xff]
    %v172 = vld [vmem:[#allocation4 + $0x348] sm:$0xff]
    %v173 = vld [vmem:[#allocation4 + $0x350] sm:$0xff]
    %v174 = vld [vmem:[#allocation4 + $0x358] sm:$0xff]
    %v175 = vld [vmem:[#allocation4 + $0x360] sm:$0xff]
    %v176 = vld [vmem:[#allocation4 + $0x368] sm:$0xff]
    %v177 = vld [vmem:[#allocation4 + $0x370] sm:$0xff]
    %v178 = vld [vmem:[#allocation4 + $0x378] sm:$0xff]
    %v179 = vld [vmem:[#allocation4 + $0x380] sm:$0xff]
    %v180 = vld [vmem:[#allocation4 + $0x388] sm:$0xff]
    %v181 = vld [vmem:[#allocation4 + $0x390] sm:$0xff]
    %v182 = vld [vmem:[#allocation4 + $0x398] sm:$0xff]
    %v183 = vld [vmem:[#allocation4 + $0x3a0] sm:$0xff]
    %v184 = vld [vmem:[#allocation4 + $0x3a8] sm:$0xff]
    %v185 = vld [vmem:[#allocation4 + $0x3b0] sm:$0xff]
    %v186 = vld [vmem:[#allocation4 + $0x3b8] sm:$0xff]
    %v187 = vld [vmem:[#allocation4 + $0x3c0] sm:$0xff]
    %v188 = vld [vmem:[#allocation4 + $0x3c8] sm:$0xff]
    %v189 = vld [vmem:[#allocation4 + $0x3d0] sm:$0xff]
    %v190 = vld [vmem:[#allocation4 + $0x3d8] sm:$0xff]
    %v191 = vld [vmem:[#allocation4 + $0x3e0] sm:$0xff]
    %v192 = vld [vmem:[#allocation4 + $0x3e8] sm:$0xff]
    %v193 = vld [vmem:[#allocation4 + $0x3f0] sm:$0xff]
    %v194 = vld [vmem:[#allocation4 + $0x3f8] sm:$0xff]
    %v195 = vld [vmem:[#allocation4 + $0x400] sm:$0xff]
    %v196 = vld [vmem:[#allocation4 + $0x408] sm:$0xff]
    %v197 = vld [vmem:[#allocation4 + $0x410] sm:$0xff]
    %v198 = vld [vmem:[#allocation4 + $0x418] sm:$0xff]
    %v199 = vld [vmem:[#allocation4 + $0x420] sm:$0xff]
    %v200 = vld [vmem:[#allocation4 + $0x428] sm:$0xff]
    %v201 = vld [vmem:[#allocation4 + $0x430] sm:$0xff]
    %v202 = vld [vmem:[#allocation4 + $0x438] sm:$0xff]
    %v203 = vld [vmem:[#allocation4 + $0x440] sm:$0xff]
    %v204 = vld [vmem:[#allocation4 + $0x448] sm:$0xff]
    %v205 = vld [vmem:[#allocation4 + $0x450] sm:$0xff]
    %v206 = vld [vmem:[#allocation4 + $0x458] sm:$0xff]
    %v207 = vld [vmem:[#allocation4 + $0x460] sm:$0xff]
    %v208 = vld [vmem:[#allocation4 + $0x468] sm:$0xff]
    %v209 = vld [vmem:[#allocation4 + $0x470] sm:$0xff]
    %v210 = vld [vmem:[#allocation4 + $0x478] sm:$0xff]
    %v211 = vld [vmem:[#allocation4 + $0x480] sm:$0xff]
    %v212 = vld [vmem:[#allocation4 + $0x488] sm:$0xff]
    %v213 = vld [vmem:[#allocation4 + $0x490] sm:$0xff]
    %v214 = vld [vmem:[#allocation4 + $0x498] sm:$0xff]
    %v215 = vld [vmem:[#allocation4 + $0x4a0] sm:$0xff]
    %v216 = vld [vmem:[#allocation4 + $0x4a8] sm:$0xff]
    %v217 = vld [vmem:[#allocation4 + $0x4b0] sm:$0xff]
    %v218 = vld [vmem:[#allocation4 + $0x4b8] sm:$0xff]
    %v219 = vld [vmem:[#allocation4 + $0x4c0] sm:$0xff]
    %v220 = vld [vmem:[#allocation4 + $0x4c8] sm:$0xff]
    %v221 = vld [vmem:[#allocation4 + $0x4d0] sm:$0xff]
    %v222 = vld [vmem:[#allocation4 + $0x4d8] sm:$0xff]
    %v223 = vld [vmem:[#allocation4 + $0x4e0] sm:$0xff]
    %v224 = vld [vmem:[#allocation4 + $0x4e8] sm:$0xff]
    %v225 = vld [vmem:[#allocation4 + $0x4f0] sm:$0xff]
    %v226 = vld [vmem:[#allocation4 + $0x4f8] sm:$0xff]
    %v227 = vld [vmem:[#allocation4 + $0x500] sm:$0xff]
    %v228 = vld [vmem:[#allocation4 + $0x508] sm:$0xff]
    %v229 = vld [vmem:[#allocation4 + $0x510] sm:$0xff]
    %v230 = vld [vmem:[#allocation4 + $0x518] sm:$0xff]
    %v231 = vld [vmem:[#allocation4 + $0x520] sm:$0xff]
    %v232 = vld [vmem:[#allocation4 + $0x528] sm:$0xff]
    %v233 = vld [vmem:[#allocation4 + $0x530] sm:$0xff]
    %v234 = vld [vmem:[#allocation4 + $0x538] sm:$0xff]
    %v235 = vld [vmem:[#allocation4 + $0x540] sm:$0xff]
    %v236 = vld [vmem:[#allocation4 + $0x548] sm:$0xff]
    %v237 = vld [vmem:[#allocation4 + $0x550] sm:$0xff]
    %v238 = vld [vmem:[#allocation4 + $0x558] sm:$0xff]
    %v239 = vld [vmem:[#allocation4 + $0x560] sm:$0xff]
    %v240 = vld [vmem:[#allocation4 + $0x568] sm:$0xff]
    %v241 = vld [vmem:[#allocation4 + $0x570] sm:$0xff]
    %v242 = vld [vmem:[#allocation4 + $0x578] sm:$0xff]
    %v243 = vld [vmem:[#allocation4 + $0x580] sm:$0xff]
    %v244 = vld [vmem:[#allocation4 + $0x588] sm:$0xff]
    %v245 = vld [vmem:[#allocation4 + $0x590] sm:$0xff]
    %v246 = vld [vmem:[#allocation4 + $0x598] sm:$0xff]
    %v247 = vld [vmem:[#allocation4 + $0x5a0] sm:$0xff]
    %v248 = vld [vmem:[#allocation4 + $0x5a8] sm:$0xff]
    %v249 = vld [vmem:[#allocation4 + $0x5b0] sm:$0xff]
    %v250 = vld [vmem:[#allocation4 + $0x5b8] sm:$0xff]
    %v251 = vld [vmem:[#allocation4 + $0x5c0] sm:$0xff]
    %v252 = vld [vmem:[#allocation4 + $0x5c8] sm:$0xff]
    %v253 = vld [vmem:[#allocation4 + $0x5d0] sm:$0xff]
    %v254 = vld [vmem:[#allocation4 + $0x5d8] sm:$0xff]
    %v255 = vld [vmem:[#allocation4 + $0x5e0] sm:$0xff]
    %v256 = vld [vmem:[#allocation4 + $0x5e8] sm:$0xff]
    %v257 = vld [vmem:[#allocation4 + $0x5f0] sm:$0xff]
    %v258 = vld [vmem:[#allocation4 + $0x5f8] sm:$0xff]
    %v259 = vld [vmem:[#allocation4 + $0x600] sm:$0xff]
    %v260 = vld [vmem:[#allocation4 + $0x608] sm:$0xff]
    %v261 = vld [vmem:[#allocation4 + $0x610] sm:$0xff]
    %v262 = vld [vmem:[#allocation4 + $0x618] sm:$0xff]
    %v263 = vld [vmem:[#allocation4 + $0x620] sm:$0xff]
    %v264 = vld [vmem:[#allocation4 + $0x628] sm:$0xff]
    %v265 = vld [vmem:[#allocation4 + $0x630] sm:$0xff]
    %v266 = vld [vmem:[#allocation4 + $0x638] sm:$0xff]
    %v267 = vld [vmem:[#allocation4 + $0x640] sm:$0xff]
    %v268 = vld [vmem:[#allocation4 + $0x648] sm:$0xff]
    %v269 = vld [vmem:[#allocation4 + $0x650] sm:$0xff]
    %v270 = vld [vmem:[#allocation4 + $0x658] sm:$0xff]
    %v271 = vld [vmem:[#allocation4 + $0x660] sm:$0xff]
    %v272 = vld [vmem:[#allocation4 + $0x668] sm:$0xff]
    %v273 = vld [vmem:[#allocation4 + $0x670] sm:$0xff]
    %v274 = vld [vmem:[#allocation4 + $0x678] sm:$0xff]
    %v275 = vld [vmem:[#allocation4 + $0x680] sm:$0xff]
    %v276 = vld [vmem:[#allocation4 + $0x688] sm:$0xff]
    %v277 = vld [vmem:[#allocation4 + $0x690] sm:$0xff]
    %v278 = vld [vmem:[#allocation4 + $0x698] sm:$0xff]
    %v279 = vld [vmem:[#allocation4 + $0x6a0] sm:$0xff]
    %v280 = vld [vmem:[#allocation4 + $0x6a8] sm:$0xff]
    %v281 = vld [vmem:[#allocation4 + $0x6b0] sm:$0xff]
    %v282 = vld [vmem:[#allocation4 + $0x6b8] sm:$0xff]
    %v283 = vld [vmem:[#allocation4 + $0x6c0] sm:$0xff]
    %v284 = vld [vmem:[#allocation4 + $0x6c8] sm:$0xff]
    %v285 = vld [vmem:[#allocation4 + $0x6d0] sm:$0xff]
    %v286 = vld [vmem:[#allocation4 + $0x6d8] sm:$0xff]
    %v287 = vld [vmem:[#allocation4 + $0x6e0] sm:$0xff]
    %v288 = vld [vmem:[#allocation4 + $0x6e8] sm:$0xff]
    %v289 = vld [vmem:[#allocation4 + $0x6f0] sm:$0xff]
    %v290 = vld [vmem:[#allocation4 + $0x6f8] sm:$0xff]
    %v291 = vld [vmem:[#allocation4 + $0x700] sm:$0xff]
    %v292 = vld [vmem:[#allocation4 + $0x708] sm:$0xff]
    %v293 = vld [vmem:[#allocation4 + $0x710] sm:$0xff]
    %v294 = vld [vmem:[#allocation4 + $0x718] sm:$0xff]
    %v295 = vld [vmem:[#allocation4 + $0x720] sm:$0xff]
    %v296 = vld [vmem:[#allocation4 + $0x728] sm:$0xff]
    %v297 = vld [vmem:[#allocation4 + $0x730] sm:$0xff]
    %v298 = vld [vmem:[#allocation4 + $0x738] sm:$0xff]
    %v299 = vld [vmem:[#allocation4 + $0x740] sm:$0xff]
    %v300 = vld [vmem:[#allocation4 + $0x748] sm:$0xff]
    %v301 = vld [vmem:[#allocation4 + $0x750] sm:$0xff]
    %v302 = vld [vmem:[#allocation4 + $0x758] sm:$0xff]
    %v303 = vld [vmem:[#allocation4 + $0x760] sm:$0xff]
    %v304 = vld [vmem:[#allocation4 + $0x768] sm:$0xff]
    %v305 = vld [vmem:[#allocation4 + $0x770] sm:$0xff]
    %v306 = vld [vmem:[#allocation4 + $0x778] sm:$0xff]
    %v307 = vld [vmem:[#allocation4 + $0x780] sm:$0xff]
    %v308 = vld [vmem:[#allocation4 + $0x788] sm:$0xff]
    %v309 = vld [vmem:[#allocation4 + $0x790] sm:$0xff]
    %v310 = vld [vmem:[#allocation4 + $0x798] sm:$0xff]
    %v311 = vld [vmem:[#allocation4 + $0x7a0] sm:$0xff]
    %v312 = vld [vmem:[#allocation4 + $0x7a8] sm:$0xff]
    %v313 = vld [vmem:[#allocation4 + $0x7b0] sm:$0xff]
    %v314 = vld [vmem:[#allocation4 + $0x7b8] sm:$0xff]
    %v315 = vld [vmem:[#allocation4 + $0x7c0] sm:$0xff]
    %v316 = vld [vmem:[#allocation4 + $0x7c8] sm:$0xff]
    %v317 = vld [vmem:[#allocation4 + $0x7d0] sm:$0xff]
    %v318 = vld [vmem:[#allocation4 + $0x7d8] sm:$0xff]
    %v319 = vld [vmem:[#allocation4 + $0x7e0] sm:$0xff]
    %v320 = vld [vmem:[#allocation4 + $0x7e8] sm:$0xff]
    %v321 = vld [vmem:[#allocation4 + $0x7f0] sm:$0xff]
    %v322 = vld [vmem:[#allocation4 + $0x7f8] sm:$0xff]
    %v323 = vld [vmem:[%s0] sm:$0xff]
    %v324 = vld [vmem:[%s0 + $0x8] sm:$0xff]
    %v325 = vld [vmem:[%s0 + $0x10] sm:$0xff]
    %v326 = vld [vmem:[%s0 + $0x18] sm:$0xff]
    %v327 = vld [vmem:[%s0 + $0x20] sm:$0xff]
    %v328 = vld [vmem:[%s0 + $0x28] sm:$0xff]
    %v329 = vld [vmem:[%s0 + $0x30] sm:$0xff]
    %v330 = vld [vmem:[%s0 + $0x38] sm:$0xff]
    %v331 = vld [vmem:[%s0 + $0x40] sm:$0xff]
    %v332 = vld [vmem:[%s0 + $0x48] sm:$0xff]
    %v333 = vld [vmem:[%s0 + $0x50] sm:$0xff]
    %v334 = vld [vmem:[%s0 + $0x58] sm:$0xff]
    %v335 = vld [vmem:[%s0 + $0x60] sm:$0xff]
    %v336 = vld [vmem:[%s0 + $0x68] sm:$0xff]
    %v337 = vld [vmem:[%s0 + $0x70] sm:$0xff]
    %v338 = vld [vmem:[%s0 + $0x78] sm:$0xff]
    %v339 = vld [vmem:[%s0 + $0x80] sm:$0xff]
    %v340 = vld [vmem:[%s0 + $0x88] sm:$0xff]
    %v341 = vld [vmem:[%s0 + $0x90] sm:$0xff]
    %v342 = vld [vmem:[%s0 + $0x98] sm:$0xff]
    %v343 = vld [vmem:[%s0 + $0xa0] sm:$0xff]
    %v344 = vld [vmem:[%s0 + $0xa8] sm:$0xff]
    %v345 = vld [vmem:[%s0 + $0xb0] sm:$0xff]
    %v346 = vld [vmem:[%s0 + $0xb8] sm:$0xff]
    %v347 = vld [vmem:[#allocation2] sm:$0xff]
    %v348 = vld [vmem:[#allocation2 + $0x8] sm:$0xff]
    %v349 = vld [vmem:[#allocation2 + $0x10] sm:$0xff]
    %v350 = vld [vmem:[#allocation2 + $0x18] sm:$0xff]
    %v351 = vld [vmem:[#allocation2 + $0x20] sm:$0xff]
    %v352 = vld [vmem:[#allocation2 + $0x28] sm:$0xff]
    %v353 = vld [vmem:[#allocation2 + $0x30] sm:$0xff]
    %v354 = vld [vmem:[#allocation2 + $0x38] sm:$0xff]
    %v355 = vld [vmem:[#allocation2 + $0x40] sm:$0xff]
    %v356 = vld [vmem:[#allocation2 + $0x48] sm:$0xff]
    %v357 = vld [vmem:[#allocation2 + $0x50] sm:$0xff]
    %v358 = vld [vmem:[#allocation2 + $0x58] sm:$0xff]
    %v359 = vld [vmem:[#allocation2 + $0x60] sm:$0xff]
    %v360 = vld [vmem:[#allocation2 + $0x68] sm:$0xff]
    %v361 = vld [vmem:[#allocation2 + $0x70] sm:$0xff]
    %v362 = vld [vmem:[#allocation2 + $0x78] sm:$0xff]
    %v363 = vld [vmem:[#allocation2 + $0x80] sm:$0xff]
    %v364 = vld [vmem:[#allocation2 + $0x88] sm:$0xff]
    %v365 = vld [vmem:[#allocation2 + $0x90] sm:$0xff]
    %v366 = vld [vmem:[#allocation2 + $0x98] sm:$0xff]
    %v367 = vld [vmem:[#allocation2 + $0xa0] sm:$0xff]
    %v368 = vld [vmem:[#allocation2 + $0xa8] sm:$0xff]
    %v369 = vld [vmem:[#allocation2 + $0xb0] sm:$0xff]
    %v370 = vld [vmem:[#allocation2 + $0xb8] sm:$0xff]
    %v371 = vld [vmem:[#allocation2 + $0xc0] sm:$0xff]
    %v372 = vld [vmem:[#allocation2 + $0xc8] sm:$0xff]
    %v373 = vld [vmem:[#allocation2 + $0xd0] sm:$0xff]
    %v374 = vld [vmem:[#allocation2 + $0xd8] sm:$0xff]
    %v375 = vld [vmem:[#allocation2 + $0xe0] sm:$0xff]
    %v376 = vld [vmem:[#allocation2 + $0xe8] sm:$0xff]
    %v377 = vld [vmem:[#allocation2 + $0xf0] sm:$0xff]
    %v378 = vld [vmem:[#allocation2 + $0xf8] sm:$0xff]
    %v379 = vld [vmem:[#allocation2 + $0x100] sm:$0xff]
    %v380 = vld [vmem:[#allocation2 + $0x108] sm:$0xff]
    %v381 = vld [vmem:[#allocation2 + $0x110] sm:$0xff]
    %v382 = vld [vmem:[#allocation2 + $0x118] sm:$0xff]
    %v383 = vld [vmem:[#allocation2 + $0x120] sm:$0xff]
    %v384 = vld [vmem:[#allocation2 + $0x128] sm:$0xff]
    %v385 = vld [vmem:[#allocation2 + $0x130] sm:$0xff]
    %v386 = vld [vmem:[#allocation2 + $0x138] sm:$0xff]
    %v387 = vld [vmem:[#allocation2 + $0x140] sm:$0xff]
    %v388 = vld [vmem:[#allocation2 + $0x148] sm:$0xff]
    %v389 = vld [vmem:[#allocation2 + $0x150] sm:$0xff]
    %v390 = vld [vmem:[#allocation2 + $0x158] sm:$0xff]
    %v391 = vld [vmem:[#allocation2 + $0x160] sm:$0xff]
    %v392 = vld [vmem:[#allocation2 + $0x168] sm:$0xff]
    %v393 = vld [vmem:[#allocation2 + $0x170] sm:$0xff]
    %v394 = vld [vmem:[#allocation2 + $0x178] sm:$0xff]
    %v395 = vld [vmem:[#allocation2 + $0x180] sm:$0xff]
    %v396 = vld [vmem:[#allocation2 + $0x188] sm:$0xff]
    %v397 = vld [vmem:[#allocation2 + $0x190] sm:$0xff]
    %v398 = vld [vmem:[#allocation2 + $0x198] sm:$0xff]
    %v399 = vld [vmem:[#allocation2 + $0x1a0] sm:$0xff]
    %v400 = vld [vmem:[#allocation2 + $0x1a8] sm:$0xff]
    %v401 = vld [vmem:[#allocation2 + $0x1b0] sm:$0xff]
    %v402 = vld [vmem:[#allocation2 + $0x1b8] sm:$0xff]
    %v403 = vld [vmem:[#allocation2 + $0x1c0] sm:$0xff]
    %v404 = vld [vmem:[#allocation2 + $0x1c8] sm:$0xff]
    %v405 = vld [vmem:[#allocation2 + $0x1d0] sm:$0xff]
    %v406 = vld [vmem:[#allocation2 + $0x1d8] sm:$0xff]
    %v407 = vld [vmem:[#allocation2 + $0x1e0] sm:$0xff]
    %v408 = vld [vmem:[#allocation2 + $0x1e8] sm:$0xff]
    %v409 = vld [vmem:[#allocation2 + $0x1f0] sm:$0xff]
    %v410 = vld [vmem:[#allocation2 + $0x1f8] sm:$0xff]
    %v411 = vld [vmem:[#allocation2 + $0x200] sm:$0xff]
    %v412 = vld [vmem:[#allocation2 + $0x208] sm:$0xff]
    %v413 = vld [vmem:[#allocation2 + $0x210] sm:$0xff]
    %v414 = vld [vmem:[#allocation2 + $0x218] sm:$0xff]
    %v415 = vld [vmem:[#allocation2 + $0x220] sm:$0xff]
    %v416 = vld [vmem:[#allocation2 + $0x228] sm:$0xff]
    %v417 = vld [vmem:[#allocation2 + $0x230] sm:$0xff]
    %v418 = vld [vmem:[#allocation2 + $0x238] sm:$0xff]
    %v419 = vld [vmem:[#allocation2 + $0x240] sm:$0xff]
    %v420 = vld [vmem:[#allocation2 + $0x248] sm:$0xff]
    %v421 = vld [vmem:[#allocation2 + $0x250] sm:$0xff]
    %v422 = vld [vmem:[#allocation2 + $0x258] sm:$0xff]
    %v423 = vld [vmem:[#allocation2 + $0x260] sm:$0xff]
    %v424 = vld [vmem:[#allocation2 + $0x268] sm:$0xff]
    %v425 = vld [vmem:[#allocation2 + $0x270] sm:$0xff]
    %v426 = vld [vmem:[#allocation2 + $0x278] sm:$0xff]
    %v427 = vld [vmem:[#allocation2 + $0x280] sm:$0xff]
    %v428 = vld [vmem:[#allocation2 + $0x288] sm:$0xff]
    %v429 = vld [vmem:[#allocation2 + $0x290] sm:$0xff]
    %v430 = vld [vmem:[#allocation2 + $0x298] sm:$0xff]
    %v431 = vld [vmem:[#allocation2 + $0x2a0] sm:$0xff]
    %v432 = vld [vmem:[#allocation2 + $0x2a8] sm:$0xff]
    %v433 = vld [vmem:[#allocation2 + $0x2b0] sm:$0xff]
    %v434 = vld [vmem:[#allocation2 + $0x2b8] sm:$0xff]
    %v435 = vld [vmem:[#allocation2 + $0x2c0] sm:$0xff]
    %v436 = vld [vmem:[#allocation2 + $0x2c8] sm:$0xff]
    %v437 = vld [vmem:[#allocation2 + $0x2d0] sm:$0xff]
    %v438 = vld [vmem:[#allocation2 + $0x2d8] sm:$0xff]
    %v439 = vld [vmem:[#allocation2 + $0x2e0] sm:$0xff]
    %v440 = vld [vmem:[#allocation2 + $0x2e8] sm:$0xff]
    %v441 = vld [vmem:[#allocation2 + $0x2f0] sm:$0xff]
    %v442 = vld [vmem:[#allocation2 + $0x2f8] sm:$0xff]
    %v443 = vld [vmem:[#allocation2 + $0x300] sm:$0xff]
    %v444 = vld [vmem:[#allocation2 + $0x308] sm:$0xff]
    %v445 = vld [vmem:[#allocation2 + $0x310] sm:$0xff]
    %v446 = vld [vmem:[#allocation2 + $0x318] sm:$0xff]
    %v447 = vld [vmem:[#allocation2 + $0x320] sm:$0xff]
    %v448 = vld [vmem:[#allocation2 + $0x328] sm:$0xff]
    %v449 = vld [vmem:[#allocation2 + $0x330] sm:$0xff]
    %v450 = vld [vmem:[#allocation2 + $0x338] sm:$0xff]
    %v451 = vld [vmem:[#allocation2 + $0x340] sm:$0xff]
    %v452 = vld [vmem:[#allocation2 + $0x348] sm:$0xff]
    %v453 = vld [vmem:[#allocation2 + $0x350] sm:$0xff]
    %v454 = vld [vmem:[#allocation2 + $0x358] sm:$0xff]
    %v455 = vld [vmem:[#allocation2 + $0x360] sm:$0xff]
    %v456 = vld [vmem:[#allocation2 + $0x368] sm:$0xff]
    %v457 = vld [vmem:[#allocation2 + $0x370] sm:$0xff]
    %v458 = vld [vmem:[#allocation2 + $0x378] sm:$0xff]
    %v459 = vld [vmem:[#allocation2 + $0x380] sm:$0xff]
    %v460 = vld [vmem:[#allocation2 + $0x388] sm:$0xff]
    %v461 = vld [vmem:[#allocation2 + $0x390] sm:$0xff]
    %v462 = vld [vmem:[#allocation2 + $0x398] sm:$0xff]
    %v463 = vld [vmem:[#allocation2 + $0x3a0] sm:$0xff]
    %v464 = vld [vmem:[#allocation2 + $0x3a8] sm:$0xff]
    %v465 = vld [vmem:[#allocation2 + $0x3b0] sm:$0xff]
    %v466 = vld [vmem:[#allocation2 + $0x3b8] sm:$0xff]
    %v467 = vld [vmem:[#allocation2 + $0x3c0] sm:$0xff]
    %v468 = vld [vmem:[#allocation2 + $0x3c8] sm:$0xff]
    %v469 = vld [vmem:[#allocation2 + $0x3d0] sm:$0xff]
    %v470 = vld [vmem:[#allocation2 + $0x3d8] sm:$0xff]
    %v471 = vld [vmem:[#allocation2 + $0x3e0] sm:$0xff]
    %v472 = vld [vmem:[#allocation2 + $0x3e8] sm:$0xff]
    %v473 = vld [vmem:[#allocation2 + $0x3f0] sm:$0xff]
    %v474 = vld [vmem:[#allocation2 + $0x3f8] sm:$0xff]
    %v475 = vld [vmem:[#allocation2 + $0x400] sm:$0xff]
    %v476 = vld [vmem:[#allocation2 + $0x408] sm:$0xff]
    %v477 = vld [vmem:[#allocation2 + $0x410] sm:$0xff]
    %v478 = vld [vmem:[#allocation2 + $0x418] sm:$0xff]
    %v479 = vld [vmem:[#allocation2 + $0x420] sm:$0xff]
    %v480 = vld [vmem:[#allocation2 + $0x428] sm:$0xff]
    %v481 = vld [vmem:[#allocation2 + $0x430] sm:$0xff]
    %v482 = vld [vmem:[#allocation2 + $0x438] sm:$0xff]
    %v483 = vld [vmem:[#allocation2 + $0x440] sm:$0xff]
    %v484 = vld [vmem:[#allocation2 + $0x448] sm:$0xff]
    %v485 = vld [vmem:[#allocation2 + $0x450] sm:$0xff]
    %v486 = vld [vmem:[#allocation2 + $0x458] sm:$0xff]
    %v487 = vld [vmem:[#allocation2 + $0x460] sm:$0xff]
    %v488 = vld [vmem:[#allocation2 + $0x468] sm:$0xff]
    %v489 = vld [vmem:[#allocation2 + $0x470] sm:$0xff]
    %v490 = vld [vmem:[#allocation2 + $0x478] sm:$0xff]
    %v491 = vld [vmem:[#allocation2 + $0x480] sm:$0xff]
    %v492 = vld [vmem:[#allocation2 + $0x488] sm:$0xff]
    %v493 = vld [vmem:[#allocation2 + $0x490] sm:$0xff]
    %v494 = vld [vmem:[#allocation2 + $0x498] sm:$0xff]
    %v495 = vld [vmem:[#allocation2 + $0x4a0] sm:$0xff]
    %v496 = vld [vmem:[#allocation2 + $0x4a8] sm:$0xff]
    %v497 = vld [vmem:[#allocation2 + $0x4b0] sm:$0xff]
    %v498 = vld [vmem:[#allocation2 + $0x4b8] sm:$0xff]
    %v499 = vld [vmem:[#allocation2 + $0x4c0] sm:$0xff]
    %v500 = vld [vmem:[#allocation2 + $0x4c8] sm:$0xff]
    %v501 = vld [vmem:[#allocation2 + $0x4d0] sm:$0xff]
    %v502 = vld [vmem:[#allocation2 + $0x4d8] sm:$0xff]
    %v503 = vld [vmem:[#allocation2 + $0x4e0] sm:$0xff]
    %v504 = vld [vmem:[#allocation2 + $0x4e8] sm:$0xff]
    %v505 = vld [vmem:[#allocation2 + $0x4f0] sm:$0xff]
    %v506 = vld [vmem:[#allocation2 + $0x4f8] sm:$0xff]
    %v507 = vld [vmem:[#allocation2 + $0x500] sm:$0xff]
    %v508 = vld [vmem:[#allocation2 + $0x508] sm:$0xff]
    %v509 = vld [vmem:[#allocation2 + $0x510] sm:$0xff]
    %v510 = vld [vmem:[#allocation2 + $0x518] sm:$0xff]
    %v511 = vld [vmem:[#allocation2 + $0x520] sm:$0xff]
    %v512 = vld [vmem:[#allocation2 + $0x528] sm:$0xff]
    %v513 = vld [vmem:[#allocation2 + $0x530] sm:$0xff]
    %v514 = vld [vmem:[#allocation2 + $0x538] sm:$0xff]
    %v515 = vld [vmem:[#allocation2 + $0x540] sm:$0xff]
    %v516 = vld [vmem:[#allocation2 + $0x548] sm:$0xff]
    %v517 = vld [vmem:[#allocation2 + $0x550] sm:$0xff]
    %v518 = vld [vmem:[#allocation2 + $0x558] sm:$0xff]
    %v519 = vld [vmem:[#allocation2 + $0x560] sm:$0xff]
    %v520 = vld [vmem:[#allocation2 + $0x568] sm:$0xff]
    %v521 = vld [vmem:[#allocation2 + $0x570] sm:$0xff]
    %v522 = vld [vmem:[#allocation2 + $0x578] sm:$0xff]
    %v523 = vld [vmem:[#allocation2 + $0x580] sm:$0xff]
    %v524 = vld [vmem:[#allocation2 + $0x588] sm:$0xff]
    %v525 = vld [vmem:[#allocation2 + $0x590] sm:$0xff]
    %v526 = vld [vmem:[#allocation2 + $0x598] sm:$0xff]
    %v527 = vld [vmem:[#allocation2 + $0x5a0] sm:$0xff]
    %v528 = vld [vmem:[#allocation2 + $0x5a8] sm:$0xff]
    %v529 = vld [vmem:[#allocation2 + $0x5b0] sm:$0xff]
    %v530 = vld [vmem:[#allocation2 + $0x5b8] sm:$0xff]
    %v531 = vld [vmem:[#allocation2 + $0x5c0] sm:$0xff]
    %v532 = vld [vmem:[#allocation2 + $0x5c8] sm:$0xff]
    %v533 = vld [vmem:[#allocation2 + $0x5d0] sm:$0xff]
    %v534 = vld [vmem:[#allocation2 + $0x5d8] sm:$0xff]
    %v535 = vld [vmem:[#allocation2 + $0x5e0] sm:$0xff]
    %v536 = vld [vmem:[#allocation2 + $0x5e8] sm:$0xff]
    %v537 = vld [vmem:[#allocation2 + $0x5f0] sm:$0xff]
    %v538 = vld [vmem:[#allocation2 + $0x5f8] sm:$0xff]
    %v539 = vld [vmem:[#allocation2 + $0x600] sm:$0xff]
    %v540 = vld [vmem:[#allocation2 + $0x608] sm:$0xff]
    %v541 = vld [vmem:[#allocation2 + $0x610] sm:$0xff]
    %v542 = vld [vmem:[#allocation2 + $0x618] sm:$0xff]
    %v543 = vld [vmem:[#allocation2 + $0x620] sm:$0xff]
    %v544 = vld [vmem:[#allocation2 + $0x628] sm:$0xff]
    %v545 = vld [vmem:[#allocation2 + $0x630] sm:$0xff]
    %v546 = vld [vmem:[#allocation2 + $0x638] sm:$0xff]
    %v547 = vld [vmem:[#allocation2 + $0x640] sm:$0xff]
    %v548 = vld [vmem:[#allocation2 + $0x648] sm:$0xff]
    %v549 = vld [vmem:[#allocation2 + $0x650] sm:$0xff]
    %v550 = vld [vmem:[#allocation2 + $0x658] sm:$0xff]
    %v551 = vld [vmem:[#allocation2 + $0x660] sm:$0xff]
    %v552 = vld [vmem:[#allocation2 + $0x668] sm:$0xff]
    %v553 = vld [vmem:[#allocation2 + $0x670] sm:$0xff]
    %v554 = vld [vmem:[#allocation2 + $0x678] sm:$0xff]
    %v555 = vld [vmem:[#allocation2 + $0x680] sm:$0xff]
    %v556 = vld [vmem:[#allocation2 + $0x688] sm:$0xff]
    %v557 = vld [vmem:[#allocation2 + $0x690] sm:$0xff]
    %v558 = vld [vmem:[#allocation2 + $0x698] sm:$0xff]
    %v559 = vld [vmem:[#allocation2 + $0x6a0] sm:$0xff]
    %v560 = vld [vmem:[#allocation2 + $0x6a8] sm:$0xff]
    %v561 = vld [vmem:[#allocation2 + $0x6b0] sm:$0xff]
    %v562 = vld [vmem:[#allocation2 + $0x6b8] sm:$0xff]
    %v563 = vld [vmem:[#allocation2 + $0x6c0] sm:$0xff]
    %v564 = vld [vmem:[#allocation2 + $0x6c8] sm:$0xff]
    %v565 = vld [vmem:[#allocation2 + $0x6d0] sm:$0xff]
    %v566 = vld [vmem:[#allocation2 + $0x6d8] sm:$0xff]
    %v567 = vld [vmem:[#allocation2 + $0x6e0] sm:$0xff]
    %v568 = vld [vmem:[#allocation2 + $0x6e8] sm:$0xff]
    %v569 = vld [vmem:[#allocation2 + $0x6f0] sm:$0xff]
    %v570 = vld [vmem:[#allocation2 + $0x6f8] sm:$0xff]
    %v571 = vld [vmem:[#allocation2 + $0x700] sm:$0xff]
    %v572 = vld [vmem:[#allocation2 + $0x708] sm:$0xff]
    %v573 = vld [vmem:[#allocation2 + $0x710] sm:$0xff]
    %v574 = vld [vmem:[#allocation2 + $0x718] sm:$0xff]
    %v575 = vld [vmem:[#allocation2 + $0x720] sm:$0xff]
    %v576 = vld [vmem:[#allocation2 + $0x728] sm:$0xff]
    %v577 = vld [vmem:[#allocation2 + $0x730] sm:$0xff]
    %v578 = vld [vmem:[#allocation2 + $0x738] sm:$0xff]
    %v579 = vld [vmem:[#allocation2 + $0x740] sm:$0xff]
    %v580 = vld [vmem:[#allocation2 + $0x748] sm:$0xff]
    %v581 = vld [vmem:[#allocation2 + $0x750] sm:$0xff]
    %v582 = vld [vmem:[#allocation2 + $0x758] sm:$0xff]
    %v583 = vld [vmem:[#allocation2 + $0x760] sm:$0xff]
    %v584 = vld [vmem:[#allocation2 + $0x768] sm:$0xff]
    %v585 = vld [vmem:[#allocation2 + $0x770] sm:$0xff]
    %v586 = vld [vmem:[#allocation2 + $0x778] sm:$0xff]
    %v587 = vld [vmem:[#allocation2 + $0x780] sm:$0xff]
    %v588 = vld [vmem:[#allocation2 + $0x788] sm:$0xff]
    %v589 = vld [vmem:[#allocation2 + $0x790] sm:$0xff]
    %v590 = vld [vmem:[#allocation2 + $0x798] sm:$0xff]
    %v591 = vld [vmem:[#allocation2 + $0x7a0] sm:$0xff]
    %v592 = vld [vmem:[#allocation2 + $0x7a8] sm:$0xff]
    %v593 = vld [vmem:[#allocation2 + $0x7b0] sm:$0xff]
    %v594 = vld [vmem:[#allocation2 + $0x7b8] sm:$0xff]
    %v595 = vld [vmem:[#allocation2 + $0x7c0] sm:$0xff]
    %v596 = vld [vmem:[#allocation2 + $0x7c8] sm:$0xff]
    %v597 = vld [vmem:[#allocation2 + $0x7d0] sm:$0xff]
    %v598 = vld [vmem:[#allocation2 + $0x7d8] sm:$0xff]
    %v599 = vld [vmem:[#allocation2 + $0x7e0] sm:$0xff]
    %v600 = vld [vmem:[#allocation2 + $0x7e8] sm:$0xff]
    %v601 = vld [vmem:[#allocation2 + $0x7f0] sm:$0xff]
    %v602 = vld [vmem:[#allocation2 + $0x7f8] sm:$0xff]
    %v603 = vld [vmem:[#allocation2 + $0x800] sm:$0xff]
    %v604 = vld [vmem:[#allocation2 + $0x808] sm:$0xff]
    %v605 = vld [vmem:[#allocation2 + $0x810] sm:$0xff]
    %v606 = vld [vmem:[#allocation2 + $0x818] sm:$0xff]
    %v607 = vld [vmem:[#allocation2 + $0x820] sm:$0xff]
    %v608 = vld [vmem:[#allocation2 + $0x828] sm:$0xff]
    %v609 = vld [vmem:[#allocation2 + $0x830] sm:$0xff]
    %v610 = vld [vmem:[#allocation2 + $0x838] sm:$0xff]
    %v611 = vld [vmem:[#allocation2 + $0x840] sm:$0xff]
    %v612 = vld [vmem:[#allocation2 + $0x848] sm:$0xff]
    %v613 = vld [vmem:[#allocation2 + $0x850] sm:$0xff]
    %v614 = vld [vmem:[#allocation2 + $0x858] sm:$0xff]
    %v615 = vld [vmem:[#allocation2 + $0x860] sm:$0xff]
    %v616 = vld [vmem:[#allocation2 + $0x868] sm:$0xff]
    %v617 = vld [vmem:[#allocation2 + $0x870] sm:$0xff]
    %v618 = vld [vmem:[#allocation2 + $0x878] sm:$0xff]
    %v619 = vld [vmem:[#allocation2 + $0x880] sm:$0xff]
    %v620 = vld [vmem:[#allocation2 + $0x888] sm:$0xff]
    %v621 = vld [vmem:[#allocation2 + $0x890] sm:$0xff]
    %v622 = vld [vmem:[#allocation2 + $0x898] sm:$0xff]
    %v623 = vld [vmem:[#allocation2 + $0x8a0] sm:$0xff]
    %v624 = vld [vmem:[#allocation2 + $0x8a8] sm:$0xff]
    %v625 = vld [vmem:[#allocation2 + $0x8b0] sm:$0xff]
    %v626 = vld [vmem:[#allocation2 + $0x8b8] sm:$0xff]
    %v627 = vld [vmem:[#allocation2 + $0x8c0] sm:$0xff]
    %v628 = vld [vmem:[#allocation2 + $0x8c8] sm:$0xff]
    %v629 = vld [vmem:[#allocation2 + $0x8d0] sm:$0xff]
    %v630 = vld [vmem:[#allocation2 + $0x8d8] sm:$0xff]
    %v631 = vld [vmem:[#allocation2 + $0x8e0] sm:$0xff]
    %v632 = vld [vmem:[#allocation2 + $0x8e8] sm:$0xff]
    %v633 = vld [vmem:[#allocation2 + $0x8f0] sm:$0xff]
    %v634 = vld [vmem:[#allocation2 + $0x8f8] sm:$0xff]
    %v635 = vld [vmem:[#allocation2 + $0x900] sm:$0xff]
    %v636 = vld [vmem:[#allocation2 + $0x908] sm:$0xff]
    %v637 = vld [vmem:[#allocation2 + $0x910] sm:$0xff]
    %v638 = vld [vmem:[#allocation2 + $0x918] sm:$0xff]
    %v639 = vld [vmem:[#allocation2 + $0x920] sm:$0xff]
    %v640 = vld [vmem:[#allocation2 + $0x928] sm:$0xff]
    %v641 = vld [vmem:[#allocation2 + $0x930] sm:$0xff]
    %v642 = vld [vmem:[#allocation2 + $0x938] sm:$0xff]
    %v643 = vld [vmem:[#allocation2 + $0x940] sm:$0xff]
    %v644 = vld [vmem:[#allocation2 + $0x948] sm:$0xff]
    %v645 = vld [vmem:[#allocation2 + $0x950] sm:$0xff]
    %v646 = vld [vmem:[#allocation2 + $0x958] sm:$0xff]
    %v647 = vld [vmem:[#allocation2 + $0x960] sm:$0xff]
    %v648 = vld [vmem:[#allocation2 + $0x968] sm:$0xff]
    %v649 = vld [vmem:[#allocation2 + $0x970] sm:$0xff]
    %v650 = vld [vmem:[#allocation2 + $0x978] sm:$0xff]
    %v651 = vld [vmem:[#allocation2 + $0x980] sm:$0xff]
    %v652 = vld [vmem:[#allocation2 + $0x988] sm:$0xff]
    %v653 = vld [vmem:[#allocation2 + $0x990] sm:$0xff]
    %v654 = vld [vmem:[#allocation2 + $0x998] sm:$0xff]
    %v655 = vld [vmem:[#allocation2 + $0x9a0] sm:$0xff]
    %v656 = vld [vmem:[#allocation2 + $0x9a8] sm:$0xff]
    %v657 = vld [vmem:[#allocation2 + $0x9b0] sm:$0xff]
    %v658 = vld [vmem:[#allocation2 + $0x9b8] sm:$0xff]
    %v659 = vld [vmem:[#allocation2 + $0x9c0] sm:$0xff]
    %v660 = vld [vmem:[#allocation2 + $0x9c8] sm:$0xff]
    %v661 = vld [vmem:[#allocation2 + $0x9d0] sm:$0xff]
    %v662 = vld [vmem:[#allocation2 + $0x9d8] sm:$0xff]
    %v663 = vld [vmem:[#allocation2 + $0x9e0] sm:$0xff]
    %v664 = vld [vmem:[#allocation2 + $0x9e8] sm:$0xff]
    %v665 = vld [vmem:[#allocation2 + $0x9f0] sm:$0xff]
    %v666 = vld [vmem:[#allocation2 + $0x9f8] sm:$0xff]
    %v667 = vld [vmem:[#allocation2 + $0xa00] sm:$0xff]
    %v668 = vld [vmem:[#allocation2 + $0xa08] sm:$0xff]
    %v669 = vld [vmem:[#allocation2 + $0xa10] sm:$0xff]
    %v670 = vld [vmem:[#allocation2 + $0xa18] sm:$0xff]
    %v671 = vld [vmem:[#allocation2 + $0xa20] sm:$0xff]
    %v672 = vld [vmem:[#allocation2 + $0xa28] sm:$0xff]
    %v673 = vld [vmem:[#allocation2 + $0xa30] sm:$0xff]
    %v674 = vld [vmem:[#allocation2 + $0xa38] sm:$0xff]
    %v675 = vld [vmem:[#allocation2 + $0xa40] sm:$0xff]
    %v676 = vld [vmem:[#allocation2 + $0xa48] sm:$0xff]
    %v677 = vld [vmem:[#allocation2 + $0xa50] sm:$0xff]
    %v678 = vld [vmem:[#allocation2 + $0xa58] sm:$0xff]
    %v679 = vld [vmem:[#allocation2 + $0xa60] sm:$0xff]
    %v680 = vld [vmem:[#allocation2 + $0xa68] sm:$0xff]
    %v681 = vld [vmem:[#allocation2 + $0xa70] sm:$0xff]
    %v682 = vld [vmem:[#allocation2 + $0xa78] sm:$0xff]
    %v683 = vld [vmem:[#allocation2 + $0xa80] sm:$0xff]
    %v684 = vld [vmem:[#allocation2 + $0xa88] sm:$0xff]
    %v685 = vld [vmem:[#allocation2 + $0xa90] sm:$0xff]
    %v686 = vld [vmem:[#allocation2 + $0xa98] sm:$0xff]
    %v687 = vld [vmem:[#allocation2 + $0xaa0] sm:$0xff]
    %v688 = vld [vmem:[#allocation2 + $0xaa8] sm:$0xff]
    %v689 = vld [vmem:[#allocation2 + $0xab0] sm:$0xff]
    %v690 = vld [vmem:[#allocation2 + $0xab8] sm:$0xff]
    %v691 = vld [vmem:[#allocation2 + $0xac0] sm:$0xff]
    %v692 = vld [vmem:[#allocation2 + $0xac8] sm:$0xff]
    %v693 = vld [vmem:[#allocation2 + $0xad0] sm:$0xff]
    %v694 = vld [vmem:[#allocation2 + $0xad8] sm:$0xff]
    %v695 = vld [vmem:[#allocation2 + $0xae0] sm:$0xff]
    %v696 = vld [vmem:[#allocation2 + $0xae8] sm:$0xff]
    %v697 = vld [vmem:[#allocation2 + $0xaf0] sm:$0xff]
    %v698 = vld [vmem:[#allocation2 + $0xaf8] sm:$0xff]
    %v699 = vld [vmem:[#allocation2 + $0xb00] sm:$0xff]
    %v700 = vld [vmem:[#allocation2 + $0xb08] sm:$0xff]
    %v701 = vld [vmem:[#allocation2 + $0xb10] sm:$0xff]
    %v702 = vld [vmem:[#allocation2 + $0xb18] sm:$0xff]
    %v703 = vld [vmem:[#allocation2 + $0xb20] sm:$0xff]
    %v704 = vld [vmem:[#allocation2 + $0xb28] sm:$0xff]
    %v705 = vld [vmem:[#allocation2 + $0xb30] sm:$0xff]
    %v706 = vld [vmem:[#allocation2 + $0xb38] sm:$0xff]
    %v707 = vld [vmem:[#allocation2 + $0xb40] sm:$0xff]
    %v708 = vld [vmem:[#allocation2 + $0xb48] sm:$0xff]
    %v709 = vld [vmem:[#allocation2 + $0xb50] sm:$0xff]
    %v710 = vld [vmem:[#allocation2 + $0xb58] sm:$0xff]
    %v711 = vld [vmem:[#allocation2 + $0xb60] sm:$0xff]
    %v712 = vld [vmem:[#allocation2 + $0xb68] sm:$0xff]
    %v713 = vld [vmem:[#allocation2 + $0xb70] sm:$0xff]
    %v714 = vld [vmem:[#allocation2 + $0xb78] sm:$0xff]
    %v715 = vld [vmem:[#allocation2 + $0xb80] sm:$0xff]
    %v716 = vld [vmem:[#allocation2 + $0xb88] sm:$0xff]
    %v717 = vld [vmem:[#allocation2 + $0xb90] sm:$0xff]
    %v718 = vld [vmem:[#allocation2 + $0xb98] sm:$0xff]
    %v719 = vld [vmem:[#allocation2 + $0xba0] sm:$0xff]
    %v720 = vld [vmem:[#allocation2 + $0xba8] sm:$0xff]
    %v721 = vld [vmem:[#allocation2 + $0xbb0] sm:$0xff]
    %v722 = vld [vmem:[#allocation2 + $0xbb8] sm:$0xff]
    %v723 = vld [vmem:[#allocation2 + $0xbc0] sm:$0xff]
    %v724 = vld [vmem:[#allocation2 + $0xbc8] sm:$0xff]
    %v725 = vld [vmem:[#allocation2 + $0xbd0] sm:$0xff]
    %v726 = vld [vmem:[#allocation2 + $0xbd8] sm:$0xff]
    %v727 = vld [vmem:[#allocation2 + $0xbe0] sm:$0xff]
    %v728 = vld [vmem:[#allocation2 + $0xbe8] sm:$0xff]
    %v729 = vld [vmem:[#allocation2 + $0xbf0] sm:$0xff]
    %v730 = vld [vmem:[#allocation2 + $0xbf8] sm:$0xff]
    %v731 = vld [vmem:[#allocation2 + $0xc00] sm:$0xff]
    %v732 = vld [vmem:[#allocation2 + $0xc08] sm:$0xff]
    %v733 = vld [vmem:[#allocation2 + $0xc10] sm:$0xff]
    %v734 = vld [vmem:[#allocation2 + $0xc18] sm:$0xff]
    %v735 = vld [vmem:[#allocation2 + $0xc20] sm:$0xff]
    %v736 = vld [vmem:[#allocation2 + $0xc28] sm:$0xff]
    %v737 = vld [vmem:[#allocation2 + $0xc30] sm:$0xff]
    %v738 = vld [vmem:[#allocation2 + $0xc38] sm:$0xff]
    %v739 = vld [vmem:[#allocation2 + $0xc40] sm:$0xff]
    %v740 = vld [vmem:[#allocation2 + $0xc48] sm:$0xff]
    %v741 = vld [vmem:[#allocation2 + $0xc50] sm:$0xff]
    %v742 = vld [vmem:[#allocation2 + $0xc58] sm:$0xff]
    %v743 = vld [vmem:[#allocation2 + $0xc60] sm:$0xff]
    %v744 = vld [vmem:[#allocation2 + $0xc68] sm:$0xff]
    %v745 = vld [vmem:[#allocation2 + $0xc70] sm:$0xff]
    %v746 = vld [vmem:[#allocation2 + $0xc78] sm:$0xff]
    %v747 = vld [vmem:[#allocation2 + $0xc80] sm:$0xff]
    %v748 = vld [vmem:[#allocation2 + $0xc88] sm:$0xff]
    %v749 = vld [vmem:[#allocation2 + $0xc90] sm:$0xff]
    %v750 = vld [vmem:[#allocation2 + $0xc98] sm:$0xff]
    %v751 = vld [vmem:[#allocation2 + $0xca0] sm:$0xff]
    %v752 = vld [vmem:[#allocation2 + $0xca8] sm:$0xff]
    %v753 = vld [vmem:[#allocation2 + $0xcb0] sm:$0xff]
    %v754 = vld [vmem:[#allocation2 + $0xcb8] sm:$0xff]
    %v755 = vld [vmem:[#allocation2 + $0xcc0] sm:$0xff]
    %v756 = vld [vmem:[#allocation2 + $0xcc8] sm:$0xff]
    %v757 = vld [vmem:[#allocation2 + $0xcd0] sm:$0xff]
    %v758 = vld [vmem:[#allocation2 + $0xcd8] sm:$0xff]
    %v759 = vld [vmem:[#allocation2 + $0xce0] sm:$0xff]
    %v760 = vld [vmem:[#allocation2 + $0xce8] sm:$0xff]
    %v761 = vld [vmem:[#allocation2 + $0xcf0] sm:$0xff]
    %v762 = vld [vmem:[#allocation2 + $0xcf8] sm:$0xff]
    %v763 = vld [vmem:[#allocation2 + $0xd00] sm:$0xff]
    %v764 = vld [vmem:[#allocation2 + $0xd08] sm:$0xff]
    %v765 = vld [vmem:[#allocation2 + $0xd10] sm:$0xff]
    %v766 = vld [vmem:[#allocation2 + $0xd18] sm:$0xff]
    %v767 = vld [vmem:[#allocation2 + $0xd20] sm:$0xff]
    %v768 = vld [vmem:[#allocation2 + $0xd28] sm:$0xff]
    %v769 = vld [vmem:[#allocation2 + $0xd30] sm:$0xff]
    %v770 = vld [vmem:[#allocation2 + $0xd38] sm:$0xff]
    %v771 = vld [vmem:[#allocation2 + $0xd40] sm:$0xff]
    %v772 = vld [vmem:[#allocation2 + $0xd48] sm:$0xff]
    %v773 = vld [vmem:[#allocation2 + $0xd50] sm:$0xff]
    %v774 = vld [vmem:[#allocation2 + $0xd58] sm:$0xff]
    %v775 = vld [vmem:[#allocation2 + $0xd60] sm:$0xff]
    %v776 = vld [vmem:[#allocation2 + $0xd68] sm:$0xff]
    %v777 = vld [vmem:[#allocation2 + $0xd70] sm:$0xff]
    %v778 = vld [vmem:[#allocation2 + $0xd78] sm:$0xff]
    %v779 = vld [vmem:[#allocation2 + $0xd80] sm:$0xff]
    %v780 = vld [vmem:[#allocation2 + $0xd88] sm:$0xff]
    %v781 = vld [vmem:[#allocation2 + $0xd90] sm:$0xff]
    %v782 = vld [vmem:[#allocation2 + $0xd98] sm:$0xff]
    %v783 = vld [vmem:[#allocation2 + $0xda0] sm:$0xff]
    %v784 = vld [vmem:[#allocation2 + $0xda8] sm:$0xff]
    %v785 = vld [vmem:[#allocation2 + $0xdb0] sm:$0xff]
    %v786 = vld [vmem:[#allocation2 + $0xdb8] sm:$0xff]
    %v787 = vld [vmem:[#allocation2 + $0xdc0] sm:$0xff]
    %v788 = vld [vmem:[#allocation2 + $0xdc8] sm:$0xff]
    %v789 = vld [vmem:[#allocation2 + $0xdd0] sm:$0xff]
    %v790 = vld [vmem:[#allocation2 + $0xdd8] sm:$0xff]
    %v791 = vld [vmem:[#allocation2 + $0xde0] sm:$0xff]
    %v792 = vld [vmem:[#allocation2 + $0xde8] sm:$0xff]
    %v793 = vld [vmem:[#allocation2 + $0xdf0] sm:$0xff]
    %v794 = vld [vmem:[#allocation2 + $0xdf8] sm:$0xff]
    %v795 = vld [vmem:[#allocation2 + $0xe00] sm:$0xff]
    %v796 = vld [vmem:[#allocation2 + $0xe08] sm:$0xff]
    %v797 = vld [vmem:[#allocation2 + $0xe10] sm:$0xff]
    %v798 = vld [vmem:[#allocation2 + $0xe18] sm:$0xff]
    %v799 = vld [vmem:[#allocation2 + $0xe20] sm:$0xff]
    %v800 = vld [vmem:[#allocation2 + $0xe28] sm:$0xff]
    %v801 = vld [vmem:[#allocation2 + $0xe30] sm:$0xff]
    %v802 = vld [vmem:[#allocation2 + $0xe38] sm:$0xff]
    %v803 = vld [vmem:[#allocation2 + $0xe40] sm:$0xff]
    %v804 = vld [vmem:[#allocation2 + $0xe48] sm:$0xff]
    %v805 = vld [vmem:[#allocation2 + $0xe50] sm:$0xff]
    %v806 = vld [vmem:[#allocation2 + $0xe58] sm:$0xff]
    %v807 = vld [vmem:[#allocation2 + $0xe60] sm:$0xff]
    %v808 = vld [vmem:[#allocation2 + $0xe68] sm:$0xff]
    %v809 = vld [vmem:[#allocation2 + $0xe70] sm:$0xff]
    %v810 = vld [vmem:[#allocation2 + $0xe78] sm:$0xff]
    %v811 = vld [vmem:[#allocation2 + $0xe80] sm:$0xff]
    %v812 = vld [vmem:[#allocation2 + $0xe88] sm:$0xff]
    %v813 = vld [vmem:[#allocation2 + $0xe90] sm:$0xff]
    %v814 = vld [vmem:[#allocation2 + $0xe98] sm:$0xff]
    %v815 = vld [vmem:[#allocation2 + $0xea0] sm:$0xff]
    %v816 = vld [vmem:[#allocation2 + $0xea8] sm:$0xff]
    %v817 = vld [vmem:[#allocation2 + $0xeb0] sm:$0xff]
    %v818 = vld [vmem:[#allocation2 + $0xeb8] sm:$0xff]
    %v819 = vld [vmem:[#allocation2 + $0xec0] sm:$0xff]
    %v820 = vld [vmem:[#allocation2 + $0xec8] sm:$0xff]
    %v821 = vld [vmem:[#allocation2 + $0xed0] sm:$0xff]
    %v822 = vld [vmem:[#allocation2 + $0xed8] sm:$0xff]
    %v823 = vld [vmem:[#allocation2 + $0xee0] sm:$0xff]
    %v824 = vld [vmem:[#allocation2 + $0xee8] sm:$0xff]
    %v825 = vld [vmem:[#allocation2 + $0xef0] sm:$0xff]
    %v826 = vld [vmem:[#allocation2 + $0xef8] sm:$0xff]
    %v827 = vld [vmem:[#allocation2 + $0xf00] sm:$0xff]
    %v828 = vld [vmem:[#allocation2 + $0xf08] sm:$0xff]
    %v829 = vld [vmem:[#allocation2 + $0xf10] sm:$0xff]
    %v830 = vld [vmem:[#allocation2 + $0xf18] sm:$0xff]
    %v831 = vld [vmem:[#allocation2 + $0xf20] sm:$0xff]
    %v832 = vld [vmem:[#allocation2 + $0xf28] sm:$0xff]
    %v833 = vld [vmem:[#allocation2 + $0xf30] sm:$0xff]
    %v834 = vld [vmem:[#allocation2 + $0xf38] sm:$0xff]
    %v835 = vld [vmem:[#allocation2 + $0xf40] sm:$0xff]
    %v836 = vld [vmem:[#allocation2 + $0xf48] sm:$0xff]
    %v837 = vld [vmem:[#allocation2 + $0xf50] sm:$0xff]
    %v838 = vld [vmem:[#allocation2 + $0xf58] sm:$0xff]
    %v839 = vld [vmem:[#allocation2 + $0xf60] sm:$0xff]
    %v840 = vld [vmem:[#allocation2 + $0xf68] sm:$0xff]
    %v841 = vld [vmem:[#allocation2 + $0xf70] sm:$0xff]
    %v842 = vld [vmem:[#allocation2 + $0xf78] sm:$0xff]
    %v843 = vld [vmem:[#allocation2 + $0xf80] sm:$0xff]
    %v844 = vld [vmem:[#allocation2 + $0xf88] sm:$0xff]
    %v845 = vld [vmem:[#allocation2 + $0xf90] sm:$0xff]
    %v846 = vld [vmem:[#allocation2 + $0xf98] sm:$0xff]
    %v847 = vld [vmem:[#allocation2 + $0xfa0] sm:$0xff]
    %v848 = vld [vmem:[#allocation2 + $0xfa8] sm:$0xff]
    %v849 = vld [vmem:[#allocation2 + $0xfb0] sm:$0xff]
    %v850 = vld [vmem:[#allocation2 + $0xfb8] sm:$0xff]
    %v851 = vld [vmem:[#allocation2 + $0xfc0] sm:$0xff]
    %v852 = vld [vmem:[#allocation2 + $0xfc8] sm:$0xff]
    %v853 = vld [vmem:[#allocation2 + $0xfd0] sm:$0xff]
    %v854 = vld [vmem:[#allocation2 + $0xfd8] sm:$0xff]
    %v855 = vld [vmem:[#allocation2 + $0xfe0] sm:$0xff]
    %v856 = vld [vmem:[#allocation2 + $0xfe8] sm:$0xff]
    %v857 = vld [vmem:[#allocation2 + $0xff0] sm:$0xff]
    %v858 = vld [vmem:[#allocation2 + $0xff8] sm:$0xff]
    %v859 = vld [vmem:[#allocation2 + $0x1000] sm:$0xff]
    %v860 = vld [vmem:[#allocation2 + $0x1008] sm:$0xff]
    %v861 = vld [vmem:[#allocation2 + $0x1010] sm:$0xff]
    %v862 = vld [vmem:[#allocation2 + $0x1018] sm:$0xff]
    %v863 = vld [vmem:[#allocation2 + $0x1020] sm:$0xff]
    %v864 = vld [vmem:[#allocation2 + $0x1028] sm:$0xff]
    %v865 = vld [vmem:[#allocation2 + $0x1030] sm:$0xff]
    %v866 = vld [vmem:[#allocation2 + $0x1038] sm:$0xff]
    %v867 = vld [vmem:[#allocation2 + $0x1040] sm:$0xff]
    %v868 = vld [vmem:[#allocation2 + $0x1048] sm:$0xff]
    %v869 = vld [vmem:[#allocation2 + $0x1050] sm:$0xff]
    %v870 = vld [vmem:[#allocation2 + $0x1058] sm:$0xff]
    %v871 = vld [vmem:[#allocation2 + $0x1060] sm:$0xff]
    %v872 = vld [vmem:[#allocation2 + $0x1068] sm:$0xff]
    %v873 = vld [vmem:[#allocation2 + $0x1070] sm:$0xff]
    %v874 = vld [vmem:[#allocation2 + $0x1078] sm:$0xff]
    %v875 = vld [vmem:[#allocation2 + $0x1080] sm:$0xff]
    %v876 = vld [vmem:[#allocation2 + $0x1088] sm:$0xff]
    %v877 = vld [vmem:[#allocation2 + $0x1090] sm:$0xff]
    %v878 = vld [vmem:[#allocation2 + $0x1098] sm:$0xff]
    %v879 = vld [vmem:[#allocation2 + $0x10a0] sm:$0xff]
    %v880 = vld [vmem:[#allocation2 + $0x10a8] sm:$0xff]
    %v881 = vld [vmem:[#allocation2 + $0x10b0] sm:$0xff]
    %v882 = vld [vmem:[#allocation2 + $0x10b8] sm:$0xff]
    %v883 = vld [vmem:[#allocation2 + $0x10c0] sm:$0xff]
    %v884 = vld [vmem:[#allocation2 + $0x10c8] sm:$0xff]
    %v885 = vld [vmem:[#allocation2 + $0x10d0] sm:$0xff]
    %v886 = vld [vmem:[#allocation2 + $0x10d8] sm:$0xff]
    %v887 = vld [vmem:[#allocation2 + $0x10e0] sm:$0xff]
    %v888 = vld [vmem:[#allocation2 + $0x10e8] sm:$0xff]
    %v889 = vld [vmem:[#allocation2 + $0x10f0] sm:$0xff]
    %v890 = vld [vmem:[#allocation2 + $0x10f8] sm:$0xff]
    %v891 = vld [vmem:[#allocation2 + $0x1100] sm:$0xff]
    %v892 = vld [vmem:[#allocation2 + $0x1108] sm:$0xff]
    %v893 = vld [vmem:[#allocation2 + $0x1110] sm:$0xff]
    %v894 = vld [vmem:[#allocation2 + $0x1118] sm:$0xff]
    %v895 = vld [vmem:[#allocation2 + $0x1120] sm:$0xff]
    %v896 = vld [vmem:[#allocation2 + $0x1128] sm:$0xff]
    %v897 = vld [vmem:[#allocation2 + $0x1130] sm:$0xff]
    %v898 = vld [vmem:[#allocation2 + $0x1138] sm:$0xff]
    %v899 = vld [vmem:[#allocation2 + $0x1140] sm:$0xff]
    %v900 = vld [vmem:[#allocation2 + $0x1148] sm:$0xff]
    %v901 = vld [vmem:[#allocation2 + $0x1150] sm:$0xff]
    %v902 = vld [vmem:[#allocation2 + $0x1158] sm:$0xff]
    %v903 = vld [vmem:[#allocation2 + $0x1160] sm:$0xff]
    %v904 = vld [vmem:[#allocation2 + $0x1168] sm:$0xff]
    %v905 = vld [vmem:[#allocation2 + $0x1170] sm:$0xff]
    %v906 = vld [vmem:[#allocation2 + $0x1178] sm:$0xff]
    %v907 = vld [vmem:[#allocation2 + $0x1180] sm:$0xff]
    %v908 = vld [vmem:[#allocation2 + $0x1188] sm:$0xff]
    %v909 = vld [vmem:[#allocation2 + $0x1190] sm:$0xff]
    %v910 = vld [vmem:[#allocation2 + $0x1198] sm:$0xff]
    %v911 = vld [vmem:[#allocation2 + $0x11a0] sm:$0xff]
    %v912 = vld [vmem:[#allocation2 + $0x11a8] sm:$0xff]
    %v913 = vld [vmem:[#allocation2 + $0x11b0] sm:$0xff]
    %v914 = vld [vmem:[#allocation2 + $0x11b8] sm:$0xff]
    %v915 = vld [vmem:[#allocation2 + $0x11c0] sm:$0xff]
    %v916 = vld [vmem:[#allocation2 + $0x11c8] sm:$0xff]
    %v917 = vld [vmem:[#allocation2 + $0x11d0] sm:$0xff]
    %v918 = vld [vmem:[#allocation2 + $0x11d8] sm:$0xff]
    %v919 = vld [vmem:[#allocation2 + $0x11e0] sm:$0xff]
    %v920 = vld [vmem:[#allocation2 + $0x11e8] sm:$0xff]
    %v921 = vld [vmem:[#allocation2 + $0x11f0] sm:$0xff]
    %v922 = vld [vmem:[#allocation2 + $0x11f8] sm:$0xff]
    %v923 = vld [vmem:[#allocation2 + $0x1200] sm:$0xff]
    %v924 = vld [vmem:[#allocation2 + $0x1208] sm:$0xff]
    %v925 = vld [vmem:[#allocation2 + $0x1210] sm:$0xff]
    %v926 = vld [vmem:[#allocation2 + $0x1218] sm:$0xff]
    %v927 = vld [vmem:[#allocation2 + $0x1220] sm:$0xff]
    %v928 = vld [vmem:[#allocation2 + $0x1228] sm:$0xff]
    %v929 = vld [vmem:[#allocation2 + $0x1230] sm:$0xff]
    %v930 = vld [vmem:[#allocation2 + $0x1238] sm:$0xff]
    %v931 = vld [vmem:[#allocation2 + $0x1240] sm:$0xff]
    %v932 = vld [vmem:[#allocation2 + $0x1248] sm:$0xff]
    %v933 = vld [vmem:[#allocation2 + $0x1250] sm:$0xff]
    %v934 = vld [vmem:[#allocation2 + $0x1258] sm:$0xff]
    %v935 = vld [vmem:[#allocation2 + $0x1260] sm:$0xff]
    %v936 = vld [vmem:[#allocation2 + $0x1268] sm:$0xff]
    %v937 = vld [vmem:[#allocation2 + $0x1270] sm:$0xff]
    %v938 = vld [vmem:[#allocation2 + $0x1278] sm:$0xff]
    %v939 = vld [vmem:[#allocation2 + $0x1280] sm:$0xff]
    %v940 = vld [vmem:[#allocation2 + $0x1288] sm:$0xff]
    %v941 = vld [vmem:[#allocation2 + $0x1290] sm:$0xff]
    %v942 = vld [vmem:[#allocation2 + $0x1298] sm:$0xff]
    %v943 = vld [vmem:[#allocation2 + $0x12a0] sm:$0xff]
    %v944 = vld [vmem:[#allocation2 + $0x12a8] sm:$0xff]
    %v945 = vld [vmem:[#allocation2 + $0x12b0] sm:$0xff]
    %v946 = vld [vmem:[#allocation2 + $0x12b8] sm:$0xff]
    %v947 = vld [vmem:[#allocation2 + $0x12c0] sm:$0xff]
    %v948 = vld [vmem:[#allocation2 + $0x12c8] sm:$0xff]
    %v949 = vld [vmem:[#allocation2 + $0x12d0] sm:$0xff]
    %v950 = vld [vmem:[#allocation2 + $0x12d8] sm:$0xff]
    %v951 = vld [vmem:[#allocation2 + $0x12e0] sm:$0xff]
    %v952 = vld [vmem:[#allocation2 + $0x12e8] sm:$0xff]
    %v953 = vld [vmem:[#allocation2 + $0x12f0] sm:$0xff]
    %v954 = vld [vmem:[#allocation2 + $0x12f8] sm:$0xff]
    %v955 = vld [vmem:[#allocation2 + $0x1300] sm:$0xff]
    %v956 = vld [vmem:[#allocation2 + $0x1308] sm:$0xff]
    %v957 = vld [vmem:[#allocation2 + $0x1310] sm:$0xff]
    %v958 = vld [vmem:[#allocation2 + $0x1318] sm:$0xff]
    %v959 = vld [vmem:[#allocation2 + $0x1320] sm:$0xff]
    %v960 = vld [vmem:[#allocation2 + $0x1328] sm:$0xff]
    %v961 = vld [vmem:[#allocation2 + $0x1330] sm:$0xff]
    %v962 = vld [vmem:[#allocation2 + $0x1338] sm:$0xff]
    %v963 = vld [vmem:[#allocation2 + $0x1340] sm:$0xff]
    %v964 = vld [vmem:[#allocation2 + $0x1348] sm:$0xff]
    %v965 = vld [vmem:[#allocation2 + $0x1350] sm:$0xff]
    %v966 = vld [vmem:[#allocation2 + $0x1358] sm:$0xff]
    %v967 = vld [vmem:[#allocation2 + $0x1360] sm:$0xff]
    %v968 = vld [vmem:[#allocation2 + $0x1368] sm:$0xff]
    %v969 = vld [vmem:[#allocation2 + $0x1370] sm:$0xff]
    %v970 = vld [vmem:[#allocation2 + $0x1378] sm:$0xff]
    %v971 = vld [vmem:[#allocation2 + $0x1380] sm:$0xff]
    %v972 = vld [vmem:[#allocation2 + $0x1388] sm:$0xff]
    %v973 = vld [vmem:[#allocation2 + $0x1390] sm:$0xff]
    %v974 = vld [vmem:[#allocation2 + $0x1398] sm:$0xff]
    %v975 = vld [vmem:[#allocation2 + $0x13a0] sm:$0xff]
    %v976 = vld [vmem:[#allocation2 + $0x13a8] sm:$0xff]
    %v977 = vld [vmem:[#allocation2 + $0x13b0] sm:$0xff]
    %v978 = vld [vmem:[#allocation2 + $0x13b8] sm:$0xff]
    %v979 = vld [vmem:[#allocation2 + $0x13c0] sm:$0xff]
    %v980 = vld [vmem:[#allocation2 + $0x13c8] sm:$0xff]
    %v981 = vld [vmem:[#allocation2 + $0x13d0] sm:$0xff]
    %v982 = vld [vmem:[#allocation2 + $0x13d8] sm:$0xff]
    %v983 = vld [vmem:[#allocation2 + $0x13e0] sm:$0xff]
    %v984 = vld [vmem:[#allocation2 + $0x13e8] sm:$0xff]
    %v985 = vld [vmem:[#allocation2 + $0x13f0] sm:$0xff]
    %v986 = vld [vmem:[#allocation2 + $0x13f8] sm:$0xff]
    %v987 = vld [vmem:[#allocation2 + $0x1400] sm:$0xff]
    %v988 = vld [vmem:[#allocation2 + $0x1408] sm:$0xff]
    %v989 = vld [vmem:[#allocation2 + $0x1410] sm:$0xff]
    %v990 = vld [vmem:[#allocation2 + $0x1418] sm:$0xff]
    %v991 = vld [vmem:[#allocation2 + $0x1420] sm:$0xff]
    %v992 = vld [vmem:[#allocation2 + $0x1428] sm:$0xff]
    %v993 = vld [vmem:[#allocation2 + $0x1430] sm:$0xff]
    %v994 = vld [vmem:[#allocation2 + $0x1438] sm:$0xff]
    %v995 = vld [vmem:[#allocation2 + $0x1440] sm:$0xff]
    %v996 = vld [vmem:[#allocation2 + $0x1448] sm:$0xff]
    %v997 = vld [vmem:[#allocation2 + $0x1450] sm:$0xff]
    %v998 = vld [vmem:[#allocation2 + $0x1458] sm:$0xff]
    %v999 = vld [vmem:[#allocation2 + $0x1460] sm:$0xff]
    %v1000 = vld [vmem:[#allocation2 + $0x1468] sm:$0xff]
    %v1001 = vld [vmem:[#allocation2 + $0x1470] sm:$0xff]
    %v1002 = vld [vmem:[#allocation2 + $0x1478] sm:$0xff]
    %v1003 = vld [vmem:[#allocation2 + $0x1480] sm:$0xff]
    %v1004 = vld [vmem:[#allocation2 + $0x1488] sm:$0xff]
    %v1005 = vld [vmem:[#allocation2 + $0x1490] sm:$0xff]
    %v1006 = vld [vmem:[#allocation2 + $0x1498] sm:$0xff]
    %v1007 = vld [vmem:[#allocation2 + $0x14a0] sm:$0xff]
    %v1008 = vld [vmem:[#allocation2 + $0x14a8] sm:$0xff]
    %v1009 = vld [vmem:[#allocation2 + $0x14b0] sm:$0xff]
    %v1010 = vld [vmem:[#allocation2 + $0x14b8] sm:$0xff]
    %v1011 = vld [vmem:[#allocation2 + $0x14c0] sm:$0xff]
    %v1012 = vld [vmem:[#allocation2 + $0x14c8] sm:$0xff]
    %v1013 = vld [vmem:[#allocation2 + $0x14d0] sm:$0xff]
    %v1014 = vld [vmem:[#allocation2 + $0x14d8] sm:$0xff]
    %v1015 = vld [vmem:[#allocation2 + $0x14e0] sm:$0xff]
    %v1016 = vld [vmem:[#allocation2 + $0x14e8] sm:$0xff]
    %v1017 = vld [vmem:[#allocation2 + $0x14f0] sm:$0xff]
    %v1018 = vld [vmem:[#allocation2 + $0x14f8] sm:$0xff]
    %v1019 = vld [vmem:[#allocation2 + $0x1500] sm:$0xff]
    %v1020 = vld [vmem:[#allocation2 + $0x1508] sm:$0xff]
    %v1021 = vld [vmem:[#allocation2 + $0x1510] sm:$0xff]
    %v1022 = vld [vmem:[#allocation2 + $0x1518] sm:$0xff]
    %v1023 = vld [vmem:[#allocation2 + $0x1520] sm:$0xff]
    %v1024 = vld [vmem:[#allocation2 + $0x1528] sm:$0xff]
    %v1025 = vld [vmem:[#allocation2 + $0x1530] sm:$0xff]
    %v1026 = vld [vmem:[#allocation2 + $0x1538] sm:$0xff]
    %v1027 = vld [vmem:[#allocation2 + $0x1540] sm:$0xff]
    %v1028 = vld [vmem:[#allocation2 + $0x1548] sm:$0xff]
    %v1029 = vld [vmem:[#allocation2 + $0x1550] sm:$0xff]
    %v1030 = vld [vmem:[#allocation2 + $0x1558] sm:$0xff]
    %v1031 = vld [vmem:[#allocation2 + $0x1560] sm:$0xff]
    %v1032 = vld [vmem:[#allocation2 + $0x1568] sm:$0xff]
    %v1033 = vld [vmem:[#allocation2 + $0x1570] sm:$0xff]
    %v1034 = vld [vmem:[#allocation2 + $0x1578] sm:$0xff]
    %v1035 = vld [vmem:[#allocation2 + $0x1580] sm:$0xff]
    %v1036 = vld [vmem:[#allocation2 + $0x1588] sm:$0xff]
    %v1037 = vld [vmem:[#allocation2 + $0x1590] sm:$0xff]
    %v1038 = vld [vmem:[#allocation2 + $0x1598] sm:$0xff]
    %v1039 = vld [vmem:[#allocation2 + $0x15a0] sm:$0xff]
    %v1040 = vld [vmem:[#allocation2 + $0x15a8] sm:$0xff]
    %v1041 = vld [vmem:[#allocation2 + $0x15b0] sm:$0xff]
    %v1042 = vld [vmem:[#allocation2 + $0x15b8] sm:$0xff]
    %v1043 = vld [vmem:[#allocation2 + $0x15c0] sm:$0xff]
    %v1044 = vld [vmem:[#allocation2 + $0x15c8] sm:$0xff]
    %v1045 = vld [vmem:[#allocation2 + $0x15d0] sm:$0xff]
    %v1046 = vld [vmem:[#allocation2 + $0x15d8] sm:$0xff]
    %v1047 = vld [vmem:[#allocation2 + $0x15e0] sm:$0xff]
    %v1048 = vld [vmem:[#allocation2 + $0x15e8] sm:$0xff]
    %v1049 = vld [vmem:[#allocation2 + $0x15f0] sm:$0xff]
    %v1050 = vld [vmem:[#allocation2 + $0x15f8] sm:$0xff]
    %v1051 = vld [vmem:[#allocation2 + $0x1600] sm:$0xff]
    %v1052 = vld [vmem:[#allocation2 + $0x1608] sm:$0xff]
    %v1053 = vld [vmem:[#allocation2 + $0x1610] sm:$0xff]
    %v1054 = vld [vmem:[#allocation2 + $0x1618] sm:$0xff]
    %v1055 = vld [vmem:[#allocation2 + $0x1620] sm:$0xff]
    %v1056 = vld [vmem:[#allocation2 + $0x1628] sm:$0xff]
    %v1057 = vld [vmem:[#allocation2 + $0x1630] sm:$0xff]
    %v1058 = vld [vmem:[#allocation2 + $0x1638] sm:$0xff]
    %v1059 = vld [vmem:[#allocation2 + $0x1640] sm:$0xff]
    %v1060 = vld [vmem:[#allocation2 + $0x1648] sm:$0xff]
    %v1061 = vld [vmem:[#allocation2 + $0x1650] sm:$0xff]
    %v1062 = vld [vmem:[#allocation2 + $0x1658] sm:$0xff]
    %v1063 = vld [vmem:[#allocation2 + $0x1660] sm:$0xff]
    %v1064 = vld [vmem:[#allocation2 + $0x1668] sm:$0xff]
    %v1065 = vld [vmem:[#allocation2 + $0x1670] sm:$0xff]
    %v1066 = vld [vmem:[#allocation2 + $0x1678] sm:$0xff]
    %v1067 = vld [vmem:[#allocation2 + $0x1680] sm:$0xff]
    %v1068 = vld [vmem:[#allocation2 + $0x1688] sm:$0xff]
    %v1069 = vld [vmem:[#allocation2 + $0x1690] sm:$0xff]
    %v1070 = vld [vmem:[#allocation2 + $0x1698] sm:$0xff]
    %v1071 = vld [vmem:[#allocation2 + $0x16a0] sm:$0xff]
    %v1072 = vld [vmem:[#allocation2 + $0x16a8] sm:$0xff]
    %v1073 = vld [vmem:[#allocation2 + $0x16b0] sm:$0xff]
    %v1074 = vld [vmem:[#allocation2 + $0x16b8] sm:$0xff]
    %v1075 = vld [vmem:[#allocation2 + $0x16c0] sm:$0xff]
    %v1076 = vld [vmem:[#allocation2 + $0x16c8] sm:$0xff]
    %v1077 = vld [vmem:[#allocation2 + $0x16d0] sm:$0xff]
    %v1078 = vld [vmem:[#allocation2 + $0x16d8] sm:$0xff]
    %v1079 = vld [vmem:[#allocation2 + $0x16e0] sm:$0xff]
    %v1080 = vld [vmem:[#allocation2 + $0x16e8] sm:$0xff]
    %v1081 = vld [vmem:[#allocation2 + $0x16f0] sm:$0xff]
    %v1082 = vld [vmem:[#allocation2 + $0x16f8] sm:$0xff]
    %v1083 = vld [vmem:[#allocation2 + $0x1700] sm:$0xff]
    %v1084 = vld [vmem:[#allocation2 + $0x1708] sm:$0xff]
    %v1085 = vld [vmem:[#allocation2 + $0x1710] sm:$0xff]
    %v1086 = vld [vmem:[#allocation2 + $0x1718] sm:$0xff]
    %v1087 = vld [vmem:[#allocation2 + $0x1720] sm:$0xff]
    %v1088 = vld [vmem:[#allocation2 + $0x1728] sm:$0xff]
    %v1089 = vld [vmem:[#allocation2 + $0x1730] sm:$0xff]
    %v1090 = vld [vmem:[#allocation2 + $0x1738] sm:$0xff]
    %v1091 = vld [vmem:[#allocation2 + $0x1740] sm:$0xff]
    %v1092 = vld [vmem:[#allocation2 + $0x1748] sm:$0xff]
    %v1093 = vld [vmem:[#allocation2 + $0x1750] sm:$0xff]
    %v1094 = vld [vmem:[#allocation2 + $0x1758] sm:$0xff]
    %v1095 = vld [vmem:[#allocation2 + $0x1760] sm:$0xff]
    %v1096 = vld [vmem:[#allocation2 + $0x1768] sm:$0xff]
    %v1097 = vld [vmem:[#allocation2 + $0x1770] sm:$0xff]
    %v1098 = vld [vmem:[#allocation2 + $0x1778] sm:$0xff]
    %v1099 = vld [vmem:[#allocation2 + $0x1780] sm:$0xff]
    %v1100 = vld [vmem:[#allocation2 + $0x1788] sm:$0xff]
    %v1101 = vld [vmem:[#allocation2 + $0x1790] sm:$0xff]
    %v1102 = vld [vmem:[#allocation2 + $0x1798] sm:$0xff]
    %v1103 = vld [vmem:[#allocation2 + $0x17a0] sm:$0xff]
    %v1104 = vld [vmem:[#allocation2 + $0x17a8] sm:$0xff]
    %v1105 = vld [vmem:[#allocation2 + $0x17b0] sm:$0xff]
    %v1106 = vld [vmem:[#allocation2 + $0x17b8] sm:$0xff]
    %v1107 = vld [vmem:[#allocation2 + $0x17c0] sm:$0xff]
    %v1108 = vld [vmem:[#allocation2 + $0x17c8] sm:$0xff]
    %v1109 = vld [vmem:[#allocation2 + $0x17d0] sm:$0xff]
    %v1110 = vld [vmem:[#allocation2 + $0x17d8] sm:$0xff]
    %v1111 = vld [vmem:[#allocation2 + $0x17e0] sm:$0xff]
    %v1112 = vld [vmem:[#allocation2 + $0x17e8] sm:$0xff]
    %v1113 = vld [vmem:[#allocation2 + $0x17f0] sm:$0xff]
    %v1114 = vld [vmem:[#allocation2 + $0x17f8] sm:$0xff]
    %v1139 = vunpack.c.l.b16 %v323
    %v1140 = vunpack.c.h.b16 %v323
    %v1141 = vunpack.c.l.b16 %v324
    %v1142 = vunpack.c.h.b16 %v324
    %v1143 = vunpack.c.l.b16 %v325
    %v1144 = vunpack.c.h.b16 %v325
    %v1145 = vunpack.c.l.b16 %v326
    %v1146 = vunpack.c.h.b16 %v326
    %v1147 = vunpack.c.l.b16 %v327
    %v1148 = vunpack.c.h.b16 %v327
    %v1149 = vunpack.c.l.b16 %v328
    %v1150 = vunpack.c.h.b16 %v328
    %v1151 = vunpack.c.l.b16 %v329
    %v1152 = vunpack.c.h.b16 %v329
    %v1153 = vunpack.c.l.b16 %v330
    %v1154 = vunpack.c.h.b16 %v330
    %v1155 = vunpack.c.l.b16 %v331
    %v1156 = vunpack.c.h.b16 %v331
    %v1157 = vunpack.c.l.b16 %v332
    %v1158 = vunpack.c.h.b16 %v332
    %v1159 = vunpack.c.l.b16 %v333
    %v1160 = vunpack.c.h.b16 %v333
    %v1161 = vunpack.c.l.b16 %v334
    %v1162 = vunpack.c.h.b16 %v334
    %v1163 = vunpack.c.l.b16 %v335
    %v1164 = vunpack.c.h.b16 %v335
    %v1165 = vunpack.c.l.b16 %v336
    %v1166 = vunpack.c.h.b16 %v336
    %v1167 = vunpack.c.l.b16 %v337
    %v1168 = vunpack.c.h.b16 %v337
    %v1169 = vunpack.c.l.b16 %v338
    %v1170 = vunpack.c.h.b16 %v338
    %v1171 = vunpack.c.l.b16 %v339
    %v1172 = vunpack.c.h.b16 %v339
    %v1173 = vunpack.c.l.b16 %v340
    %v1174 = vunpack.c.h.b16 %v340
    %v1175 = vunpack.c.l.b16 %v341
    %v1176 = vunpack.c.h.b16 %v341
    %v1177 = vunpack.c.l.b16 %v342
    %v1178 = vunpack.c.h.b16 %v342
    %v1179 = vunpack.c.l.b16 %v343
    %v1180 = vunpack.c.h.b16 %v343
    %v1181 = vunpack.c.l.b16 %v344
    %v1182 = vunpack.c.h.b16 %v344
    %v1183 = vunpack.c.l.b16 %v345
    %v1184 = vunpack.c.h.b16 %v345
    %v1185 = vunpack.c.l.b16 %v346
    %v1186 = vunpack.c.h.b16 %v346
    %v1187 = vpack.c.b16 %v1139, %v1139
    %v1188 = vpack.c.b16 %v1140, %v1140
    %v1189 = vpack.c.b16 %v1141, %v1141
    %v1190 = vpack.c.b16 %v1142, %v1142
    %v1191 = vpack.c.b16 %v1143, %v1143
    %v1192 = vpack.c.b16 %v1144, %v1144
    %v1193 = vpack.c.b16 %v1145, %v1145
    %v1194 = vpack.c.b16 %v1146, %v1146
    %v1195 = vpack.c.b16 %v1147, %v1147
    %v1196 = vpack.c.b16 %v1148, %v1148
    %v1197 = vpack.c.b16 %v1149, %v1149
    %v1198 = vpack.c.b16 %v1150, %v1150
    %v1199 = vpack.c.b16 %v1151, %v1151
    %v1200 = vpack.c.b16 %v1152, %v1152
    %v1201 = vpack.c.b16 %v1153, %v1153
    %v1202 = vpack.c.b16 %v1154, %v1154
    %v1203 = vpack.c.b16 %v1155, %v1155
    %v1204 = vpack.c.b16 %v1156, %v1156
    %v1205 = vpack.c.b16 %v1157, %v1157
    %v1206 = vpack.c.b16 %v1158, %v1158
    %v1207 = vpack.c.b16 %v1159, %v1159
    %v1208 = vpack.c.b16 %v1160, %v1160
    %v1209 = vpack.c.b16 %v1161, %v1161
    %v1210 = vpack.c.b16 %v1162, %v1162
    %v1211 = vpack.c.b16 %v1163, %v1163
    %v1212 = vpack.c.b16 %v1164, %v1164
    %v1213 = vpack.c.b16 %v1165, %v1165
    %v1214 = vpack.c.b16 %v1166, %v1166
    %v1215 = vpack.c.b16 %v1167, %v1167
    %v1216 = vpack.c.b16 %v1168, %v1168
    %v1217 = vpack.c.b16 %v1169, %v1169
    %v1218 = vpack.c.b16 %v1170, %v1170
    %v1219 = vpack.c.b16 %v1171, %v1171
    %v1220 = vpack.c.b16 %v1172, %v1172
    %v1221 = vpack.c.b16 %v1173, %v1173
    %v1222 = vpack.c.b16 %v1174, %v1174
    %v1223 = vpack.c.b16 %v1175, %v1175
    %v1224 = vpack.c.b16 %v1176, %v1176
    %v1225 = vpack.c.b16 %v1177, %v1177
    %v1226 = vpack.c.b16 %v1178, %v1178
    %v1227 = vpack.c.b16 %v1179, %v1179
    %v1228 = vpack.c.b16 %v1180, %v1180
    %v1229 = vpack.c.b16 %v1181, %v1181
    %v1230 = vpack.c.b16 %v1182, %v1182
    %v1231 = vpack.c.b16 %v1183, %v1183
    %v1232 = vpack.c.b16 %v1184, %v1184
    %v1233 = vpack.c.b16 %v1185, %v1185
    %v1234 = vpack.c.b16 %v1186, %v1186
    %v2051 = vunpack.c.l.b16 %v347
    %v2052 = vunpack.c.h.b16 %v347
    %v2053 = vunpack.c.l.b16 %v348
    %v2054 = vunpack.c.h.b16 %v348
    %v2055 = vunpack.c.l.b16 %v349
    %v2056 = vunpack.c.h.b16 %v349
    %v2057 = vunpack.c.l.b16 %v350
    %v2058 = vunpack.c.h.b16 %v350
    %v2059 = vunpack.c.l.b16 %v351
    %v2060 = vunpack.c.h.b16 %v351
    %v2061 = vunpack.c.l.b16 %v352
    %v2062 = vunpack.c.h.b16 %v352
    %v2063 = vunpack.c.l.b16 %v353
    %v2064 = vunpack.c.h.b16 %v353
    %v2065 = vunpack.c.l.b16 %v354
    %v2066 = vunpack.c.h.b16 %v354
    %v2067 = vunpack.c.l.b16 %v355
    %v2068 = vunpack.c.h.b16 %v355
    %v2069 = vunpack.c.l.b16 %v356
    %v2070 = vunpack.c.h.b16 %v356
    %v2071 = vunpack.c.l.b16 %v357
    %v2072 = vunpack.c.h.b16 %v357
    %v2073 = vunpack.c.l.b16 %v358
    %v2074 = vunpack.c.h.b16 %v358
    %v2075 = vunpack.c.l.b16 %v359
    %v2076 = vunpack.c.h.b16 %v359
    %v2077 = vunpack.c.l.b16 %v360
    %v2078 = vunpack.c.h.b16 %v360
    %v2079 = vunpack.c.l.b16 %v361
    %v2080 = vunpack.c.h.b16 %v361
    %v2081 = vunpack.c.l.b16 %v362
    %v2082 = vunpack.c.h.b16 %v362
    %v2083 = vunpack.c.l.b16 %v363
    %v2084 = vunpack.c.h.b16 %v363
    %v2085 = vunpack.c.l.b16 %v364
    %v2086 = vunpack.c.h.b16 %v364
    %v2087 = vunpack.c.l.b16 %v365
    %v2088 = vunpack.c.h.b16 %v365
    %v2089 = vunpack.c.l.b16 %v366
    %v2090 = vunpack.c.h.b16 %v366
    %v2091 = vunpack.c.l.b16 %v367
    %v2092 = vunpack.c.h.b16 %v367
    %v2093 = vunpack.c.l.b16 %v368
    %v2094 = vunpack.c.h.b16 %v368
    %v2095 = vunpack.c.l.b16 %v369
    %v2096 = vunpack.c.h.b16 %v369
    %v2097 = vunpack.c.l.b16 %v370
    %v2098 = vunpack.c.h.b16 %v370
    %v2099 = vunpack.c.l.b16 %v371
    %v2100 = vunpack.c.h.b16 %v371
    %v2101 = vunpack.c.l.b16 %v372
    %v2102 = vunpack.c.h.b16 %v372
    %v2103 = vunpack.c.l.b16 %v373
    %v2104 = vunpack.c.h.b16 %v373
    %v2105 = vunpack.c.l.b16 %v374
    %v2106 = vunpack.c.h.b16 %v374
    %v2107 = vunpack.c.l.b16 %v375
    %v2108 = vunpack.c.h.b16 %v375
    %v2109 = vunpack.c.l.b16 %v376
    %v2110 = vunpack.c.h.b16 %v376
    %v2111 = vunpack.c.l.b16 %v377
    %v2112 = vunpack.c.h.b16 %v377
    %v2113 = vunpack.c.l.b16 %v378
    %v2114 = vunpack.c.h.b16 %v378
    %v2115 = vunpack.c.l.b16 %v379
    %v2116 = vunpack.c.h.b16 %v379
    %v2117 = vunpack.c.l.b16 %v380
    %v2118 = vunpack.c.h.b16 %v380
    %v2119 = vunpack.c.l.b16 %v381
    %v2120 = vunpack.c.h.b16 %v381
    %v2121 = vunpack.c.l.b16 %v382
    %v2122 = vunpack.c.h.b16 %v382
    %v2123 = vunpack.c.l.b16 %v383
    %v2124 = vunpack.c.h.b16 %v383
    %v2125 = vunpack.c.l.b16 %v384
    %v2126 = vunpack.c.h.b16 %v384
    %v2127 = vunpack.c.l.b16 %v385
    %v2128 = vunpack.c.h.b16 %v385
    %v2129 = vunpack.c.l.b16 %v386
    %v2130 = vunpack.c.h.b16 %v386
    %v2131 = vunpack.c.l.b16 %v387
    %v2132 = vunpack.c.h.b16 %v387
    %v2133 = vunpack.c.l.b16 %v388
    %v2134 = vunpack.c.h.b16 %v388
    %v2135 = vunpack.c.l.b16 %v389
    %v2136 = vunpack.c.h.b16 %v389
    %v2137 = vunpack.c.l.b16 %v390
    %v2138 = vunpack.c.h.b16 %v390
    %v2139 = vunpack.c.l.b16 %v391
    %v2140 = vunpack.c.h.b16 %v391
    %v2141 = vunpack.c.l.b16 %v392
    %v2142 = vunpack.c.h.b16 %v392
    %v2143 = vunpack.c.l.b16 %v393
    %v2144 = vunpack.c.h.b16 %v393
    %v2145 = vunpack.c.l.b16 %v394
    %v2146 = vunpack.c.h.b16 %v394
    %v2147 = vunpack.c.l.b16 %v395
    %v2148 = vunpack.c.h.b16 %v395
    %v2149 = vunpack.c.l.b16 %v396
    %v2150 = vunpack.c.h.b16 %v396
    %v2151 = vunpack.c.l.b16 %v397
    %v2152 = vunpack.c.h.b16 %v397
    %v2153 = vunpack.c.l.b16 %v398
    %v2154 = vunpack.c.h.b16 %v398
    %v2155 = vunpack.c.l.b16 %v399
    %v2156 = vunpack.c.h.b16 %v399
    %v2157 = vunpack.c.l.b16 %v400
    %v2158 = vunpack.c.h.b16 %v400
    %v2159 = vunpack.c.l.b16 %v401
    %v2160 = vunpack.c.h.b16 %v401
    %v2161 = vunpack.c.l.b16 %v402
    %v2162 = vunpack.c.h.b16 %v402
    %v2163 = vunpack.c.l.b16 %v403
    %v2164 = vunpack.c.h.b16 %v403
    %v2165 = vunpack.c.l.b16 %v404
    %v2166 = vunpack.c.h.b16 %v404
    %v2167 = vunpack.c.l.b16 %v405
    %v2168 = vunpack.c.h.b16 %v405
    %v2169 = vunpack.c.l.b16 %v406
    %v2170 = vunpack.c.h.b16 %v406
    %v2171 = vunpack.c.l.b16 %v407
    %v2172 = vunpack.c.h.b16 %v407
    %v2173 = vunpack.c.l.b16 %v408
    %v2174 = vunpack.c.h.b16 %v408
    %v2175 = vunpack.c.l.b16 %v409
    %v2176 = vunpack.c.h.b16 %v409
    %v2177 = vunpack.c.l.b16 %v410
    %v2178 = vunpack.c.h.b16 %v410
    %v2179 = vunpack.c.l.b16 %v411
    %v2180 = vunpack.c.h.b16 %v411
    %v2181 = vunpack.c.l.b16 %v412
    %v2182 = vunpack.c.h.b16 %v412
    %v2183 = vunpack.c.l.b16 %v413
    %v2184 = vunpack.c.h.b16 %v413
    %v2185 = vunpack.c.l.b16 %v414
    %v2186 = vunpack.c.h.b16 %v414
    %v2187 = vunpack.c.l.b16 %v415
    %v2188 = vunpack.c.h.b16 %v415
    %v2189 = vunpack.c.l.b16 %v416
    %v2190 = vunpack.c.h.b16 %v416
    %v2191 = vunpack.c.l.b16 %v417
    %v2192 = vunpack.c.h.b16 %v417
    %v2193 = vunpack.c.l.b16 %v418
    %v2194 = vunpack.c.h.b16 %v418
    %v2195 = vunpack.c.l.b16 %v419
    %v2196 = vunpack.c.h.b16 %v419
    %v2197 = vunpack.c.l.b16 %v420
    %v2198 = vunpack.c.h.b16 %v420
    %v2199 = vunpack.c.l.b16 %v421
    %v2200 = vunpack.c.h.b16 %v421
    %v2201 = vunpack.c.l.b16 %v422
    %v2202 = vunpack.c.h.b16 %v422
    %v2203 = vunpack.c.l.b16 %v423
    %v2204 = vunpack.c.h.b16 %v423
    %v2205 = vunpack.c.l.b16 %v424
    %v2206 = vunpack.c.h.b16 %v424
    %v2207 = vunpack.c.l.b16 %v425
    %v2208 = vunpack.c.h.b16 %v425
    %v2209 = vunpack.c.l.b16 %v426
    %v2210 = vunpack.c.h.b16 %v426
    %v2211 = vunpack.c.l.b16 %v427
    %v2212 = vunpack.c.h.b16 %v427
    %v2213 = vunpack.c.l.b16 %v428
    %v2214 = vunpack.c.h.b16 %v428
    %v2215 = vunpack.c.l.b16 %v429
    %v2216 = vunpack.c.h.b16 %v429
    %v2217 = vunpack.c.l.b16 %v430
    %v2218 = vunpack.c.h.b16 %v430
    %v2219 = vunpack.c.l.b16 %v431
    %v2220 = vunpack.c.h.b16 %v431
    %v2221 = vunpack.c.l.b16 %v432
    %v2222 = vunpack.c.h.b16 %v432
    %v2223 = vunpack.c.l.b16 %v433
    %v2224 = vunpack.c.h.b16 %v433
    %v2225 = vunpack.c.l.b16 %v434
    %v2226 = vunpack.c.h.b16 %v434
    %v2227 = vunpack.c.l.b16 %v435
    %v2228 = vunpack.c.h.b16 %v435
    %v2229 = vunpack.c.l.b16 %v436
    %v2230 = vunpack.c.h.b16 %v436
    %v2231 = vunpack.c.l.b16 %v437
    %v2232 = vunpack.c.h.b16 %v437
    %v2233 = vunpack.c.l.b16 %v438
    %v2234 = vunpack.c.h.b16 %v438
    %v2235 = vunpack.c.l.b16 %v439
    %v2236 = vunpack.c.h.b16 %v439
    %v2237 = vunpack.c.l.b16 %v440
    %v2238 = vunpack.c.h.b16 %v440
    %v2239 = vunpack.c.l.b16 %v441
    %v2240 = vunpack.c.h.b16 %v441
    %v2241 = vunpack.c.l.b16 %v442
    %v2242 = vunpack.c.h.b16 %v442
    %v2243 = vunpack.c.l.b16 %v443
    %v2244 = vunpack.c.h.b16 %v443
    %v2245 = vunpack.c.l.b16 %v444
    %v2246 = vunpack.c.h.b16 %v444
    %v2247 = vunpack.c.l.b16 %v445
    %v2248 = vunpack.c.h.b16 %v445
    %v2249 = vunpack.c.l.b16 %v446
    %v2250 = vunpack.c.h.b16 %v446
    %v2251 = vunpack.c.l.b16 %v447
    %v2252 = vunpack.c.h.b16 %v447
    %v2253 = vunpack.c.l.b16 %v448
    %v2254 = vunpack.c.h.b16 %v448
    %v2255 = vunpack.c.l.b16 %v449
    %v2256 = vunpack.c.h.b16 %v449
    %v2257 = vunpack.c.l.b16 %v450
    %v2258 = vunpack.c.h.b16 %v450
    %v2259 = vunpack.c.l.b16 %v451
    %v2260 = vunpack.c.h.b16 %v451
    %v2261 = vunpack.c.l.b16 %v452
    %v2262 = vunpack.c.h.b16 %v452
    %v2263 = vunpack.c.l.b16 %v453
    %v2264 = vunpack.c.h.b16 %v453
    %v2265 = vunpack.c.l.b16 %v454
    %v2266 = vunpack.c.h.b16 %v454
    %v2267 = vunpack.c.l.b16 %v455
    %v2268 = vunpack.c.h.b16 %v455
    %v2269 = vunpack.c.l.b16 %v456
    %v2270 = vunpack.c.h.b16 %v456
    %v2271 = vunpack.c.l.b16 %v457
    %v2272 = vunpack.c.h.b16 %v457
    %v2273 = vunpack.c.l.b16 %v458
    %v2274 = vunpack.c.h.b16 %v458
    %v2275 = vunpack.c.l.b16 %v459
    %v2276 = vunpack.c.h.b16 %v459
    %v2277 = vunpack.c.l.b16 %v460
    %v2278 = vunpack.c.h.b16 %v460
    %v2279 = vunpack.c.l.b16 %v461
    %v2280 = vunpack.c.h.b16 %v461
    %v2281 = vunpack.c.l.b16 %v462
    %v2282 = vunpack.c.h.b16 %v462
    %v2283 = vunpack.c.l.b16 %v463
    %v2284 = vunpack.c.h.b16 %v463
    %v2285 = vunpack.c.l.b16 %v464
    %v2286 = vunpack.c.h.b16 %v464
    %v2287 = vunpack.c.l.b16 %v465
    %v2288 = vunpack.c.h.b16 %v465
    %v2289 = vunpack.c.l.b16 %v466
    %v2290 = vunpack.c.h.b16 %v466
    %v2291 = vunpack.c.l.b16 %v467
    %v2292 = vunpack.c.h.b16 %v467
    %v2293 = vunpack.c.l.b16 %v468
    %v2294 = vunpack.c.h.b16 %v468
    %v2295 = vunpack.c.l.b16 %v469
    %v2296 = vunpack.c.h.b16 %v469
    %v2297 = vunpack.c.l.b16 %v470
    %v2298 = vunpack.c.h.b16 %v470
    %v2299 = vunpack.c.l.b16 %v471
    %v2300 = vunpack.c.h.b16 %v471
    %v2301 = vunpack.c.l.b16 %v472
    %v2302 = vunpack.c.h.b16 %v472
    %v2303 = vunpack.c.l.b16 %v473
    %v2304 = vunpack.c.h.b16 %v473
    %v2305 = vunpack.c.l.b16 %v474
    %v2306 = vunpack.c.h.b16 %v474
    %v2307 = vunpack.c.l.b16 %v475
    %v2308 = vunpack.c.h.b16 %v475
    %v2309 = vunpack.c.l.b16 %v476
    %v2310 = vunpack.c.h.b16 %v476
    %v2311 = vunpack.c.l.b16 %v477
    %v2312 = vunpack.c.h.b16 %v477
    %v2313 = vunpack.c.l.b16 %v478
    %v2314 = vunpack.c.h.b16 %v478
    %v2315 = vunpack.c.l.b16 %v479
    %v2316 = vunpack.c.h.b16 %v479
    %v2317 = vunpack.c.l.b16 %v480
    %v2318 = vunpack.c.h.b16 %v480
    %v2319 = vunpack.c.l.b16 %v481
    %v2320 = vunpack.c.h.b16 %v481
    %v2321 = vunpack.c.l.b16 %v482
    %v2322 = vunpack.c.h.b16 %v482
    %v2323 = vunpack.c.l.b16 %v483
    %v2324 = vunpack.c.h.b16 %v483
    %v2325 = vunpack.c.l.b16 %v484
    %v2326 = vunpack.c.h.b16 %v484
    %v2327 = vunpack.c.l.b16 %v485
    %v2328 = vunpack.c.h.b16 %v485
    %v2329 = vunpack.c.l.b16 %v486
    %v2330 = vunpack.c.h.b16 %v486
    %v2331 = vunpack.c.l.b16 %v487
    %v2332 = vunpack.c.h.b16 %v487
    %v2333 = vunpack.c.l.b16 %v488
    %v2334 = vunpack.c.h.b16 %v488
    %v2335 = vunpack.c.l.b16 %v489
    %v2336 = vunpack.c.h.b16 %v489
    %v2337 = vunpack.c.l.b16 %v490
    %v2338 = vunpack.c.h.b16 %v490
    %v2339 = vunpack.c.l.b16 %v491
    %v2340 = vunpack.c.h.b16 %v491
    %v2341 = vunpack.c.l.b16 %v492
    %v2342 = vunpack.c.h.b16 %v492
    %v2343 = vunpack.c.l.b16 %v493
    %v2344 = vunpack.c.h.b16 %v493
    %v2345 = vunpack.c.l.b16 %v494
    %v2346 = vunpack.c.h.b16 %v494
    %v2347 = vunpack.c.l.b16 %v495
    %v2348 = vunpack.c.h.b16 %v495
    %v2349 = vunpack.c.l.b16 %v496
    %v2350 = vunpack.c.h.b16 %v496
    %v2351 = vunpack.c.l.b16 %v497
    %v2352 = vunpack.c.h.b16 %v497
    %v2353 = vunpack.c.l.b16 %v498
    %v2354 = vunpack.c.h.b16 %v498
    %v2355 = vunpack.c.l.b16 %v499
    %v2356 = vunpack.c.h.b16 %v499
    %v2357 = vunpack.c.l.b16 %v500
    %v2358 = vunpack.c.h.b16 %v500
    %v2359 = vunpack.c.l.b16 %v501
    %v2360 = vunpack.c.h.b16 %v501
    %v2361 = vunpack.c.l.b16 %v502
    %v2362 = vunpack.c.h.b16 %v502
    %v2363 = vunpack.c.l.b16 %v503
    %v2364 = vunpack.c.h.b16 %v503
    %v2365 = vunpack.c.l.b16 %v504
    %v2366 = vunpack.c.h.b16 %v504
    %v2367 = vunpack.c.l.b16 %v505
    %v2368 = vunpack.c.h.b16 %v505
    %v2369 = vunpack.c.l.b16 %v506
    %v2370 = vunpack.c.h.b16 %v506
    %v2371 = vunpack.c.l.b16 %v507
    %v2372 = vunpack.c.h.b16 %v507
    %v2373 = vunpack.c.l.b16 %v508
    %v2374 = vunpack.c.h.b16 %v508
    %v2375 = vunpack.c.l.b16 %v509
    %v2376 = vunpack.c.h.b16 %v509
    %v2377 = vunpack.c.l.b16 %v510
    %v2378 = vunpack.c.h.b16 %v510
    %v2379 = vunpack.c.l.b16 %v511
    %v2380 = vunpack.c.h.b16 %v511
    %v2381 = vunpack.c.l.b16 %v512
    %v2382 = vunpack.c.h.b16 %v512
    %v2383 = vunpack.c.l.b16 %v513
    %v2384 = vunpack.c.h.b16 %v513
    %v2385 = vunpack.c.l.b16 %v514
    %v2386 = vunpack.c.h.b16 %v514
    %v2387 = vunpack.c.l.b16 %v515
    %v2388 = vunpack.c.h.b16 %v515
    %v2389 = vunpack.c.l.b16 %v516
    %v2390 = vunpack.c.h.b16 %v516
    %v2391 = vunpack.c.l.b16 %v517
    %v2392 = vunpack.c.h.b16 %v517
    %v2393 = vunpack.c.l.b16 %v518
    %v2394 = vunpack.c.h.b16 %v518
    %v2395 = vunpack.c.l.b16 %v519
    %v2396 = vunpack.c.h.b16 %v519
    %v2397 = vunpack.c.l.b16 %v520
    %v2398 = vunpack.c.h.b16 %v520
    %v2399 = vunpack.c.l.b16 %v521
    %v2400 = vunpack.c.h.b16 %v521
    %v2401 = vunpack.c.l.b16 %v522
    %v2402 = vunpack.c.h.b16 %v522
    %v2403 = vunpack.c.l.b16 %v523
    %v2404 = vunpack.c.h.b16 %v523
    %v2405 = vunpack.c.l.b16 %v524
    %v2406 = vunpack.c.h.b16 %v524
    %v2407 = vunpack.c.l.b16 %v525
    %v2408 = vunpack.c.h.b16 %v525
    %v2409 = vunpack.c.l.b16 %v526
    %v2410 = vunpack.c.h.b16 %v526
    %v2411 = vunpack.c.l.b16 %v527
    %v2412 = vunpack.c.h.b16 %v527
    %v2413 = vunpack.c.l.b16 %v528
    %v2414 = vunpack.c.h.b16 %v528
    %v2415 = vunpack.c.l.b16 %v529
    %v2416 = vunpack.c.h.b16 %v529
    %v2417 = vunpack.c.l.b16 %v530
    %v2418 = vunpack.c.h.b16 %v530
    %v2419 = vunpack.c.l.b16 %v531
    %v2420 = vunpack.c.h.b16 %v531
    %v2421 = vunpack.c.l.b16 %v532
    %v2422 = vunpack.c.h.b16 %v532
    %v2423 = vunpack.c.l.b16 %v533
    %v2424 = vunpack.c.h.b16 %v533
    %v2425 = vunpack.c.l.b16 %v534
    %v2426 = vunpack.c.h.b16 %v534
    %v2427 = vunpack.c.l.b16 %v535
    %v2428 = vunpack.c.h.b16 %v535
    %v2429 = vunpack.c.l.b16 %v536
    %v2430 = vunpack.c.h.b16 %v536
    %v2431 = vunpack.c.l.b16 %v537
    %v2432 = vunpack.c.h.b16 %v537
    %v2433 = vunpack.c.l.b16 %v538
    %v2434 = vunpack.c.h.b16 %v538
    %v2435 = vunpack.c.l.b16 %v539
    %v2436 = vunpack.c.h.b16 %v539
    %v2437 = vunpack.c.l.b16 %v540
    %v2438 = vunpack.c.h.b16 %v540
    %v2439 = vunpack.c.l.b16 %v541
    %v2440 = vunpack.c.h.b16 %v541
    %v2441 = vunpack.c.l.b16 %v542
    %v2442 = vunpack.c.h.b16 %v542
    %v2443 = vunpack.c.l.b16 %v543
    %v2444 = vunpack.c.h.b16 %v543
    %v2445 = vunpack.c.l.b16 %v544
    %v2446 = vunpack.c.h.b16 %v544
    %v2447 = vunpack.c.l.b16 %v545
    %v2448 = vunpack.c.h.b16 %v545
    %v2449 = vunpack.c.l.b16 %v546
    %v2450 = vunpack.c.h.b16 %v546
    %v2451 = vunpack.c.l.b16 %v547
    %v2452 = vunpack.c.h.b16 %v547
    %v2453 = vunpack.c.l.b16 %v548
    %v2454 = vunpack.c.h.b16 %v548
    %v2455 = vunpack.c.l.b16 %v549
    %v2456 = vunpack.c.h.b16 %v549
    %v2457 = vunpack.c.l.b16 %v550
    %v2458 = vunpack.c.h.b16 %v550
    %v2459 = vunpack.c.l.b16 %v551
    %v2460 = vunpack.c.h.b16 %v551
    %v2461 = vunpack.c.l.b16 %v552
    %v2462 = vunpack.c.h.b16 %v552
    %v2463 = vunpack.c.l.b16 %v553
    %v2464 = vunpack.c.h.b16 %v553
    %v2465 = vunpack.c.l.b16 %v554
    %v2466 = vunpack.c.h.b16 %v554
    %v2467 = vunpack.c.l.b16 %v555
    %v2468 = vunpack.c.h.b16 %v555
    %v2469 = vunpack.c.l.b16 %v556
    %v2470 = vunpack.c.h.b16 %v556
    %v2471 = vunpack.c.l.b16 %v557
    %v2472 = vunpack.c.h.b16 %v557
    %v2473 = vunpack.c.l.b16 %v558
    %v2474 = vunpack.c.h.b16 %v558
    %v2475 = vunpack.c.l.b16 %v559
    %v2476 = vunpack.c.h.b16 %v559
    %v2477 = vunpack.c.l.b16 %v560
    %v2478 = vunpack.c.h.b16 %v560
    %v2479 = vunpack.c.l.b16 %v561
    %v2480 = vunpack.c.h.b16 %v561
    %v2481 = vunpack.c.l.b16 %v562
    %v2482 = vunpack.c.h.b16 %v562
    %v2483 = vunpack.c.l.b16 %v563
    %v2484 = vunpack.c.h.b16 %v563
    %v2485 = vunpack.c.l.b16 %v564
    %v2486 = vunpack.c.h.b16 %v564
    %v2487 = vunpack.c.l.b16 %v565
    %v2488 = vunpack.c.h.b16 %v565
    %v2489 = vunpack.c.l.b16 %v566
    %v2490 = vunpack.c.h.b16 %v566
    %v2491 = vunpack.c.l.b16 %v567
    %v2492 = vunpack.c.h.b16 %v567
    %v2493 = vunpack.c.l.b16 %v568
    %v2494 = vunpack.c.h.b16 %v568
    %v2495 = vunpack.c.l.b16 %v569
    %v2496 = vunpack.c.h.b16 %v569
    %v2497 = vunpack.c.l.b16 %v570
    %v2498 = vunpack.c.h.b16 %v570
    %v2499 = vunpack.c.l.b16 %v571
    %v2500 = vunpack.c.h.b16 %v571
    %v2501 = vunpack.c.l.b16 %v572
    %v2502 = vunpack.c.h.b16 %v572
    %v2503 = vunpack.c.l.b16 %v573
    %v2504 = vunpack.c.h.b16 %v573
    %v2505 = vunpack.c.l.b16 %v574
    %v2506 = vunpack.c.h.b16 %v574
    %v2507 = vunpack.c.l.b16 %v575
    %v2508 = vunpack.c.h.b16 %v575
    %v2509 = vunpack.c.l.b16 %v576
    %v2510 = vunpack.c.h.b16 %v576
    %v2511 = vunpack.c.l.b16 %v577
    %v2512 = vunpack.c.h.b16 %v577
    %v2513 = vunpack.c.l.b16 %v578
    %v2514 = vunpack.c.h.b16 %v578
    %v2515 = vunpack.c.l.b16 %v579
    %v2516 = vunpack.c.h.b16 %v579
    %v2517 = vunpack.c.l.b16 %v580
    %v2518 = vunpack.c.h.b16 %v580
    %v2519 = vunpack.c.l.b16 %v581
    %v2520 = vunpack.c.h.b16 %v581
    %v2521 = vunpack.c.l.b16 %v582
    %v2522 = vunpack.c.h.b16 %v582
    %v2523 = vunpack.c.l.b16 %v583
    %v2524 = vunpack.c.h.b16 %v583
    %v2525 = vunpack.c.l.b16 %v584
    %v2526 = vunpack.c.h.b16 %v584
    %v2527 = vunpack.c.l.b16 %v585
    %v2528 = vunpack.c.h.b16 %v585
    %v2529 = vunpack.c.l.b16 %v586
    %v2530 = vunpack.c.h.b16 %v586
    %v2531 = vunpack.c.l.b16 %v587
    %v2532 = vunpack.c.h.b16 %v587
    %v2533 = vunpack.c.l.b16 %v588
    %v2534 = vunpack.c.h.b16 %v588
    %v2535 = vunpack.c.l.b16 %v589
    %v2536 = vunpack.c.h.b16 %v589
    %v2537 = vunpack.c.l.b16 %v590
    %v2538 = vunpack.c.h.b16 %v590
    %v2539 = vunpack.c.l.b16 %v591
    %v2540 = vunpack.c.h.b16 %v591
    %v2541 = vunpack.c.l.b16 %v592
    %v2542 = vunpack.c.h.b16 %v592
    %v2543 = vunpack.c.l.b16 %v593
    %v2544 = vunpack.c.h.b16 %v593
    %v2545 = vunpack.c.l.b16 %v594
    %v2546 = vunpack.c.h.b16 %v594
    %v2547 = vunpack.c.l.b16 %v595
    %v2548 = vunpack.c.h.b16 %v595
    %v2549 = vunpack.c.l.b16 %v596
    %v2550 = vunpack.c.h.b16 %v596
    %v2551 = vunpack.c.l.b16 %v597
    %v2552 = vunpack.c.h.b16 %v597
    %v2553 = vunpack.c.l.b16 %v598
    %v2554 = vunpack.c.h.b16 %v598
    %v2555 = vunpack.c.l.b16 %v599
    %v2556 = vunpack.c.h.b16 %v599
    %v2557 = vunpack.c.l.b16 %v600
    %v2558 = vunpack.c.h.b16 %v600
    %v2559 = vunpack.c.l.b16 %v601
    %v2560 = vunpack.c.h.b16 %v601
    %v2561 = vunpack.c.l.b16 %v602
    %v2562 = vunpack.c.h.b16 %v602
    %v2563 = vunpack.c.l.b16 %v603
    %v2564 = vunpack.c.h.b16 %v603
    %v2565 = vunpack.c.l.b16 %v604
    %v2566 = vunpack.c.h.b16 %v604
    %v2567 = vunpack.c.l.b16 %v605
    %v2568 = vunpack.c.h.b16 %v605
    %v2569 = vunpack.c.l.b16 %v606
    %v2570 = vunpack.c.h.b16 %v606
    %v2571 = vunpack.c.l.b16 %v607
    %v2572 = vunpack.c.h.b16 %v607
    %v2573 = vunpack.c.l.b16 %v608
    %v2574 = vunpack.c.h.b16 %v608
    %v2575 = vunpack.c.l.b16 %v609
    %v2576 = vunpack.c.h.b16 %v609
    %v2577 = vunpack.c.l.b16 %v610
    %v2578 = vunpack.c.h.b16 %v610
    %v2579 = vunpack.c.l.b16 %v611
    %v2580 = vunpack.c.h.b16 %v611
    %v2581 = vunpack.c.l.b16 %v612
    %v2582 = vunpack.c.h.b16 %v612
    %v2583 = vunpack.c.l.b16 %v613
    %v2584 = vunpack.c.h.b16 %v613
    %v2585 = vunpack.c.l.b16 %v614
    %v2586 = vunpack.c.h.b16 %v614
    %v2587 = vunpack.c.l.b16 %v615
    %v2588 = vunpack.c.h.b16 %v615
    %v2589 = vunpack.c.l.b16 %v616
    %v2590 = vunpack.c.h.b16 %v616
    %v2591 = vunpack.c.l.b16 %v617
    %v2592 = vunpack.c.h.b16 %v617
    %v2593 = vunpack.c.l.b16 %v618
    %v2594 = vunpack.c.h.b16 %v618
    %v2595 = vunpack.c.l.b16 %v619
    %v2596 = vunpack.c.h.b16 %v619
    %v2597 = vunpack.c.l.b16 %v620
    %v2598 = vunpack.c.h.b16 %v620
    %v2599 = vunpack.c.l.b16 %v621
    %v2600 = vunpack.c.h.b16 %v621
    %v2601 = vunpack.c.l.b16 %v622
    %v2602 = vunpack.c.h.b16 %v622
    %v2603 = vunpack.c.l.b16 %v623
    %v2604 = vunpack.c.h.b16 %v623
    %v2605 = vunpack.c.l.b16 %v624
    %v2606 = vunpack.c.h.b16 %v624
    %v2607 = vunpack.c.l.b16 %v625
    %v2608 = vunpack.c.h.b16 %v625
    %v2609 = vunpack.c.l.b16 %v626
    %v2610 = vunpack.c.h.b16 %v626
    %v2611 = vunpack.c.l.b16 %v627
    %v2612 = vunpack.c.h.b16 %v627
    %v2613 = vunpack.c.l.b16 %v628
    %v2614 = vunpack.c.h.b16 %v628
    %v2615 = vunpack.c.l.b16 %v629
    %v2616 = vunpack.c.h.b16 %v629
    %v2617 = vunpack.c.l.b16 %v630
    %v2618 = vunpack.c.h.b16 %v630
    %v2619 = vunpack.c.l.b16 %v631
    %v2620 = vunpack.c.h.b16 %v631
    %v2621 = vunpack.c.l.b16 %v632
    %v2622 = vunpack.c.h.b16 %v632
    %v2623 = vunpack.c.l.b16 %v633
    %v2624 = vunpack.c.h.b16 %v633
    %v2625 = vunpack.c.l.b16 %v634
    %v2626 = vunpack.c.h.b16 %v634
    %v2627 = vunpack.c.l.b16 %v635
    %v2628 = vunpack.c.h.b16 %v635
    %v2629 = vunpack.c.l.b16 %v636
    %v2630 = vunpack.c.h.b16 %v636
    %v2631 = vunpack.c.l.b16 %v637
    %v2632 = vunpack.c.h.b16 %v637
    %v2633 = vunpack.c.l.b16 %v638
    %v2634 = vunpack.c.h.b16 %v638
    %v2635 = vunpack.c.l.b16 %v639
    %v2636 = vunpack.c.h.b16 %v639
    %v2637 = vunpack.c.l.b16 %v640
    %v2638 = vunpack.c.h.b16 %v640
    %v2639 = vunpack.c.l.b16 %v641
    %v2640 = vunpack.c.h.b16 %v641
    %v2641 = vunpack.c.l.b16 %v642
    %v2642 = vunpack.c.h.b16 %v642
    %v2643 = vunpack.c.l.b16 %v643
    %v2644 = vunpack.c.h.b16 %v643
    %v2645 = vunpack.c.l.b16 %v644
    %v2646 = vunpack.c.h.b16 %v644
    %v2647 = vunpack.c.l.b16 %v645
    %v2648 = vunpack.c.h.b16 %v645
    %v2649 = vunpack.c.l.b16 %v646
    %v2650 = vunpack.c.h.b16 %v646
    %v2651 = vunpack.c.l.b16 %v647
    %v2652 = vunpack.c.h.b16 %v647
    %v2653 = vunpack.c.l.b16 %v648
    %v2654 = vunpack.c.h.b16 %v648
    %v2655 = vunpack.c.l.b16 %v649
    %v2656 = vunpack.c.h.b16 %v649
    %v2657 = vunpack.c.l.b16 %v650
    %v2658 = vunpack.c.h.b16 %v650
    %v2659 = vunpack.c.l.b16 %v651
    %v2660 = vunpack.c.h.b16 %v651
    %v2661 = vunpack.c.l.b16 %v652
    %v2662 = vunpack.c.h.b16 %v652
    %v2663 = vunpack.c.l.b16 %v653
    %v2664 = vunpack.c.h.b16 %v653
    %v2665 = vunpack.c.l.b16 %v654
    %v2666 = vunpack.c.h.b16 %v654
    %v2667 = vunpack.c.l.b16 %v655
    %v2668 = vunpack.c.h.b16 %v655
    %v2669 = vunpack.c.l.b16 %v656
    %v2670 = vunpack.c.h.b16 %v656
    %v2671 = vunpack.c.l.b16 %v657
    %v2672 = vunpack.c.h.b16 %v657
    %v2673 = vunpack.c.l.b16 %v658
    %v2674 = vunpack.c.h.b16 %v658
    %v2675 = vunpack.c.l.b16 %v659
    %v2676 = vunpack.c.h.b16 %v659
    %v2677 = vunpack.c.l.b16 %v660
    %v2678 = vunpack.c.h.b16 %v660
    %v2679 = vunpack.c.l.b16 %v661
    %v2680 = vunpack.c.h.b16 %v661
    %v2681 = vunpack.c.l.b16 %v662
    %v2682 = vunpack.c.h.b16 %v662
    %v2683 = vunpack.c.l.b16 %v663
    %v2684 = vunpack.c.h.b16 %v663
    %v2685 = vunpack.c.l.b16 %v664
    %v2686 = vunpack.c.h.b16 %v664
    %v2687 = vunpack.c.l.b16 %v665
    %v2688 = vunpack.c.h.b16 %v665
    %v2689 = vunpack.c.l.b16 %v666
    %v2690 = vunpack.c.h.b16 %v666
    %v2691 = vunpack.c.l.b16 %v667
    %v2692 = vunpack.c.h.b16 %v667
    %v2693 = vunpack.c.l.b16 %v668
    %v2694 = vunpack.c.h.b16 %v668
    %v2695 = vunpack.c.l.b16 %v669
    %v2696 = vunpack.c.h.b16 %v669
    %v2697 = vunpack.c.l.b16 %v670
    %v2698 = vunpack.c.h.b16 %v670
    %v2699 = vunpack.c.l.b16 %v671
    %v2700 = vunpack.c.h.b16 %v671
    %v2701 = vunpack.c.l.b16 %v672
    %v2702 = vunpack.c.h.b16 %v672
    %v2703 = vunpack.c.l.b16 %v673
    %v2704 = vunpack.c.h.b16 %v673
    %v2705 = vunpack.c.l.b16 %v674
    %v2706 = vunpack.c.h.b16 %v674
    %v2707 = vunpack.c.l.b16 %v675
    %v2708 = vunpack.c.h.b16 %v675
    %v2709 = vunpack.c.l.b16 %v676
    %v2710 = vunpack.c.h.b16 %v676
    %v2711 = vunpack.c.l.b16 %v677
    %v2712 = vunpack.c.h.b16 %v677
    %v2713 = vunpack.c.l.b16 %v678
    %v2714 = vunpack.c.h.b16 %v678
    %v2715 = vunpack.c.l.b16 %v679
    %v2716 = vunpack.c.h.b16 %v679
    %v2717 = vunpack.c.l.b16 %v680
    %v2718 = vunpack.c.h.b16 %v680
    %v2719 = vunpack.c.l.b16 %v681
    %v2720 = vunpack.c.h.b16 %v681
    %v2721 = vunpack.c.l.b16 %v682
    %v2722 = vunpack.c.h.b16 %v682
    %v2723 = vunpack.c.l.b16 %v683
    %v2724 = vunpack.c.h.b16 %v683
    %v2725 = vunpack.c.l.b16 %v684
    %v2726 = vunpack.c.h.b16 %v684
    %v2727 = vunpack.c.l.b16 %v685
    %v2728 = vunpack.c.h.b16 %v685
    %v2729 = vunpack.c.l.b16 %v686
    %v2730 = vunpack.c.h.b16 %v686
    %v2731 = vunpack.c.l.b16 %v687
    %v2732 = vunpack.c.h.b16 %v687
    %v2733 = vunpack.c.l.b16 %v688
    %v2734 = vunpack.c.h.b16 %v688
    %v2735 = vunpack.c.l.b16 %v689
    %v2736 = vunpack.c.h.b16 %v689
    %v2737 = vunpack.c.l.b16 %v690
    %v2738 = vunpack.c.h.b16 %v690
    %v2739 = vunpack.c.l.b16 %v691
    %v2740 = vunpack.c.h.b16 %v691
    %v2741 = vunpack.c.l.b16 %v692
    %v2742 = vunpack.c.h.b16 %v692
    %v2743 = vunpack.c.l.b16 %v693
    %v2744 = vunpack.c.h.b16 %v693
    %v2745 = vunpack.c.l.b16 %v694
    %v2746 = vunpack.c.h.b16 %v694
    %v2747 = vunpack.c.l.b16 %v695
    %v2748 = vunpack.c.h.b16 %v695
    %v2749 = vunpack.c.l.b16 %v696
    %v2750 = vunpack.c.h.b16 %v696
    %v2751 = vunpack.c.l.b16 %v697
    %v2752 = vunpack.c.h.b16 %v697
    %v2753 = vunpack.c.l.b16 %v698
    %v2754 = vunpack.c.h.b16 %v698
    %v2755 = vunpack.c.l.b16 %v699
    %v2756 = vunpack.c.h.b16 %v699
    %v2757 = vunpack.c.l.b16 %v700
    %v2758 = vunpack.c.h.b16 %v700
    %v2759 = vunpack.c.l.b16 %v701
    %v2760 = vunpack.c.h.b16 %v701
    %v2761 = vunpack.c.l.b16 %v702
    %v2762 = vunpack.c.h.b16 %v702
    %v2763 = vunpack.c.l.b16 %v703
    %v2764 = vunpack.c.h.b16 %v703
    %v2765 = vunpack.c.l.b16 %v704
    %v2766 = vunpack.c.h.b16 %v704
    %v2767 = vunpack.c.l.b16 %v705
    %v2768 = vunpack.c.h.b16 %v705
    %v2769 = vunpack.c.l.b16 %v706
    %v2770 = vunpack.c.h.b16 %v706
    %v2771 = vunpack.c.l.b16 %v707
    %v2772 = vunpack.c.h.b16 %v707
    %v2773 = vunpack.c.l.b16 %v708
    %v2774 = vunpack.c.h.b16 %v708
    %v2775 = vunpack.c.l.b16 %v709
    %v2776 = vunpack.c.h.b16 %v709
    %v2777 = vunpack.c.l.b16 %v710
    %v2778 = vunpack.c.h.b16 %v710
    %v2779 = vunpack.c.l.b16 %v711
    %v2780 = vunpack.c.h.b16 %v711
    %v2781 = vunpack.c.l.b16 %v712
    %v2782 = vunpack.c.h.b16 %v712
    %v2783 = vunpack.c.l.b16 %v713
    %v2784 = vunpack.c.h.b16 %v713
    %v2785 = vunpack.c.l.b16 %v714
    %v2786 = vunpack.c.h.b16 %v714
    %v2787 = vunpack.c.l.b16 %v715
    %v2788 = vunpack.c.h.b16 %v715
    %v2789 = vunpack.c.l.b16 %v716
    %v2790 = vunpack.c.h.b16 %v716
    %v2791 = vunpack.c.l.b16 %v717
    %v2792 = vunpack.c.h.b16 %v717
    %v2793 = vunpack.c.l.b16 %v718
    %v2794 = vunpack.c.h.b16 %v718
    %v2795 = vunpack.c.l.b16 %v719
    %v2796 = vunpack.c.h.b16 %v719
    %v2797 = vunpack.c.l.b16 %v720
    %v2798 = vunpack.c.h.b16 %v720
    %v2799 = vunpack.c.l.b16 %v721
    %v2800 = vunpack.c.h.b16 %v721
    %v2801 = vunpack.c.l.b16 %v722
    %v2802 = vunpack.c.h.b16 %v722
    %v2803 = vunpack.c.l.b16 %v723
    %v2804 = vunpack.c.h.b16 %v723
    %v2805 = vunpack.c.l.b16 %v724
    %v2806 = vunpack.c.h.b16 %v724
    %v2807 = vunpack.c.l.b16 %v725
    %v2808 = vunpack.c.h.b16 %v725
    %v2809 = vunpack.c.l.b16 %v726
    %v2810 = vunpack.c.h.b16 %v726
    %v2811 = vunpack.c.l.b16 %v727
    %v2812 = vunpack.c.h.b16 %v727
    %v2813 = vunpack.c.l.b16 %v728
    %v2814 = vunpack.c.h.b16 %v728
    %v2815 = vunpack.c.l.b16 %v729
    %v2816 = vunpack.c.h.b16 %v729
    %v2817 = vunpack.c.l.b16 %v730
    %v2818 = vunpack.c.h.b16 %v730
    %v2819 = vunpack.c.l.b16 %v731
    %v2820 = vunpack.c.h.b16 %v731
    %v2821 = vunpack.c.l.b16 %v732
    %v2822 = vunpack.c.h.b16 %v732
    %v2823 = vunpack.c.l.b16 %v733
    %v2824 = vunpack.c.h.b16 %v733
    %v2825 = vunpack.c.l.b16 %v734
    %v2826 = vunpack.c.h.b16 %v734
    %v2827 = vunpack.c.l.b16 %v735
    %v2828 = vunpack.c.h.b16 %v735
    %v2829 = vunpack.c.l.b16 %v736
    %v2830 = vunpack.c.h.b16 %v736
    %v2831 = vunpack.c.l.b16 %v737
    %v2832 = vunpack.c.h.b16 %v737
    %v2833 = vunpack.c.l.b16 %v738
    %v2834 = vunpack.c.h.b16 %v738
    %v2835 = vunpack.c.l.b16 %v739
    %v2836 = vunpack.c.h.b16 %v739
    %v2837 = vunpack.c.l.b16 %v740
    %v2838 = vunpack.c.h.b16 %v740
    %v2839 = vunpack.c.l.b16 %v741
    %v2840 = vunpack.c.h.b16 %v741
    %v2841 = vunpack.c.l.b16 %v742
    %v2842 = vunpack.c.h.b16 %v742
    %v2843 = vunpack.c.l.b16 %v743
    %v2844 = vunpack.c.h.b16 %v743
    %v2845 = vunpack.c.l.b16 %v744
    %v2846 = vunpack.c.h.b16 %v744
    %v2847 = vunpack.c.l.b16 %v745
    %v2848 = vunpack.c.h.b16 %v745
    %v2849 = vunpack.c.l.b16 %v746
    %v2850 = vunpack.c.h.b16 %v746
    %v2851 = vunpack.c.l.b16 %v747
    %v2852 = vunpack.c.h.b16 %v747
    %v2853 = vunpack.c.l.b16 %v748
    %v2854 = vunpack.c.h.b16 %v748
    %v2855 = vunpack.c.l.b16 %v749
    %v2856 = vunpack.c.h.b16 %v749
    %v2857 = vunpack.c.l.b16 %v750
    %v2858 = vunpack.c.h.b16 %v750
    %v2859 = vunpack.c.l.b16 %v751
    %v2860 = vunpack.c.h.b16 %v751
    %v2861 = vunpack.c.l.b16 %v752
    %v2862 = vunpack.c.h.b16 %v752
    %v2863 = vunpack.c.l.b16 %v753
    %v2864 = vunpack.c.h.b16 %v753
    %v2865 = vunpack.c.l.b16 %v754
    %v2866 = vunpack.c.h.b16 %v754
    %v2867 = vunpack.c.l.b16 %v755
    %v2868 = vunpack.c.h.b16 %v755
    %v2869 = vunpack.c.l.b16 %v756
    %v2870 = vunpack.c.h.b16 %v756
    %v2871 = vunpack.c.l.b16 %v757
    %v2872 = vunpack.c.h.b16 %v757
    %v2873 = vunpack.c.l.b16 %v758
    %v2874 = vunpack.c.h.b16 %v758
    %v2875 = vunpack.c.l.b16 %v759
    %v2876 = vunpack.c.h.b16 %v759
    %v2877 = vunpack.c.l.b16 %v760
    %v2878 = vunpack.c.h.b16 %v760
    %v2879 = vunpack.c.l.b16 %v761
    %v2880 = vunpack.c.h.b16 %v761
    %v2881 = vunpack.c.l.b16 %v762
    %v2882 = vunpack.c.h.b16 %v762
    %v2883 = vunpack.c.l.b16 %v763
    %v2884 = vunpack.c.h.b16 %v763
    %v2885 = vunpack.c.l.b16 %v764
    %v2886 = vunpack.c.h.b16 %v764
    %v2887 = vunpack.c.l.b16 %v765
    %v2888 = vunpack.c.h.b16 %v765
    %v2889 = vunpack.c.l.b16 %v766
    %v2890 = vunpack.c.h.b16 %v766
    %v2891 = vunpack.c.l.b16 %v767
    %v2892 = vunpack.c.h.b16 %v767
    %v2893 = vunpack.c.l.b16 %v768
    %v2894 = vunpack.c.h.b16 %v768
    %v2895 = vunpack.c.l.b16 %v769
    %v2896 = vunpack.c.h.b16 %v769
    %v2897 = vunpack.c.l.b16 %v770
    %v2898 = vunpack.c.h.b16 %v770
    %v2899 = vunpack.c.l.b16 %v771
    %v2900 = vunpack.c.h.b16 %v771
    %v2901 = vunpack.c.l.b16 %v772
    %v2902 = vunpack.c.h.b16 %v772
    %v2903 = vunpack.c.l.b16 %v773
    %v2904 = vunpack.c.h.b16 %v773
    %v2905 = vunpack.c.l.b16 %v774
    %v2906 = vunpack.c.h.b16 %v774
    %v2907 = vunpack.c.l.b16 %v775
    %v2908 = vunpack.c.h.b16 %v775
    %v2909 = vunpack.c.l.b16 %v776
    %v2910 = vunpack.c.h.b16 %v776
    %v2911 = vunpack.c.l.b16 %v777
    %v2912 = vunpack.c.h.b16 %v777
    %v2913 = vunpack.c.l.b16 %v778
    %v2914 = vunpack.c.h.b16 %v778
    %v2915 = vunpack.c.l.b16 %v779
    %v2916 = vunpack.c.h.b16 %v779
    %v2917 = vunpack.c.l.b16 %v780
    %v2918 = vunpack.c.h.b16 %v780
    %v2919 = vunpack.c.l.b16 %v781
    %v2920 = vunpack.c.h.b16 %v781
    %v2921 = vunpack.c.l.b16 %v782
    %v2922 = vunpack.c.h.b16 %v782
    %v2923 = vunpack.c.l.b16 %v783
    %v2924 = vunpack.c.h.b16 %v783
    %v2925 = vunpack.c.l.b16 %v784
    %v2926 = vunpack.c.h.b16 %v784
    %v2927 = vunpack.c.l.b16 %v785
    %v2928 = vunpack.c.h.b16 %v785
    %v2929 = vunpack.c.l.b16 %v786
    %v2930 = vunpack.c.h.b16 %v786
    %v2931 = vunpack.c.l.b16 %v787
    %v2932 = vunpack.c.h.b16 %v787
    %v2933 = vunpack.c.l.b16 %v788
    %v2934 = vunpack.c.h.b16 %v788
    %v2935 = vunpack.c.l.b16 %v789
    %v2936 = vunpack.c.h.b16 %v789
    %v2937 = vunpack.c.l.b16 %v790
    %v2938 = vunpack.c.h.b16 %v790
    %v2939 = vunpack.c.l.b16 %v791
    %v2940 = vunpack.c.h.b16 %v791
    %v2941 = vunpack.c.l.b16 %v792
    %v2942 = vunpack.c.h.b16 %v792
    %v2943 = vunpack.c.l.b16 %v793
    %v2944 = vunpack.c.h.b16 %v793
    %v2945 = vunpack.c.l.b16 %v794
    %v2946 = vunpack.c.h.b16 %v794
    %v2947 = vunpack.c.l.b16 %v795
    %v2948 = vunpack.c.h.b16 %v795
    %v2949 = vunpack.c.l.b16 %v796
    %v2950 = vunpack.c.h.b16 %v796
    %v2951 = vunpack.c.l.b16 %v797
    %v2952 = vunpack.c.h.b16 %v797
    %v2953 = vunpack.c.l.b16 %v798
    %v2954 = vunpack.c.h.b16 %v798
    %v2955 = vunpack.c.l.b16 %v799
    %v2956 = vunpack.c.h.b16 %v799
    %v2957 = vunpack.c.l.b16 %v800
    %v2958 = vunpack.c.h.b16 %v800
    %v2959 = vunpack.c.l.b16 %v801
    %v2960 = vunpack.c.h.b16 %v801
    %v2961 = vunpack.c.l.b16 %v802
    %v2962 = vunpack.c.h.b16 %v802
    %v2963 = vunpack.c.l.b16 %v803
    %v2964 = vunpack.c.h.b16 %v803
    %v2965 = vunpack.c.l.b16 %v804
    %v2966 = vunpack.c.h.b16 %v804
    %v2967 = vunpack.c.l.b16 %v805
    %v2968 = vunpack.c.h.b16 %v805
    %v2969 = vunpack.c.l.b16 %v806
    %v2970 = vunpack.c.h.b16 %v806
    %v2971 = vunpack.c.l.b16 %v807
    %v2972 = vunpack.c.h.b16 %v807
    %v2973 = vunpack.c.l.b16 %v808
    %v2974 = vunpack.c.h.b16 %v808
    %v2975 = vunpack.c.l.b16 %v809
    %v2976 = vunpack.c.h.b16 %v809
    %v2977 = vunpack.c.l.b16 %v810
    %v2978 = vunpack.c.h.b16 %v810
    %v2979 = vunpack.c.l.b16 %v811
    %v2980 = vunpack.c.h.b16 %v811
    %v2981 = vunpack.c.l.b16 %v812
    %v2982 = vunpack.c.h.b16 %v812
    %v2983 = vunpack.c.l.b16 %v813
    %v2984 = vunpack.c.h.b16 %v813
    %v2985 = vunpack.c.l.b16 %v814
    %v2986 = vunpack.c.h.b16 %v814
    %v2987 = vunpack.c.l.b16 %v815
    %v2988 = vunpack.c.h.b16 %v815
    %v2989 = vunpack.c.l.b16 %v816
    %v2990 = vunpack.c.h.b16 %v816
    %v2991 = vunpack.c.l.b16 %v817
    %v2992 = vunpack.c.h.b16 %v817
    %v2993 = vunpack.c.l.b16 %v818
    %v2994 = vunpack.c.h.b16 %v818
    %v2995 = vunpack.c.l.b16 %v819
    %v2996 = vunpack.c.h.b16 %v819
    %v2997 = vunpack.c.l.b16 %v820
    %v2998 = vunpack.c.h.b16 %v820
    %v2999 = vunpack.c.l.b16 %v821
    %v3000 = vunpack.c.h.b16 %v821
    %v3001 = vunpack.c.l.b16 %v822
    %v3002 = vunpack.c.h.b16 %v822
    %v3003 = vunpack.c.l.b16 %v823
    %v3004 = vunpack.c.h.b16 %v823
    %v3005 = vunpack.c.l.b16 %v824
    %v3006 = vunpack.c.h.b16 %v824
    %v3007 = vunpack.c.l.b16 %v825
    %v3008 = vunpack.c.h.b16 %v825
    %v3009 = vunpack.c.l.b16 %v826
    %v3010 = vunpack.c.h.b16 %v826
    %v3011 = vunpack.c.l.b16 %v827
    %v3012 = vunpack.c.h.b16 %v827
    %v3013 = vunpack.c.l.b16 %v828
    %v3014 = vunpack.c.h.b16 %v828
    %v3015 = vunpack.c.l.b16 %v829
    %v3016 = vunpack.c.h.b16 %v829
    %v3017 = vunpack.c.l.b16 %v830
    %v3018 = vunpack.c.h.b16 %v830
    %v3019 = vunpack.c.l.b16 %v831
    %v3020 = vunpack.c.h.b16 %v831
    %v3021 = vunpack.c.l.b16 %v832
    %v3022 = vunpack.c.h.b16 %v832
    %v3023 = vunpack.c.l.b16 %v833
    %v3024 = vunpack.c.h.b16 %v833
    %v3025 = vunpack.c.l.b16 %v834
    %v3026 = vunpack.c.h.b16 %v834
    %v3027 = vunpack.c.l.b16 %v835
    %v3028 = vunpack.c.h.b16 %v835
    %v3029 = vunpack.c.l.b16 %v836
    %v3030 = vunpack.c.h.b16 %v836
    %v3031 = vunpack.c.l.b16 %v837
    %v3032 = vunpack.c.h.b16 %v837
    %v3033 = vunpack.c.l.b16 %v838
    %v3034 = vunpack.c.h.b16 %v838
    %v3035 = vunpack.c.l.b16 %v839
    %v3036 = vunpack.c.h.b16 %v839
    %v3037 = vunpack.c.l.b16 %v840
    %v3038 = vunpack.c.h.b16 %v840
    %v3039 = vunpack.c.l.b16 %v841
    %v3040 = vunpack.c.h.b16 %v841
    %v3041 = vunpack.c.l.b16 %v842
    %v3042 = vunpack.c.h.b16 %v842
    %v3043 = vunpack.c.l.b16 %v843
    %v3044 = vunpack.c.h.b16 %v843
    %v3045 = vunpack.c.l.b16 %v844
    %v3046 = vunpack.c.h.b16 %v844
    %v3047 = vunpack.c.l.b16 %v845
    %v3048 = vunpack.c.h.b16 %v845
    %v3049 = vunpack.c.l.b16 %v846
    %v3050 = vunpack.c.h.b16 %v846
    %v3051 = vunpack.c.l.b16 %v847
    %v3052 = vunpack.c.h.b16 %v847
    %v3053 = vunpack.c.l.b16 %v848
    %v3054 = vunpack.c.h.b16 %v848
    %v3055 = vunpack.c.l.b16 %v849
    %v3056 = vunpack.c.h.b16 %v849
    %v3057 = vunpack.c.l.b16 %v850
    %v3058 = vunpack.c.h.b16 %v850
    %v3059 = vunpack.c.l.b16 %v851
    %v3060 = vunpack.c.h.b16 %v851
    %v3061 = vunpack.c.l.b16 %v852
    %v3062 = vunpack.c.h.b16 %v852
    %v3063 = vunpack.c.l.b16 %v853
    %v3064 = vunpack.c.h.b16 %v853
    %v3065 = vunpack.c.l.b16 %v854
    %v3066 = vunpack.c.h.b16 %v854
    %v3067 = vunpack.c.l.b16 %v855
    %v3068 = vunpack.c.h.b16 %v855
    %v3069 = vunpack.c.l.b16 %v856
    %v3070 = vunpack.c.h.b16 %v856
    %v3071 = vunpack.c.l.b16 %v857
    %v3072 = vunpack.c.h.b16 %v857
    %v3073 = vunpack.c.l.b16 %v858
    %v3074 = vunpack.c.h.b16 %v858
    %v3075 = vunpack.c.l.b16 %v859
    %v3076 = vunpack.c.h.b16 %v859
    %v3077 = vunpack.c.l.b16 %v860
    %v3078 = vunpack.c.h.b16 %v860
    %v3079 = vunpack.c.l.b16 %v861
    %v3080 = vunpack.c.h.b16 %v861
    %v3081 = vunpack.c.l.b16 %v862
    %v3082 = vunpack.c.h.b16 %v862
    %v3083 = vunpack.c.l.b16 %v863
    %v3084 = vunpack.c.h.b16 %v863
    %v3085 = vunpack.c.l.b16 %v864
    %v3086 = vunpack.c.h.b16 %v864
    %v3087 = vunpack.c.l.b16 %v865
    %v3088 = vunpack.c.h.b16 %v865
    %v3089 = vunpack.c.l.b16 %v866
    %v3090 = vunpack.c.h.b16 %v866
    %v3091 = vunpack.c.l.b16 %v867
    %v3092 = vunpack.c.h.b16 %v867
    %v3093 = vunpack.c.l.b16 %v868
    %v3094 = vunpack.c.h.b16 %v868
    %v3095 = vunpack.c.l.b16 %v869
    %v3096 = vunpack.c.h.b16 %v869
    %v3097 = vunpack.c.l.b16 %v870
    %v3098 = vunpack.c.h.b16 %v870
    %v3099 = vunpack.c.l.b16 %v871
    %v3100 = vunpack.c.h.b16 %v871
    %v3101 = vunpack.c.l.b16 %v872
    %v3102 = vunpack.c.h.b16 %v872
    %v3103 = vunpack.c.l.b16 %v873
    %v3104 = vunpack.c.h.b16 %v873
    %v3105 = vunpack.c.l.b16 %v874
    %v3106 = vunpack.c.h.b16 %v874
    %v3107 = vunpack.c.l.b16 %v875
    %v3108 = vunpack.c.h.b16 %v875
    %v3109 = vunpack.c.l.b16 %v876
    %v3110 = vunpack.c.h.b16 %v876
    %v3111 = vunpack.c.l.b16 %v877
    %v3112 = vunpack.c.h.b16 %v877
    %v3113 = vunpack.c.l.b16 %v878
    %v3114 = vunpack.c.h.b16 %v878
    %v3115 = vunpack.c.l.b16 %v879
    %v3116 = vunpack.c.h.b16 %v879
    %v3117 = vunpack.c.l.b16 %v880
    %v3118 = vunpack.c.h.b16 %v880
    %v3119 = vunpack.c.l.b16 %v881
    %v3120 = vunpack.c.h.b16 %v881
    %v3121 = vunpack.c.l.b16 %v882
    %v3122 = vunpack.c.h.b16 %v882
    %v3123 = vunpack.c.l.b16 %v883
    %v3124 = vunpack.c.h.b16 %v883
    %v3125 = vunpack.c.l.b16 %v884
    %v3126 = vunpack.c.h.b16 %v884
    %v3127 = vunpack.c.l.b16 %v885
    %v3128 = vunpack.c.h.b16 %v885
    %v3129 = vunpack.c.l.b16 %v886
    %v3130 = vunpack.c.h.b16 %v886
    %v3131 = vunpack.c.l.b16 %v887
    %v3132 = vunpack.c.h.b16 %v887
    %v3133 = vunpack.c.l.b16 %v888
    %v3134 = vunpack.c.h.b16 %v888
    %v3135 = vunpack.c.l.b16 %v889
    %v3136 = vunpack.c.h.b16 %v889
    %v3137 = vunpack.c.l.b16 %v890
    %v3138 = vunpack.c.h.b16 %v890
    %v3139 = vunpack.c.l.b16 %v891
    %v3140 = vunpack.c.h.b16 %v891
    %v3141 = vunpack.c.l.b16 %v892
    %v3142 = vunpack.c.h.b16 %v892
    %v3143 = vunpack.c.l.b16 %v893
    %v3144 = vunpack.c.h.b16 %v893
    %v3145 = vunpack.c.l.b16 %v894
    %v3146 = vunpack.c.h.b16 %v894
    %v3147 = vunpack.c.l.b16 %v895
    %v3148 = vunpack.c.h.b16 %v895
    %v3149 = vunpack.c.l.b16 %v896
    %v3150 = vunpack.c.h.b16 %v896
    %v3151 = vunpack.c.l.b16 %v897
    %v3152 = vunpack.c.h.b16 %v897
    %v3153 = vunpack.c.l.b16 %v898
    %v3154 = vunpack.c.h.b16 %v898
    %v3155 = vunpack.c.l.b16 %v899
    %v3156 = vunpack.c.h.b16 %v899
    %v3157 = vunpack.c.l.b16 %v900
    %v3158 = vunpack.c.h.b16 %v900
    %v3159 = vunpack.c.l.b16 %v901
    %v3160 = vunpack.c.h.b16 %v901
    %v3161 = vunpack.c.l.b16 %v902
    %v3162 = vunpack.c.h.b16 %v902
    %v3163 = vunpack.c.l.b16 %v903
    %v3164 = vunpack.c.h.b16 %v903
    %v3165 = vunpack.c.l.b16 %v904
    %v3166 = vunpack.c.h.b16 %v904
    %v3167 = vunpack.c.l.b16 %v905
    %v3168 = vunpack.c.h.b16 %v905
    %v3169 = vunpack.c.l.b16 %v906
    %v3170 = vunpack.c.h.b16 %v906
    %v3171 = vunpack.c.l.b16 %v907
    %v3172 = vunpack.c.h.b16 %v907
    %v3173 = vunpack.c.l.b16 %v908
    %v3174 = vunpack.c.h.b16 %v908
    %v3175 = vunpack.c.l.b16 %v909
    %v3176 = vunpack.c.h.b16 %v909
    %v3177 = vunpack.c.l.b16 %v910
    %v3178 = vunpack.c.h.b16 %v910
    %v3179 = vunpack.c.l.b16 %v911
    %v3180 = vunpack.c.h.b16 %v911
    %v3181 = vunpack.c.l.b16 %v912
    %v3182 = vunpack.c.h.b16 %v912
    %v3183 = vunpack.c.l.b16 %v913
    %v3184 = vunpack.c.h.b16 %v913
    %v3185 = vunpack.c.l.b16 %v914
    %v3186 = vunpack.c.h.b16 %v914
    %v3187 = vunpack.c.l.b16 %v915
    %v3188 = vunpack.c.h.b16 %v915
    %v3189 = vunpack.c.l.b16 %v916
    %v3190 = vunpack.c.h.b16 %v916
    %v3191 = vunpack.c.l.b16 %v917
    %v3192 = vunpack.c.h.b16 %v917
    %v3193 = vunpack.c.l.b16 %v918
    %v3194 = vunpack.c.h.b16 %v918
    %v3195 = vunpack.c.l.b16 %v919
    %v3196 = vunpack.c.h.b16 %v919
    %v3197 = vunpack.c.l.b16 %v920
    %v3198 = vunpack.c.h.b16 %v920
    %v3199 = vunpack.c.l.b16 %v921
    %v3200 = vunpack.c.h.b16 %v921
    %v3201 = vunpack.c.l.b16 %v922
    %v3202 = vunpack.c.h.b16 %v922
    %v3203 = vunpack.c.l.b16 %v923
    %v3204 = vunpack.c.h.b16 %v923
    %v3205 = vunpack.c.l.b16 %v924
    %v3206 = vunpack.c.h.b16 %v924
    %v3207 = vunpack.c.l.b16 %v925
    %v3208 = vunpack.c.h.b16 %v925
    %v3209 = vunpack.c.l.b16 %v926
    %v3210 = vunpack.c.h.b16 %v926
    %v3211 = vunpack.c.l.b16 %v927
    %v3212 = vunpack.c.h.b16 %v927
    %v3213 = vunpack.c.l.b16 %v928
    %v3214 = vunpack.c.h.b16 %v928
    %v3215 = vunpack.c.l.b16 %v929
    %v3216 = vunpack.c.h.b16 %v929
    %v3217 = vunpack.c.l.b16 %v930
    %v3218 = vunpack.c.h.b16 %v930
    %v3219 = vunpack.c.l.b16 %v931
    %v3220 = vunpack.c.h.b16 %v931
    %v3221 = vunpack.c.l.b16 %v932
    %v3222 = vunpack.c.h.b16 %v932
    %v3223 = vunpack.c.l.b16 %v933
    %v3224 = vunpack.c.h.b16 %v933
    %v3225 = vunpack.c.l.b16 %v934
    %v3226 = vunpack.c.h.b16 %v934
    %v3227 = vunpack.c.l.b16 %v935
    %v3228 = vunpack.c.h.b16 %v935
    %v3229 = vunpack.c.l.b16 %v936
    %v3230 = vunpack.c.h.b16 %v936
    %v3231 = vunpack.c.l.b16 %v937
    %v3232 = vunpack.c.h.b16 %v937
    %v3233 = vunpack.c.l.b16 %v938
    %v3234 = vunpack.c.h.b16 %v938
    %v3235 = vunpack.c.l.b16 %v939
    %v3236 = vunpack.c.h.b16 %v939
    %v3237 = vunpack.c.l.b16 %v940
    %v3238 = vunpack.c.h.b16 %v940
    %v3239 = vunpack.c.l.b16 %v941
    %v3240 = vunpack.c.h.b16 %v941
    %v3241 = vunpack.c.l.b16 %v942
    %v3242 = vunpack.c.h.b16 %v942
    %v3243 = vunpack.c.l.b16 %v943
    %v3244 = vunpack.c.h.b16 %v943
    %v3245 = vunpack.c.l.b16 %v944
    %v3246 = vunpack.c.h.b16 %v944
    %v3247 = vunpack.c.l.b16 %v945
    %v3248 = vunpack.c.h.b16 %v945
    %v3249 = vunpack.c.l.b16 %v946
    %v3250 = vunpack.c.h.b16 %v946
    %v3251 = vunpack.c.l.b16 %v947
    %v3252 = vunpack.c.h.b16 %v947
    %v3253 = vunpack.c.l.b16 %v948
    %v3254 = vunpack.c.h.b16 %v948
    %v3255 = vunpack.c.l.b16 %v949
    %v3256 = vunpack.c.h.b16 %v949
    %v3257 = vunpack.c.l.b16 %v950
    %v3258 = vunpack.c.h.b16 %v950
    %v3259 = vunpack.c.l.b16 %v951
    %v3260 = vunpack.c.h.b16 %v951
    %v3261 = vunpack.c.l.b16 %v952
    %v3262 = vunpack.c.h.b16 %v952
    %v3263 = vunpack.c.l.b16 %v953
    %v3264 = vunpack.c.h.b16 %v953
    %v3265 = vunpack.c.l.b16 %v954
    %v3266 = vunpack.c.h.b16 %v954
    %v3267 = vunpack.c.l.b16 %v955
    %v3268 = vunpack.c.h.b16 %v955
    %v3269 = vunpack.c.l.b16 %v956
    %v3270 = vunpack.c.h.b16 %v956
    %v3271 = vunpack.c.l.b16 %v957
    %v3272 = vunpack.c.h.b16 %v957
    %v3273 = vunpack.c.l.b16 %v958
    %v3274 = vunpack.c.h.b16 %v958
    %v3275 = vunpack.c.l.b16 %v959
    %v3276 = vunpack.c.h.b16 %v959
    %v3277 = vunpack.c.l.b16 %v960
    %v3278 = vunpack.c.h.b16 %v960
    %v3279 = vunpack.c.l.b16 %v961
    %v3280 = vunpack.c.h.b16 %v961
    %v3281 = vunpack.c.l.b16 %v962
    %v3282 = vunpack.c.h.b16 %v962
    %v3283 = vunpack.c.l.b16 %v963
    %v3284 = vunpack.c.h.b16 %v963
    %v3285 = vunpack.c.l.b16 %v964
    %v3286 = vunpack.c.h.b16 %v964
    %v3287 = vunpack.c.l.b16 %v965
    %v3288 = vunpack.c.h.b16 %v965
    %v3289 = vunpack.c.l.b16 %v966
    %v3290 = vunpack.c.h.b16 %v966
    %v3291 = vunpack.c.l.b16 %v967
    %v3292 = vunpack.c.h.b16 %v967
    %v3293 = vunpack.c.l.b16 %v968
    %v3294 = vunpack.c.h.b16 %v968
    %v3295 = vunpack.c.l.b16 %v969
    %v3296 = vunpack.c.h.b16 %v969
    %v3297 = vunpack.c.l.b16 %v970
    %v3298 = vunpack.c.h.b16 %v970
    %v3299 = vunpack.c.l.b16 %v971
    %v3300 = vunpack.c.h.b16 %v971
    %v3301 = vunpack.c.l.b16 %v972
    %v3302 = vunpack.c.h.b16 %v972
    %v3303 = vunpack.c.l.b16 %v973
    %v3304 = vunpack.c.h.b16 %v973
    %v3305 = vunpack.c.l.b16 %v974
    %v3306 = vunpack.c.h.b16 %v974
    %v3307 = vunpack.c.l.b16 %v975
    %v3308 = vunpack.c.h.b16 %v975
    %v3309 = vunpack.c.l.b16 %v976
    %v3310 = vunpack.c.h.b16 %v976
    %v3311 = vunpack.c.l.b16 %v977
    %v3312 = vunpack.c.h.b16 %v977
    %v3313 = vunpack.c.l.b16 %v978
    %v3314 = vunpack.c.h.b16 %v978
    %v3315 = vunpack.c.l.b16 %v979
    %v3316 = vunpack.c.h.b16 %v979
    %v3317 = vunpack.c.l.b16 %v980
    %v3318 = vunpack.c.h.b16 %v980
    %v3319 = vunpack.c.l.b16 %v981
    %v3320 = vunpack.c.h.b16 %v981
    %v3321 = vunpack.c.l.b16 %v982
    %v3322 = vunpack.c.h.b16 %v982
    %v3323 = vunpack.c.l.b16 %v983
    %v3324 = vunpack.c.h.b16 %v983
    %v3325 = vunpack.c.l.b16 %v984
    %v3326 = vunpack.c.h.b16 %v984
    %v3327 = vunpack.c.l.b16 %v985
    %v3328 = vunpack.c.h.b16 %v985
    %v3329 = vunpack.c.l.b16 %v986
    %v3330 = vunpack.c.h.b16 %v986
    %v3331 = vunpack.c.l.b16 %v987
    %v3332 = vunpack.c.h.b16 %v987
    %v3333 = vunpack.c.l.b16 %v988
    %v3334 = vunpack.c.h.b16 %v988
    %v3335 = vunpack.c.l.b16 %v989
    %v3336 = vunpack.c.h.b16 %v989
    %v3337 = vunpack.c.l.b16 %v990
    %v3338 = vunpack.c.h.b16 %v990
    %v3339 = vunpack.c.l.b16 %v991
    %v3340 = vunpack.c.h.b16 %v991
    %v3341 = vunpack.c.l.b16 %v992
    %v3342 = vunpack.c.h.b16 %v992
    %v3343 = vunpack.c.l.b16 %v993
    %v3344 = vunpack.c.h.b16 %v993
    %v3345 = vunpack.c.l.b16 %v994
    %v3346 = vunpack.c.h.b16 %v994
    %v3347 = vunpack.c.l.b16 %v995
    %v3348 = vunpack.c.h.b16 %v995
    %v3349 = vunpack.c.l.b16 %v996
    %v3350 = vunpack.c.h.b16 %v996
    %v3351 = vunpack.c.l.b16 %v997
    %v3352 = vunpack.c.h.b16 %v997
    %v3353 = vunpack.c.l.b16 %v998
    %v3354 = vunpack.c.h.b16 %v998
    %v3355 = vunpack.c.l.b16 %v999
    %v3356 = vunpack.c.h.b16 %v999
    %v3357 = vunpack.c.l.b16 %v1000
    %v3358 = vunpack.c.h.b16 %v1000
    %v3359 = vunpack.c.l.b16 %v1001
    %v3360 = vunpack.c.h.b16 %v1001
    %v3361 = vunpack.c.l.b16 %v1002
    %v3362 = vunpack.c.h.b16 %v1002
    %v3363 = vunpack.c.l.b16 %v1003
    %v3364 = vunpack.c.h.b16 %v1003
    %v3365 = vunpack.c.l.b16 %v1004
    %v3366 = vunpack.c.h.b16 %v1004
    %v3367 = vunpack.c.l.b16 %v1005
    %v3368 = vunpack.c.h.b16 %v1005
    %v3369 = vunpack.c.l.b16 %v1006
    %v3370 = vunpack.c.h.b16 %v1006
    %v3371 = vunpack.c.l.b16 %v1007
    %v3372 = vunpack.c.h.b16 %v1007
    %v3373 = vunpack.c.l.b16 %v1008
    %v3374 = vunpack.c.h.b16 %v1008
    %v3375 = vunpack.c.l.b16 %v1009
    %v3376 = vunpack.c.h.b16 %v1009
    %v3377 = vunpack.c.l.b16 %v1010
    %v3378 = vunpack.c.h.b16 %v1010
    %v3379 = vunpack.c.l.b16 %v1011
    %v3380 = vunpack.c.h.b16 %v1011
    %v3381 = vunpack.c.l.b16 %v1012
    %v3382 = vunpack.c.h.b16 %v1012
    %v3383 = vunpack.c.l.b16 %v1013
    %v3384 = vunpack.c.h.b16 %v1013
    %v3385 = vunpack.c.l.b16 %v1014
    %v3386 = vunpack.c.h.b16 %v1014
    %v3387 = vunpack.c.l.b16 %v1015
    %v3388 = vunpack.c.h.b16 %v1015
    %v3389 = vunpack.c.l.b16 %v1016
    %v3390 = vunpack.c.h.b16 %v1016
    %v3391 = vunpack.c.l.b16 %v1017
    %v3392 = vunpack.c.h.b16 %v1017
    %v3393 = vunpack.c.l.b16 %v1018
    %v3394 = vunpack.c.h.b16 %v1018
    %v3395 = vunpack.c.l.b16 %v1019
    %v3396 = vunpack.c.h.b16 %v1019
    %v3397 = vunpack.c.l.b16 %v1020
    %v3398 = vunpack.c.h.b16 %v1020
    %v3399 = vunpack.c.l.b16 %v1021
    %v3400 = vunpack.c.h.b16 %v1021
    %v3401 = vunpack.c.l.b16 %v1022
    %v3402 = vunpack.c.h.b16 %v1022
    %v3403 = vunpack.c.l.b16 %v1023
    %v3404 = vunpack.c.h.b16 %v1023
    %v3405 = vunpack.c.l.b16 %v1024
    %v3406 = vunpack.c.h.b16 %v1024
    %v3407 = vunpack.c.l.b16 %v1025
    %v3408 = vunpack.c.h.b16 %v1025
    %v3409 = vunpack.c.l.b16 %v1026
    %v3410 = vunpack.c.h.b16 %v1026
    %v3411 = vunpack.c.l.b16 %v1027
    %v3412 = vunpack.c.h.b16 %v1027
    %v3413 = vunpack.c.l.b16 %v1028
    %v3414 = vunpack.c.h.b16 %v1028
    %v3415 = vunpack.c.l.b16 %v1029
    %v3416 = vunpack.c.h.b16 %v1029
    %v3417 = vunpack.c.l.b16 %v1030
    %v3418 = vunpack.c.h.b16 %v1030
    %v3419 = vunpack.c.l.b16 %v1031
    %v3420 = vunpack.c.h.b16 %v1031
    %v3421 = vunpack.c.l.b16 %v1032
    %v3422 = vunpack.c.h.b16 %v1032
    %v3423 = vunpack.c.l.b16 %v1033
    %v3424 = vunpack.c.h.b16 %v1033
    %v3425 = vunpack.c.l.b16 %v1034
    %v3426 = vunpack.c.h.b16 %v1034
    %v3427 = vunpack.c.l.b16 %v1035
    %v3428 = vunpack.c.h.b16 %v1035
    %v3429 = vunpack.c.l.b16 %v1036
    %v3430 = vunpack.c.h.b16 %v1036
    %v3431 = vunpack.c.l.b16 %v1037
    %v3432 = vunpack.c.h.b16 %v1037
    %v3433 = vunpack.c.l.b16 %v1038
    %v3434 = vunpack.c.h.b16 %v1038
    %v3435 = vunpack.c.l.b16 %v1039
    %v3436 = vunpack.c.h.b16 %v1039
    %v3437 = vunpack.c.l.b16 %v1040
    %v3438 = vunpack.c.h.b16 %v1040
    %v3439 = vunpack.c.l.b16 %v1041
    %v3440 = vunpack.c.h.b16 %v1041
    %v3441 = vunpack.c.l.b16 %v1042
    %v3442 = vunpack.c.h.b16 %v1042
    %v3443 = vunpack.c.l.b16 %v1043
    %v3444 = vunpack.c.h.b16 %v1043
    %v3445 = vunpack.c.l.b16 %v1044
    %v3446 = vunpack.c.h.b16 %v1044
    %v3447 = vunpack.c.l.b16 %v1045
    %v3448 = vunpack.c.h.b16 %v1045
    %v3449 = vunpack.c.l.b16 %v1046
    %v3450 = vunpack.c.h.b16 %v1046
    %v3451 = vunpack.c.l.b16 %v1047
    %v3452 = vunpack.c.h.b16 %v1047
    %v3453 = vunpack.c.l.b16 %v1048
    %v3454 = vunpack.c.h.b16 %v1048
    %v3455 = vunpack.c.l.b16 %v1049
    %v3456 = vunpack.c.h.b16 %v1049
    %v3457 = vunpack.c.l.b16 %v1050
    %v3458 = vunpack.c.h.b16 %v1050
    %v3459 = vunpack.c.l.b16 %v1051
    %v3460 = vunpack.c.h.b16 %v1051
    %v3461 = vunpack.c.l.b16 %v1052
    %v3462 = vunpack.c.h.b16 %v1052
    %v3463 = vunpack.c.l.b16 %v1053
    %v3464 = vunpack.c.h.b16 %v1053
    %v3465 = vunpack.c.l.b16 %v1054
    %v3466 = vunpack.c.h.b16 %v1054
    %v3467 = vunpack.c.l.b16 %v1055
    %v3468 = vunpack.c.h.b16 %v1055
    %v3469 = vunpack.c.l.b16 %v1056
    %v3470 = vunpack.c.h.b16 %v1056
    %v3471 = vunpack.c.l.b16 %v1057
    %v3472 = vunpack.c.h.b16 %v1057
    %v3473 = vunpack.c.l.b16 %v1058
    %v3474 = vunpack.c.h.b16 %v1058
    %v3475 = vunpack.c.l.b16 %v1059
    %v3476 = vunpack.c.h.b16 %v1059
    %v3477 = vunpack.c.l.b16 %v1060
    %v3478 = vunpack.c.h.b16 %v1060
    %v3479 = vunpack.c.l.b16 %v1061
    %v3480 = vunpack.c.h.b16 %v1061
    %v3481 = vunpack.c.l.b16 %v1062
    %v3482 = vunpack.c.h.b16 %v1062
    %v3483 = vunpack.c.l.b16 %v1063
    %v3484 = vunpack.c.h.b16 %v1063
    %v3485 = vunpack.c.l.b16 %v1064
    %v3486 = vunpack.c.h.b16 %v1064
    %v3487 = vunpack.c.l.b16 %v1065
    %v3488 = vunpack.c.h.b16 %v1065
    %v3489 = vunpack.c.l.b16 %v1066
    %v3490 = vunpack.c.h.b16 %v1066
    %v3491 = vunpack.c.l.b16 %v1067
    %v3492 = vunpack.c.h.b16 %v1067
    %v3493 = vunpack.c.l.b16 %v1068
    %v3494 = vunpack.c.h.b16 %v1068
    %v3495 = vunpack.c.l.b16 %v1069
    %v3496 = vunpack.c.h.b16 %v1069
    %v3497 = vunpack.c.l.b16 %v1070
    %v3498 = vunpack.c.h.b16 %v1070
    %v3499 = vunpack.c.l.b16 %v1071
    %v3500 = vunpack.c.h.b16 %v1071
    %v3501 = vunpack.c.l.b16 %v1072
    %v3502 = vunpack.c.h.b16 %v1072
    %v3503 = vunpack.c.l.b16 %v1073
    %v3504 = vunpack.c.h.b16 %v1073
    %v3505 = vunpack.c.l.b16 %v1074
    %v3506 = vunpack.c.h.b16 %v1074
    %v3507 = vunpack.c.l.b16 %v1075
    %v3508 = vunpack.c.h.b16 %v1075
    %v3509 = vunpack.c.l.b16 %v1076
    %v3510 = vunpack.c.h.b16 %v1076
    %v3511 = vunpack.c.l.b16 %v1077
    %v3512 = vunpack.c.h.b16 %v1077
    %v3513 = vunpack.c.l.b16 %v1078
    %v3514 = vunpack.c.h.b16 %v1078
    %v3515 = vunpack.c.l.b16 %v1079
    %v3516 = vunpack.c.h.b16 %v1079
    %v3517 = vunpack.c.l.b16 %v1080
    %v3518 = vunpack.c.h.b16 %v1080
    %v3519 = vunpack.c.l.b16 %v1081
    %v3520 = vunpack.c.h.b16 %v1081
    %v3521 = vunpack.c.l.b16 %v1082
    %v3522 = vunpack.c.h.b16 %v1082
    %v3523 = vunpack.c.l.b16 %v1083
    %v3524 = vunpack.c.h.b16 %v1083
    %v3525 = vunpack.c.l.b16 %v1084
    %v3526 = vunpack.c.h.b16 %v1084
    %v3527 = vunpack.c.l.b16 %v1085
    %v3528 = vunpack.c.h.b16 %v1085
    %v3529 = vunpack.c.l.b16 %v1086
    %v3530 = vunpack.c.h.b16 %v1086
    %v3531 = vunpack.c.l.b16 %v1087
    %v3532 = vunpack.c.h.b16 %v1087
    %v3533 = vunpack.c.l.b16 %v1088
    %v3534 = vunpack.c.h.b16 %v1088
    %v3535 = vunpack.c.l.b16 %v1089
    %v3536 = vunpack.c.h.b16 %v1089
    %v3537 = vunpack.c.l.b16 %v1090
    %v3538 = vunpack.c.h.b16 %v1090
    %v3539 = vunpack.c.l.b16 %v1091
    %v3540 = vunpack.c.h.b16 %v1091
    %v3541 = vunpack.c.l.b16 %v1092
    %v3542 = vunpack.c.h.b16 %v1092
    %v3543 = vunpack.c.l.b16 %v1093
    %v3544 = vunpack.c.h.b16 %v1093
    %v3545 = vunpack.c.l.b16 %v1094
    %v3546 = vunpack.c.h.b16 %v1094
    %v3547 = vunpack.c.l.b16 %v1095
    %v3548 = vunpack.c.h.b16 %v1095
    %v3549 = vunpack.c.l.b16 %v1096
    %v3550 = vunpack.c.h.b16 %v1096
    %v3551 = vunpack.c.l.b16 %v1097
    %v3552 = vunpack.c.h.b16 %v1097
    %v3553 = vunpack.c.l.b16 %v1098
    %v3554 = vunpack.c.h.b16 %v1098
    %v3555 = vunpack.c.l.b16 %v1099
    %v3556 = vunpack.c.h.b16 %v1099
    %v3557 = vunpack.c.l.b16 %v1100
    %v3558 = vunpack.c.h.b16 %v1100
    %v3559 = vunpack.c.l.b16 %v1101
    %v3560 = vunpack.c.h.b16 %v1101
    %v3561 = vunpack.c.l.b16 %v1102
    %v3562 = vunpack.c.h.b16 %v1102
    %v3563 = vunpack.c.l.b16 %v1103
    %v3564 = vunpack.c.h.b16 %v1103
    %v3565 = vunpack.c.l.b16 %v1104
    %v3566 = vunpack.c.h.b16 %v1104
    %v3567 = vunpack.c.l.b16 %v1105
    %v3568 = vunpack.c.h.b16 %v1105
    %v3569 = vunpack.c.l.b16 %v1106
    %v3570 = vunpack.c.h.b16 %v1106
    %v3571 = vunpack.c.l.b16 %v1107
    %v3572 = vunpack.c.h.b16 %v1107
    %v3573 = vunpack.c.l.b16 %v1108
    %v3574 = vunpack.c.h.b16 %v1108
    %v3575 = vunpack.c.l.b16 %v1109
    %v3576 = vunpack.c.h.b16 %v1109
    %v3577 = vunpack.c.l.b16 %v1110
    %v3578 = vunpack.c.h.b16 %v1110
    %v3579 = vunpack.c.l.b16 %v1111
    %v3580 = vunpack.c.h.b16 %v1111
    %v3581 = vunpack.c.l.b16 %v1112
    %v3582 = vunpack.c.h.b16 %v1112
    %v3583 = vunpack.c.l.b16 %v1113
    %v3584 = vunpack.c.h.b16 %v1113
    %v3585 = vunpack.c.l.b16 %v1114
    %v3586 = vunpack.c.h.b16 %v1114
    %v3587 = vpack.c.b16 %v2053, %v2051
    %v3588 = vpack.c.b16 %v2054, %v2052
    %v3589 = vpack.c.b16 %v2057, %v2055
    %v3590 = vpack.c.b16 %v2058, %v2056
    %v3591 = vpack.c.b16 %v2061, %v2059
    %v3592 = vpack.c.b16 %v2062, %v2060
    %v3593 = vpack.c.b16 %v2065, %v2063
    %v3594 = vpack.c.b16 %v2066, %v2064
    %v3595 = vpack.c.b16 %v2069, %v2067
    %v3596 = vpack.c.b16 %v2070, %v2068
    %v3597 = vpack.c.b16 %v2073, %v2071
    %v3598 = vpack.c.b16 %v2074, %v2072
    %v3599 = vpack.c.b16 %v2077, %v2075
    %v3600 = vpack.c.b16 %v2078, %v2076
    %v3601 = vpack.c.b16 %v2081, %v2079
    %v3602 = vpack.c.b16 %v2082, %v2080
    %v3603 = vpack.c.b16 %v2085, %v2083
    %v3604 = vpack.c.b16 %v2086, %v2084
    %v3605 = vpack.c.b16 %v2089, %v2087
    %v3606 = vpack.c.b16 %v2090, %v2088
    %v3607 = vpack.c.b16 %v2093, %v2091
    %v3608 = vpack.c.b16 %v2094, %v2092
    %v3609 = vpack.c.b16 %v2097, %v2095
    %v3610 = vpack.c.b16 %v2098, %v2096
    %v3611 = vpack.c.b16 %v2101, %v2099
    %v3612 = vpack.c.b16 %v2102, %v2100
    %v3613 = vpack.c.b16 %v2105, %v2103
    %v3614 = vpack.c.b16 %v2106, %v2104
    %v3615 = vpack.c.b16 %v2109, %v2107
    %v3616 = vpack.c.b16 %v2110, %v2108
    %v3617 = vpack.c.b16 %v2113, %v2111
    %v3618 = vpack.c.b16 %v2114, %v2112
    %v3619 = vpack.c.b16 %v2117, %v2115
    %v3620 = vpack.c.b16 %v2118, %v2116
    %v3621 = vpack.c.b16 %v2121, %v2119
    %v3622 = vpack.c.b16 %v2122, %v2120
    %v3623 = vpack.c.b16 %v2125, %v2123
    %v3624 = vpack.c.b16 %v2126, %v2124
    %v3625 = vpack.c.b16 %v2129, %v2127
    %v3626 = vpack.c.b16 %v2130, %v2128
    %v3627 = vpack.c.b16 %v2133, %v2131
    %v3628 = vpack.c.b16 %v2134, %v2132
    %v3629 = vpack.c.b16 %v2137, %v2135
    %v3630 = vpack.c.b16 %v2138, %v2136
    %v3631 = vpack.c.b16 %v2141, %v2139
    %v3632 = vpack.c.b16 %v2142, %v2140
    %v3633 = vpack.c.b16 %v2145, %v2143
    %v3634 = vpack.c.b16 %v2146, %v2144
    %v3635 = vpack.c.b16 %v2149, %v2147
    %v3636 = vpack.c.b16 %v2150, %v2148
    %v3637 = vpack.c.b16 %v2153, %v2151
    %v3638 = vpack.c.b16 %v2154, %v2152
    %v3639 = vpack.c.b16 %v2157, %v2155
    %v3640 = vpack.c.b16 %v2158, %v2156
    %v3641 = vpack.c.b16 %v2161, %v2159
    %v3642 = vpack.c.b16 %v2162, %v2160
    %v3643 = vpack.c.b16 %v2165, %v2163
    %v3644 = vpack.c.b16 %v2166, %v2164
    %v3645 = vpack.c.b16 %v2169, %v2167
    %v3646 = vpack.c.b16 %v2170, %v2168
    %v3647 = vpack.c.b16 %v2173, %v2171
    %v3648 = vpack.c.b16 %v2174, %v2172
    %v3649 = vpack.c.b16 %v2177, %v2175
    %v3650 = vpack.c.b16 %v2178, %v2176
    %v3651 = vpack.c.b16 %v2181, %v2179
    %v3652 = vpack.c.b16 %v2182, %v2180
    %v3653 = vpack.c.b16 %v2185, %v2183
    %v3654 = vpack.c.b16 %v2186, %v2184
    %v3655 = vpack.c.b16 %v2189, %v2187
    %v3656 = vpack.c.b16 %v2190, %v2188
    %v3657 = vpack.c.b16 %v2193, %v2191
    %v3658 = vpack.c.b16 %v2194, %v2192
    %v3659 = vpack.c.b16 %v2197, %v2195
    %v3660 = vpack.c.b16 %v2198, %v2196
    %v3661 = vpack.c.b16 %v2201, %v2199
    %v3662 = vpack.c.b16 %v2202, %v2200
    %v3663 = vpack.c.b16 %v2205, %v2203
    %v3664 = vpack.c.b16 %v2206, %v2204
    %v3665 = vpack.c.b16 %v2209, %v2207
    %v3666 = vpack.c.b16 %v2210, %v2208
    %v3667 = vpack.c.b16 %v2213, %v2211
    %v3668 = vpack.c.b16 %v2214, %v2212
    %v3669 = vpack.c.b16 %v2217, %v2215
    %v3670 = vpack.c.b16 %v2218, %v2216
    %v3671 = vpack.c.b16 %v2221, %v2219
    %v3672 = vpack.c.b16 %v2222, %v2220
    %v3673 = vpack.c.b16 %v2225, %v2223
    %v3674 = vpack.c.b16 %v2226, %v2224
    %v3675 = vpack.c.b16 %v2229, %v2227
    %v3676 = vpack.c.b16 %v2230, %v2228
    %v3677 = vpack.c.b16 %v2233, %v2231
    %v3678 = vpack.c.b16 %v2234, %v2232
    %v3679 = vpack.c.b16 %v2237, %v2235
    %v3680 = vpack.c.b16 %v2238, %v2236
    %v3681 = vpack.c.b16 %v2241, %v2239
    %v3682 = vpack.c.b16 %v2242, %v2240
    %v3683 = vpack.c.b16 %v2245, %v2243
    %v3684 = vpack.c.b16 %v2246, %v2244
    %v3685 = vpack.c.b16 %v2249, %v2247
    %v3686 = vpack.c.b16 %v2250, %v2248
    %v3687 = vpack.c.b16 %v2253, %v2251
    %v3688 = vpack.c.b16 %v2254, %v2252
    %v3689 = vpack.c.b16 %v2257, %v2255
    %v3690 = vpack.c.b16 %v2258, %v2256
    %v3691 = vpack.c.b16 %v2261, %v2259
    %v3692 = vpack.c.b16 %v2262, %v2260
    %v3693 = vpack.c.b16 %v2265, %v2263
    %v3694 = vpack.c.b16 %v2266, %v2264
    %v3695 = vpack.c.b16 %v2269, %v2267
    %v3696 = vpack.c.b16 %v2270, %v2268
    %v3697 = vpack.c.b16 %v2273, %v2271
    %v3698 = vpack.c.b16 %v2274, %v2272
    %v3699 = vpack.c.b16 %v2277, %v2275
    %v3700 = vpack.c.b16 %v2278, %v2276
    %v3701 = vpack.c.b16 %v2281, %v2279
    %v3702 = vpack.c.b16 %v2282, %v2280
    %v3703 = vpack.c.b16 %v2285, %v2283
    %v3704 = vpack.c.b16 %v2286, %v2284
    %v3705 = vpack.c.b16 %v2289, %v2287
    %v3706 = vpack.c.b16 %v2290, %v2288
    %v3707 = vpack.c.b16 %v2293, %v2291
    %v3708 = vpack.c.b16 %v2294, %v2292
    %v3709 = vpack.c.b16 %v2297, %v2295
    %v3710 = vpack.c.b16 %v2298, %v2296
    %v3711 = vpack.c.b16 %v2301, %v2299
    %v3712 = vpack.c.b16 %v2302, %v2300
    %v3713 = vpack.c.b16 %v2305, %v2303
    %v3714 = vpack.c.b16 %v2306, %v2304
    %v3715 = vpack.c.b16 %v2309, %v2307
    %v3716 = vpack.c.b16 %v2310, %v2308
    %v3717 = vpack.c.b16 %v2313, %v2311
    %v3718 = vpack.c.b16 %v2314, %v2312
    %v3719 = vpack.c.b16 %v2317, %v2315
    %v3720 = vpack.c.b16 %v2318, %v2316
    %v3721 = vpack.c.b16 %v2321, %v2319
    %v3722 = vpack.c.b16 %v2322, %v2320
    %v3723 = vpack.c.b16 %v2325, %v2323
    %v3724 = vpack.c.b16 %v2326, %v2324
    %v3725 = vpack.c.b16 %v2329, %v2327
    %v3726 = vpack.c.b16 %v2330, %v2328
    %v3727 = vpack.c.b16 %v2333, %v2331
    %v3728 = vpack.c.b16 %v2334, %v2332
    %v3729 = vpack.c.b16 %v2337, %v2335
    %v3730 = vpack.c.b16 %v2338, %v2336
    %v3731 = vpack.c.b16 %v2341, %v2339
    %v3732 = vpack.c.b16 %v2342, %v2340
    %v3733 = vpack.c.b16 %v2345, %v2343
    %v3734 = vpack.c.b16 %v2346, %v2344
    %v3735 = vpack.c.b16 %v2349, %v2347
    %v3736 = vpack.c.b16 %v2350, %v2348
    %v3737 = vpack.c.b16 %v2353, %v2351
    %v3738 = vpack.c.b16 %v2354, %v2352
    %v3739 = vpack.c.b16 %v2357, %v2355
    %v3740 = vpack.c.b16 %v2358, %v2356
    %v3741 = vpack.c.b16 %v2361, %v2359
    %v3742 = vpack.c.b16 %v2362, %v2360
    %v3743 = vpack.c.b16 %v2365, %v2363
    %v3744 = vpack.c.b16 %v2366, %v2364
    %v3745 = vpack.c.b16 %v2369, %v2367
    %v3746 = vpack.c.b16 %v2370, %v2368
    %v3747 = vpack.c.b16 %v2373, %v2371
    %v3748 = vpack.c.b16 %v2374, %v2372
    %v3749 = vpack.c.b16 %v2377, %v2375
    %v3750 = vpack.c.b16 %v2378, %v2376
    %v3751 = vpack.c.b16 %v2381, %v2379
    %v3752 = vpack.c.b16 %v2382, %v2380
    %v3753 = vpack.c.b16 %v2385, %v2383
    %v3754 = vpack.c.b16 %v2386, %v2384
    %v3755 = vpack.c.b16 %v2389, %v2387
    %v3756 = vpack.c.b16 %v2390, %v2388
    %v3757 = vpack.c.b16 %v2393, %v2391
    %v3758 = vpack.c.b16 %v2394, %v2392
    %v3759 = vpack.c.b16 %v2397, %v2395
    %v3760 = vpack.c.b16 %v2398, %v2396
    %v3761 = vpack.c.b16 %v2401, %v2399
    %v3762 = vpack.c.b16 %v2402, %v2400
    %v3763 = vpack.c.b16 %v2405, %v2403
    %v3764 = vpack.c.b16 %v2406, %v2404
    %v3765 = vpack.c.b16 %v2409, %v2407
    %v3766 = vpack.c.b16 %v2410, %v2408
    %v3767 = vpack.c.b16 %v2413, %v2411
    %v3768 = vpack.c.b16 %v2414, %v2412
    %v3769 = vpack.c.b16 %v2417, %v2415
    %v3770 = vpack.c.b16 %v2418, %v2416
    %v3771 = vpack.c.b16 %v2421, %v2419
    %v3772 = vpack.c.b16 %v2422, %v2420
    %v3773 = vpack.c.b16 %v2425, %v2423
    %v3774 = vpack.c.b16 %v2426, %v2424
    %v3775 = vpack.c.b16 %v2429, %v2427
    %v3776 = vpack.c.b16 %v2430, %v2428
    %v3777 = vpack.c.b16 %v2433, %v2431
    %v3778 = vpack.c.b16 %v2434, %v2432
    %v3779 = vpack.c.b16 %v2437, %v2435
    %v3780 = vpack.c.b16 %v2438, %v2436
    %v3781 = vpack.c.b16 %v2441, %v2439
    %v3782 = vpack.c.b16 %v2442, %v2440
    %v3783 = vpack.c.b16 %v2445, %v2443
    %v3784 = vpack.c.b16 %v2446, %v2444
    %v3785 = vpack.c.b16 %v2449, %v2447
    %v3786 = vpack.c.b16 %v2450, %v2448
    %v3787 = vpack.c.b16 %v2453, %v2451
    %v3788 = vpack.c.b16 %v2454, %v2452
    %v3789 = vpack.c.b16 %v2457, %v2455
    %v3790 = vpack.c.b16 %v2458, %v2456
    %v3791 = vpack.c.b16 %v2461, %v2459
    %v3792 = vpack.c.b16 %v2462, %v2460
    %v3793 = vpack.c.b16 %v2465, %v2463
    %v3794 = vpack.c.b16 %v2466, %v2464
    %v3795 = vpack.c.b16 %v2469, %v2467
    %v3796 = vpack.c.b16 %v2470, %v2468
    %v3797 = vpack.c.b16 %v2473, %v2471
    %v3798 = vpack.c.b16 %v2474, %v2472
    %v3799 = vpack.c.b16 %v2477, %v2475
    %v3800 = vpack.c.b16 %v2478, %v2476
    %v3801 = vpack.c.b16 %v2481, %v2479
    %v3802 = vpack.c.b16 %v2482, %v2480
    %v3803 = vpack.c.b16 %v2485, %v2483
    %v3804 = vpack.c.b16 %v2486, %v2484
    %v3805 = vpack.c.b16 %v2489, %v2487
    %v3806 = vpack.c.b16 %v2490, %v2488
    %v3807 = vpack.c.b16 %v2493, %v2491
    %v3808 = vpack.c.b16 %v2494, %v2492
    %v3809 = vpack.c.b16 %v2497, %v2495
    %v3810 = vpack.c.b16 %v2498, %v2496
    %v3811 = vpack.c.b16 %v2501, %v2499
    %v3812 = vpack.c.b16 %v2502, %v2500
    %v3813 = vpack.c.b16 %v2505, %v2503
    %v3814 = vpack.c.b16 %v2506, %v2504
    %v3815 = vpack.c.b16 %v2509, %v2507
    %v3816 = vpack.c.b16 %v2510, %v2508
    %v3817 = vpack.c.b16 %v2513, %v2511
    %v3818 = vpack.c.b16 %v2514, %v2512
    %v3819 = vpack.c.b16 %v2517, %v2515
    %v3820 = vpack.c.b16 %v2518, %v2516
    %v3821 = vpack.c.b16 %v2521, %v2519
    %v3822 = vpack.c.b16 %v2522, %v2520
    %v3823 = vpack.c.b16 %v2525, %v2523
    %v3824 = vpack.c.b16 %v2526, %v2524
    %v3825 = vpack.c.b16 %v2529, %v2527
    %v3826 = vpack.c.b16 %v2530, %v2528
    %v3827 = vpack.c.b16 %v2533, %v2531
    %v3828 = vpack.c.b16 %v2534, %v2532
    %v3829 = vpack.c.b16 %v2537, %v2535
    %v3830 = vpack.c.b16 %v2538, %v2536
    %v3831 = vpack.c.b16 %v2541, %v2539
    %v3832 = vpack.c.b16 %v2542, %v2540
    %v3833 = vpack.c.b16 %v2545, %v2543
    %v3834 = vpack.c.b16 %v2546, %v2544
    %v3835 = vpack.c.b16 %v2549, %v2547
    %v3836 = vpack.c.b16 %v2550, %v2548
    %v3837 = vpack.c.b16 %v2553, %v2551
    %v3838 = vpack.c.b16 %v2554, %v2552
    %v3839 = vpack.c.b16 %v2557, %v2555
    %v3840 = vpack.c.b16 %v2558, %v2556
    %v3841 = vpack.c.b16 %v2561, %v2559
    %v3842 = vpack.c.b16 %v2562, %v2560
    %v3843 = vpack.c.b16 %v2565, %v2563
    %v3844 = vpack.c.b16 %v2566, %v2564
    %v3845 = vpack.c.b16 %v2569, %v2567
    %v3846 = vpack.c.b16 %v2570, %v2568
    %v3847 = vpack.c.b16 %v2573, %v2571
    %v3848 = vpack.c.b16 %v2574, %v2572
    %v3849 = vpack.c.b16 %v2577, %v2575
    %v3850 = vpack.c.b16 %v2578, %v2576
    %v3851 = vpack.c.b16 %v2581, %v2579
    %v3852 = vpack.c.b16 %v2582, %v2580
    %v3853 = vpack.c.b16 %v2585, %v2583
    %v3854 = vpack.c.b16 %v2586, %v2584
    %v3855 = vpack.c.b16 %v2589, %v2587
    %v3856 = vpack.c.b16 %v2590, %v2588
    %v3857 = vpack.c.b16 %v2593, %v2591
    %v3858 = vpack.c.b16 %v2594, %v2592
    %v3859 = vpack.c.b16 %v2597, %v2595
    %v3860 = vpack.c.b16 %v2598, %v2596
    %v3861 = vpack.c.b16 %v2601, %v2599
    %v3862 = vpack.c.b16 %v2602, %v2600
    %v3863 = vpack.c.b16 %v2605, %v2603
    %v3864 = vpack.c.b16 %v2606, %v2604
    %v3865 = vpack.c.b16 %v2609, %v2607
    %v3866 = vpack.c.b16 %v2610, %v2608
    %v3867 = vpack.c.b16 %v2613, %v2611
    %v3868 = vpack.c.b16 %v2614, %v2612
    %v3869 = vpack.c.b16 %v2617, %v2615
    %v3870 = vpack.c.b16 %v2618, %v2616
    %v3871 = vpack.c.b16 %v2621, %v2619
    %v3872 = vpack.c.b16 %v2622, %v2620
    %v3873 = vpack.c.b16 %v2625, %v2623
    %v3874 = vpack.c.b16 %v2626, %v2624
    %v3875 = vpack.c.b16 %v2629, %v2627
    %v3876 = vpack.c.b16 %v2630, %v2628
    %v3877 = vpack.c.b16 %v2633, %v2631
    %v3878 = vpack.c.b16 %v2634, %v2632
    %v3879 = vpack.c.b16 %v2637, %v2635
    %v3880 = vpack.c.b16 %v2638, %v2636
    %v3881 = vpack.c.b16 %v2641, %v2639
    %v3882 = vpack.c.b16 %v2642, %v2640
    %v3883 = vpack.c.b16 %v2645, %v2643
    %v3884 = vpack.c.b16 %v2646, %v2644
    %v3885 = vpack.c.b16 %v2649, %v2647
    %v3886 = vpack.c.b16 %v2650, %v2648
    %v3887 = vpack.c.b16 %v2653, %v2651
    %v3888 = vpack.c.b16 %v2654, %v2652
    %v3889 = vpack.c.b16 %v2657, %v2655
    %v3890 = vpack.c.b16 %v2658, %v2656
    %v3891 = vpack.c.b16 %v2661, %v2659
    %v3892 = vpack.c.b16 %v2662, %v2660
    %v3893 = vpack.c.b16 %v2665, %v2663
    %v3894 = vpack.c.b16 %v2666, %v2664
    %v3895 = vpack.c.b16 %v2669, %v2667
    %v3896 = vpack.c.b16 %v2670, %v2668
    %v3897 = vpack.c.b16 %v2673, %v2671
    %v3898 = vpack.c.b16 %v2674, %v2672
    %v3899 = vpack.c.b16 %v2677, %v2675
    %v3900 = vpack.c.b16 %v2678, %v2676
    %v3901 = vpack.c.b16 %v2681, %v2679
    %v3902 = vpack.c.b16 %v2682, %v2680
    %v3903 = vpack.c.b16 %v2685, %v2683
    %v3904 = vpack.c.b16 %v2686, %v2684
    %v3905 = vpack.c.b16 %v2689, %v2687
    %v3906 = vpack.c.b16 %v2690, %v2688
    %v3907 = vpack.c.b16 %v2693, %v2691
    %v3908 = vpack.c.b16 %v2694, %v2692
    %v3909 = vpack.c.b16 %v2697, %v2695
    %v3910 = vpack.c.b16 %v2698, %v2696
    %v3911 = vpack.c.b16 %v2701, %v2699
    %v3912 = vpack.c.b16 %v2702, %v2700
    %v3913 = vpack.c.b16 %v2705, %v2703
    %v3914 = vpack.c.b16 %v2706, %v2704
    %v3915 = vpack.c.b16 %v2709, %v2707
    %v3916 = vpack.c.b16 %v2710, %v2708
    %v3917 = vpack.c.b16 %v2713, %v2711
    %v3918 = vpack.c.b16 %v2714, %v2712
    %v3919 = vpack.c.b16 %v2717, %v2715
    %v3920 = vpack.c.b16 %v2718, %v2716
    %v3921 = vpack.c.b16 %v2721, %v2719
    %v3922 = vpack.c.b16 %v2722, %v2720
    %v3923 = vpack.c.b16 %v2725, %v2723
    %v3924 = vpack.c.b16 %v2726, %v2724
    %v3925 = vpack.c.b16 %v2729, %v2727
    %v3926 = vpack.c.b16 %v2730, %v2728
    %v3927 = vpack.c.b16 %v2733, %v2731
    %v3928 = vpack.c.b16 %v2734, %v2732
    %v3929 = vpack.c.b16 %v2737, %v2735
    %v3930 = vpack.c.b16 %v2738, %v2736
    %v3931 = vpack.c.b16 %v2741, %v2739
    %v3932 = vpack.c.b16 %v2742, %v2740
    %v3933 = vpack.c.b16 %v2745, %v2743
    %v3934 = vpack.c.b16 %v2746, %v2744
    %v3935 = vpack.c.b16 %v2749, %v2747
    %v3936 = vpack.c.b16 %v2750, %v2748
    %v3937 = vpack.c.b16 %v2753, %v2751
    %v3938 = vpack.c.b16 %v2754, %v2752
    %v3939 = vpack.c.b16 %v2757, %v2755
    %v3940 = vpack.c.b16 %v2758, %v2756
    %v3941 = vpack.c.b16 %v2761, %v2759
    %v3942 = vpack.c.b16 %v2762, %v2760
    %v3943 = vpack.c.b16 %v2765, %v2763
    %v3944 = vpack.c.b16 %v2766, %v2764
    %v3945 = vpack.c.b16 %v2769, %v2767
    %v3946 = vpack.c.b16 %v2770, %v2768
    %v3947 = vpack.c.b16 %v2773, %v2771
    %v3948 = vpack.c.b16 %v2774, %v2772
    %v3949 = vpack.c.b16 %v2777, %v2775
    %v3950 = vpack.c.b16 %v2778, %v2776
    %v3951 = vpack.c.b16 %v2781, %v2779
    %v3952 = vpack.c.b16 %v2782, %v2780
    %v3953 = vpack.c.b16 %v2785, %v2783
    %v3954 = vpack.c.b16 %v2786, %v2784
    %v3955 = vpack.c.b16 %v2789, %v2787
    %v3956 = vpack.c.b16 %v2790, %v2788
    %v3957 = vpack.c.b16 %v2793, %v2791
    %v3958 = vpack.c.b16 %v2794, %v2792
    %v3959 = vpack.c.b16 %v2797, %v2795
    %v3960 = vpack.c.b16 %v2798, %v2796
    %v3961 = vpack.c.b16 %v2801, %v2799
    %v3962 = vpack.c.b16 %v2802, %v2800
    %v3963 = vpack.c.b16 %v2805, %v2803
    %v3964 = vpack.c.b16 %v2806, %v2804
    %v3965 = vpack.c.b16 %v2809, %v2807
    %v3966 = vpack.c.b16 %v2810, %v2808
    %v3967 = vpack.c.b16 %v2813, %v2811
    %v3968 = vpack.c.b16 %v2814, %v2812
    %v3969 = vpack.c.b16 %v2817, %v2815
    %v3970 = vpack.c.b16 %v2818, %v2816
    %v3971 = vpack.c.b16 %v2821, %v2819
    %v3972 = vpack.c.b16 %v2822, %v2820
    %v3973 = vpack.c.b16 %v2825, %v2823
    %v3974 = vpack.c.b16 %v2826, %v2824
    %v3975 = vpack.c.b16 %v2829, %v2827
    %v3976 = vpack.c.b16 %v2830, %v2828
    %v3977 = vpack.c.b16 %v2833, %v2831
    %v3978 = vpack.c.b16 %v2834, %v2832
    %v3979 = vpack.c.b16 %v2837, %v2835
    %v3980 = vpack.c.b16 %v2838, %v2836
    %v3981 = vpack.c.b16 %v2841, %v2839
    %v3982 = vpack.c.b16 %v2842, %v2840
    %v3983 = vpack.c.b16 %v2845, %v2843
    %v3984 = vpack.c.b16 %v2846, %v2844
    %v3985 = vpack.c.b16 %v2849, %v2847
    %v3986 = vpack.c.b16 %v2850, %v2848
    %v3987 = vpack.c.b16 %v2853, %v2851
    %v3988 = vpack.c.b16 %v2854, %v2852
    %v3989 = vpack.c.b16 %v2857, %v2855
    %v3990 = vpack.c.b16 %v2858, %v2856
    %v3991 = vpack.c.b16 %v2861, %v2859
    %v3992 = vpack.c.b16 %v2862, %v2860
    %v3993 = vpack.c.b16 %v2865, %v2863
    %v3994 = vpack.c.b16 %v2866, %v2864
    %v3995 = vpack.c.b16 %v2869, %v2867
    %v3996 = vpack.c.b16 %v2870, %v2868
    %v3997 = vpack.c.b16 %v2873, %v2871
    %v3998 = vpack.c.b16 %v2874, %v2872
    %v3999 = vpack.c.b16 %v2877, %v2875
    %v4000 = vpack.c.b16 %v2878, %v2876
    %v4001 = vpack.c.b16 %v2881, %v2879
    %v4002 = vpack.c.b16 %v2882, %v2880
    %v4003 = vpack.c.b16 %v2885, %v2883
    %v4004 = vpack.c.b16 %v2886, %v2884
    %v4005 = vpack.c.b16 %v2889, %v2887
    %v4006 = vpack.c.b16 %v2890, %v2888
    %v4007 = vpack.c.b16 %v2893, %v2891
    %v4008 = vpack.c.b16 %v2894, %v2892
    %v4009 = vpack.c.b16 %v2897, %v2895
    %v4010 = vpack.c.b16 %v2898, %v2896
    %v4011 = vpack.c.b16 %v2901, %v2899
    %v4012 = vpack.c.b16 %v2902, %v2900
    %v4013 = vpack.c.b16 %v2905, %v2903
    %v4014 = vpack.c.b16 %v2906, %v2904
    %v4015 = vpack.c.b16 %v2909, %v2907
    %v4016 = vpack.c.b16 %v2910, %v2908
    %v4017 = vpack.c.b16 %v2913, %v2911
    %v4018 = vpack.c.b16 %v2914, %v2912
    %v4019 = vpack.c.b16 %v2917, %v2915
    %v4020 = vpack.c.b16 %v2918, %v2916
    %v4021 = vpack.c.b16 %v2921, %v2919
    %v4022 = vpack.c.b16 %v2922, %v2920
    %v4023 = vpack.c.b16 %v2925, %v2923
    %v4024 = vpack.c.b16 %v2926, %v2924
    %v4025 = vpack.c.b16 %v2929, %v2927
    %v4026 = vpack.c.b16 %v2930, %v2928
    %v4027 = vpack.c.b16 %v2933, %v2931
    %v4028 = vpack.c.b16 %v2934, %v2932
    %v4029 = vpack.c.b16 %v2937, %v2935
    %v4030 = vpack.c.b16 %v2938, %v2936
    %v4031 = vpack.c.b16 %v2941, %v2939
    %v4032 = vpack.c.b16 %v2942, %v2940
    %v4033 = vpack.c.b16 %v2945, %v2943
    %v4034 = vpack.c.b16 %v2946, %v2944
    %v4035 = vpack.c.b16 %v2949, %v2947
    %v4036 = vpack.c.b16 %v2950, %v2948
    %v4037 = vpack.c.b16 %v2953, %v2951
    %v4038 = vpack.c.b16 %v2954, %v2952
    %v4039 = vpack.c.b16 %v2957, %v2955
    %v4040 = vpack.c.b16 %v2958, %v2956
    %v4041 = vpack.c.b16 %v2961, %v2959
    %v4042 = vpack.c.b16 %v2962, %v2960
    %v4043 = vpack.c.b16 %v2965, %v2963
    %v4044 = vpack.c.b16 %v2966, %v2964
    %v4045 = vpack.c.b16 %v2969, %v2967
    %v4046 = vpack.c.b16 %v2970, %v2968
    %v4047 = vpack.c.b16 %v2973, %v2971
    %v4048 = vpack.c.b16 %v2974, %v2972
    %v4049 = vpack.c.b16 %v2977, %v2975
    %v4050 = vpack.c.b16 %v2978, %v2976
    %v4051 = vpack.c.b16 %v2981, %v2979
    %v4052 = vpack.c.b16 %v2982, %v2980
    %v4053 = vpack.c.b16 %v2985, %v2983
    %v4054 = vpack.c.b16 %v2986, %v2984
    %v4055 = vpack.c.b16 %v2989, %v2987
    %v4056 = vpack.c.b16 %v2990, %v2988
    %v4057 = vpack.c.b16 %v2993, %v2991
    %v4058 = vpack.c.b16 %v2994, %v2992
    %v4059 = vpack.c.b16 %v2997, %v2995
    %v4060 = vpack.c.b16 %v2998, %v2996
    %v4061 = vpack.c.b16 %v3001, %v2999
    %v4062 = vpack.c.b16 %v3002, %v3000
    %v4063 = vpack.c.b16 %v3005, %v3003
    %v4064 = vpack.c.b16 %v3006, %v3004
    %v4065 = vpack.c.b16 %v3009, %v3007
    %v4066 = vpack.c.b16 %v3010, %v3008
    %v4067 = vpack.c.b16 %v3013, %v3011
    %v4068 = vpack.c.b16 %v3014, %v3012
    %v4069 = vpack.c.b16 %v3017, %v3015
    %v4070 = vpack.c.b16 %v3018, %v3016
    %v4071 = vpack.c.b16 %v3021, %v3019
    %v4072 = vpack.c.b16 %v3022, %v3020
    %v4073 = vpack.c.b16 %v3025, %v3023
    %v4074 = vpack.c.b16 %v3026, %v3024
    %v4075 = vpack.c.b16 %v3029, %v3027
    %v4076 = vpack.c.b16 %v3030, %v3028
    %v4077 = vpack.c.b16 %v3033, %v3031
    %v4078 = vpack.c.b16 %v3034, %v3032
    %v4079 = vpack.c.b16 %v3037, %v3035
    %v4080 = vpack.c.b16 %v3038, %v3036
    %v4081 = vpack.c.b16 %v3041, %v3039
    %v4082 = vpack.c.b16 %v3042, %v3040
    %v4083 = vpack.c.b16 %v3045, %v3043
    %v4084 = vpack.c.b16 %v3046, %v3044
    %v4085 = vpack.c.b16 %v3049, %v3047
    %v4086 = vpack.c.b16 %v3050, %v3048
    %v4087 = vpack.c.b16 %v3053, %v3051
    %v4088 = vpack.c.b16 %v3054, %v3052
    %v4089 = vpack.c.b16 %v3057, %v3055
    %v4090 = vpack.c.b16 %v3058, %v3056
    %v4091 = vpack.c.b16 %v3061, %v3059
    %v4092 = vpack.c.b16 %v3062, %v3060
    %v4093 = vpack.c.b16 %v3065, %v3063
    %v4094 = vpack.c.b16 %v3066, %v3064
    %v4095 = vpack.c.b16 %v3069, %v3067
    %v4096 = vpack.c.b16 %v3070, %v3068
    %v4097 = vpack.c.b16 %v3073, %v3071
    %v4098 = vpack.c.b16 %v3074, %v3072
    %v4099 = vpack.c.b16 %v3077, %v3075
    %v4100 = vpack.c.b16 %v3078, %v3076
    %v4101 = vpack.c.b16 %v3081, %v3079
    %v4102 = vpack.c.b16 %v3082, %v3080
    %v4103 = vpack.c.b16 %v3085, %v3083
    %v4104 = vpack.c.b16 %v3086, %v3084
    %v4105 = vpack.c.b16 %v3089, %v3087
    %v4106 = vpack.c.b16 %v3090, %v3088
    %v4107 = vpack.c.b16 %v3093, %v3091
    %v4108 = vpack.c.b16 %v3094, %v3092
    %v4109 = vpack.c.b16 %v3097, %v3095
    %v4110 = vpack.c.b16 %v3098, %v3096
    %v4111 = vpack.c.b16 %v3101, %v3099
    %v4112 = vpack.c.b16 %v3102, %v3100
    %v4113 = vpack.c.b16 %v3105, %v3103
    %v4114 = vpack.c.b16 %v3106, %v3104
    %v4115 = vpack.c.b16 %v3109, %v3107
    %v4116 = vpack.c.b16 %v3110, %v3108
    %v4117 = vpack.c.b16 %v3113, %v3111
    %v4118 = vpack.c.b16 %v3114, %v3112
    %v4119 = vpack.c.b16 %v3117, %v3115
    %v4120 = vpack.c.b16 %v3118, %v3116
    %v4121 = vpack.c.b16 %v3121, %v3119
    %v4122 = vpack.c.b16 %v3122, %v3120
    %v4123 = vpack.c.b16 %v3125, %v3123
    %v4124 = vpack.c.b16 %v3126, %v3124
    %v4125 = vpack.c.b16 %v3129, %v3127
    %v4126 = vpack.c.b16 %v3130, %v3128
    %v4127 = vpack.c.b16 %v3133, %v3131
    %v4128 = vpack.c.b16 %v3134, %v3132
    %v4129 = vpack.c.b16 %v3137, %v3135
    %v4130 = vpack.c.b16 %v3138, %v3136
    %v4131 = vpack.c.b16 %v3141, %v3139
    %v4132 = vpack.c.b16 %v3142, %v3140
    %v4133 = vpack.c.b16 %v3145, %v3143
    %v4134 = vpack.c.b16 %v3146, %v3144
    %v4135 = vpack.c.b16 %v3149, %v3147
    %v4136 = vpack.c.b16 %v3150, %v3148
    %v4137 = vpack.c.b16 %v3153, %v3151
    %v4138 = vpack.c.b16 %v3154, %v3152
    %v4139 = vpack.c.b16 %v3157, %v3155
    %v4140 = vpack.c.b16 %v3158, %v3156
    %v4141 = vpack.c.b16 %v3161, %v3159
    %v4142 = vpack.c.b16 %v3162, %v3160
    %v4143 = vpack.c.b16 %v3165, %v3163
    %v4144 = vpack.c.b16 %v3166, %v3164
    %v4145 = vpack.c.b16 %v3169, %v3167
    %v4146 = vpack.c.b16 %v3170, %v3168
    %v4147 = vpack.c.b16 %v3173, %v3171
    %v4148 = vpack.c.b16 %v3174, %v3172
    %v4149 = vpack.c.b16 %v3177, %v3175
    %v4150 = vpack.c.b16 %v3178, %v3176
    %v4151 = vpack.c.b16 %v3181, %v3179
    %v4152 = vpack.c.b16 %v3182, %v3180
    %v4153 = vpack.c.b16 %v3185, %v3183
    %v4154 = vpack.c.b16 %v3186, %v3184
    %v4155 = vpack.c.b16 %v3189, %v3187
    %v4156 = vpack.c.b16 %v3190, %v3188
    %v4157 = vpack.c.b16 %v3193, %v3191
    %v4158 = vpack.c.b16 %v3194, %v3192
    %v4159 = vpack.c.b16 %v3197, %v3195
    %v4160 = vpack.c.b16 %v3198, %v3196
    %v4161 = vpack.c.b16 %v3201, %v3199
    %v4162 = vpack.c.b16 %v3202, %v3200
    %v4163 = vpack.c.b16 %v3205, %v3203
    %v4164 = vpack.c.b16 %v3206, %v3204
    %v4165 = vpack.c.b16 %v3209, %v3207
    %v4166 = vpack.c.b16 %v3210, %v3208
    %v4167 = vpack.c.b16 %v3213, %v3211
    %v4168 = vpack.c.b16 %v3214, %v3212
    %v4169 = vpack.c.b16 %v3217, %v3215
    %v4170 = vpack.c.b16 %v3218, %v3216
    %v4171 = vpack.c.b16 %v3221, %v3219
    %v4172 = vpack.c.b16 %v3222, %v3220
    %v4173 = vpack.c.b16 %v3225, %v3223
    %v4174 = vpack.c.b16 %v3226, %v3224
    %v4175 = vpack.c.b16 %v3229, %v3227
    %v4176 = vpack.c.b16 %v3230, %v3228
    %v4177 = vpack.c.b16 %v3233, %v3231
    %v4178 = vpack.c.b16 %v3234, %v3232
    %v4179 = vpack.c.b16 %v3237, %v3235
    %v4180 = vpack.c.b16 %v3238, %v3236
    %v4181 = vpack.c.b16 %v3241, %v3239
    %v4182 = vpack.c.b16 %v3242, %v3240
    %v4183 = vpack.c.b16 %v3245, %v3243
    %v4184 = vpack.c.b16 %v3246, %v3244
    %v4185 = vpack.c.b16 %v3249, %v3247
    %v4186 = vpack.c.b16 %v3250, %v3248
    %v4187 = vpack.c.b16 %v3253, %v3251
    %v4188 = vpack.c.b16 %v3254, %v3252
    %v4189 = vpack.c.b16 %v3257, %v3255
    %v4190 = vpack.c.b16 %v3258, %v3256
    %v4191 = vpack.c.b16 %v3261, %v3259
    %v4192 = vpack.c.b16 %v3262, %v3260
    %v4193 = vpack.c.b16 %v3265, %v3263
    %v4194 = vpack.c.b16 %v3266, %v3264
    %v4195 = vpack.c.b16 %v3269, %v3267
    %v4196 = vpack.c.b16 %v3270, %v3268
    %v4197 = vpack.c.b16 %v3273, %v3271
    %v4198 = vpack.c.b16 %v3274, %v3272
    %v4199 = vpack.c.b16 %v3277, %v3275
    %v4200 = vpack.c.b16 %v3278, %v3276
    %v4201 = vpack.c.b16 %v3281, %v3279
    %v4202 = vpack.c.b16 %v3282, %v3280
    %v4203 = vpack.c.b16 %v3285, %v3283
    %v4204 = vpack.c.b16 %v3286, %v3284
    %v4205 = vpack.c.b16 %v3289, %v3287
    %v4206 = vpack.c.b16 %v3290, %v3288
    %v4207 = vpack.c.b16 %v3293, %v3291
    %v4208 = vpack.c.b16 %v3294, %v3292
    %v4209 = vpack.c.b16 %v3297, %v3295
    %v4210 = vpack.c.b16 %v3298, %v3296
    %v4211 = vpack.c.b16 %v3301, %v3299
    %v4212 = vpack.c.b16 %v3302, %v3300
    %v4213 = vpack.c.b16 %v3305, %v3303
    %v4214 = vpack.c.b16 %v3306, %v3304
    %v4215 = vpack.c.b16 %v3309, %v3307
    %v4216 = vpack.c.b16 %v3310, %v3308
    %v4217 = vpack.c.b16 %v3313, %v3311
    %v4218 = vpack.c.b16 %v3314, %v3312
    %v4219 = vpack.c.b16 %v3317, %v3315
    %v4220 = vpack.c.b16 %v3318, %v3316
    %v4221 = vpack.c.b16 %v3321, %v3319
    %v4222 = vpack.c.b16 %v3322, %v3320
    %v4223 = vpack.c.b16 %v3325, %v3323
    %v4224 = vpack.c.b16 %v3326, %v3324
    %v4225 = vpack.c.b16 %v3329, %v3327
    %v4226 = vpack.c.b16 %v3330, %v3328
    %v4227 = vpack.c.b16 %v3333, %v3331
    %v4228 = vpack.c.b16 %v3334, %v3332
    %v4229 = vpack.c.b16 %v3337, %v3335
    %v4230 = vpack.c.b16 %v3338, %v3336
    %v4231 = vpack.c.b16 %v3341, %v3339
    %v4232 = vpack.c.b16 %v3342, %v3340
    %v4233 = vpack.c.b16 %v3345, %v3343
    %v4234 = vpack.c.b16 %v3346, %v3344
    %v4235 = vpack.c.b16 %v3349, %v3347
    %v4236 = vpack.c.b16 %v3350, %v3348
    %v4237 = vpack.c.b16 %v3353, %v3351
    %v4238 = vpack.c.b16 %v3354, %v3352
    %v4239 = vpack.c.b16 %v3357, %v3355
    %v4240 = vpack.c.b16 %v3358, %v3356
    %v4241 = vpack.c.b16 %v3361, %v3359
    %v4242 = vpack.c.b16 %v3362, %v3360
    %v4243 = vpack.c.b16 %v3365, %v3363
    %v4244 = vpack.c.b16 %v3366, %v3364
    %v4245 = vpack.c.b16 %v3369, %v3367
    %v4246 = vpack.c.b16 %v3370, %v3368
    %v4247 = vpack.c.b16 %v3373, %v3371
    %v4248 = vpack.c.b16 %v3374, %v3372
    %v4249 = vpack.c.b16 %v3377, %v3375
    %v4250 = vpack.c.b16 %v3378, %v3376
    %v4251 = vpack.c.b16 %v3381, %v3379
    %v4252 = vpack.c.b16 %v3382, %v3380
    %v4253 = vpack.c.b16 %v3385, %v3383
    %v4254 = vpack.c.b16 %v3386, %v3384
    %v4255 = vpack.c.b16 %v3389, %v3387
    %v4256 = vpack.c.b16 %v3390, %v3388
    %v4257 = vpack.c.b16 %v3393, %v3391
    %v4258 = vpack.c.b16 %v3394, %v3392
    %v4259 = vpack.c.b16 %v3397, %v3395
    %v4260 = vpack.c.b16 %v3398, %v3396
    %v4261 = vpack.c.b16 %v3401, %v3399
    %v4262 = vpack.c.b16 %v3402, %v3400
    %v4263 = vpack.c.b16 %v3405, %v3403
    %v4264 = vpack.c.b16 %v3406, %v3404
    %v4265 = vpack.c.b16 %v3409, %v3407
    %v4266 = vpack.c.b16 %v3410, %v3408
    %v4267 = vpack.c.b16 %v3413, %v3411
    %v4268 = vpack.c.b16 %v3414, %v3412
    %v4269 = vpack.c.b16 %v3417, %v3415
    %v4270 = vpack.c.b16 %v3418, %v3416
    %v4271 = vpack.c.b16 %v3421, %v3419
    %v4272 = vpack.c.b16 %v3422, %v3420
    %v4273 = vpack.c.b16 %v3425, %v3423
    %v4274 = vpack.c.b16 %v3426, %v3424
    %v4275 = vpack.c.b16 %v3429, %v3427
    %v4276 = vpack.c.b16 %v3430, %v3428
    %v4277 = vpack.c.b16 %v3433, %v3431
    %v4278 = vpack.c.b16 %v3434, %v3432
    %v4279 = vpack.c.b16 %v3437, %v3435
    %v4280 = vpack.c.b16 %v3438, %v3436
    %v4281 = vpack.c.b16 %v3441, %v3439
    %v4282 = vpack.c.b16 %v3442, %v3440
    %v4283 = vpack.c.b16 %v3445, %v3443
    %v4284 = vpack.c.b16 %v3446, %v3444
    %v4285 = vpack.c.b16 %v3449, %v3447
    %v4286 = vpack.c.b16 %v3450, %v3448
    %v4287 = vpack.c.b16 %v3453, %v3451
    %v4288 = vpack.c.b16 %v3454, %v3452
    %v4289 = vpack.c.b16 %v3457, %v3455
    %v4290 = vpack.c.b16 %v3458, %v3456
    %v4291 = vpack.c.b16 %v3461, %v3459
    %v4292 = vpack.c.b16 %v3462, %v3460
    %v4293 = vpack.c.b16 %v3465, %v3463
    %v4294 = vpack.c.b16 %v3466, %v3464
    %v4295 = vpack.c.b16 %v3469, %v3467
    %v4296 = vpack.c.b16 %v3470, %v3468
    %v4297 = vpack.c.b16 %v3473, %v3471
    %v4298 = vpack.c.b16 %v3474, %v3472
    %v4299 = vpack.c.b16 %v3477, %v3475
    %v4300 = vpack.c.b16 %v3478, %v3476
    %v4301 = vpack.c.b16 %v3481, %v3479
    %v4302 = vpack.c.b16 %v3482, %v3480
    %v4303 = vpack.c.b16 %v3485, %v3483
    %v4304 = vpack.c.b16 %v3486, %v3484
    %v4305 = vpack.c.b16 %v3489, %v3487
    %v4306 = vpack.c.b16 %v3490, %v3488
    %v4307 = vpack.c.b16 %v3493, %v3491
    %v4308 = vpack.c.b16 %v3494, %v3492
    %v4309 = vpack.c.b16 %v3497, %v3495
    %v4310 = vpack.c.b16 %v3498, %v3496
    %v4311 = vpack.c.b16 %v3501, %v3499
    %v4312 = vpack.c.b16 %v3502, %v3500
    %v4313 = vpack.c.b16 %v3505, %v3503
    %v4314 = vpack.c.b16 %v3506, %v3504
    %v4315 = vpack.c.b16 %v3509, %v3507
    %v4316 = vpack.c.b16 %v3510, %v3508
    %v4317 = vpack.c.b16 %v3513, %v3511
    %v4318 = vpack.c.b16 %v3514, %v3512
    %v4319 = vpack.c.b16 %v3517, %v3515
    %v4320 = vpack.c.b16 %v3518, %v3516
    %v4321 = vpack.c.b16 %v3521, %v3519
    %v4322 = vpack.c.b16 %v3522, %v3520
    %v4323 = vpack.c.b16 %v3525, %v3523
    %v4324 = vpack.c.b16 %v3526, %v3524
    %v4325 = vpack.c.b16 %v3529, %v3527
    %v4326 = vpack.c.b16 %v3530, %v3528
    %v4327 = vpack.c.b16 %v3533, %v3531
    %v4328 = vpack.c.b16 %v3534, %v3532
    %v4329 = vpack.c.b16 %v3537, %v3535
    %v4330 = vpack.c.b16 %v3538, %v3536
    %v4331 = vpack.c.b16 %v3541, %v3539
    %v4332 = vpack.c.b16 %v3542, %v3540
    %v4333 = vpack.c.b16 %v3545, %v3543
    %v4334 = vpack.c.b16 %v3546, %v3544
    %v4335 = vpack.c.b16 %v3549, %v3547
    %v4336 = vpack.c.b16 %v3550, %v3548
    %v4337 = vpack.c.b16 %v3553, %v3551
    %v4338 = vpack.c.b16 %v3554, %v3552
    %v4339 = vpack.c.b16 %v3557, %v3555
    %v4340 = vpack.c.b16 %v3558, %v3556
    %v4341 = vpack.c.b16 %v3561, %v3559
    %v4342 = vpack.c.b16 %v3562, %v3560
    %v4343 = vpack.c.b16 %v3565, %v3563
    %v4344 = vpack.c.b16 %v3566, %v3564
    %v4345 = vpack.c.b16 %v3569, %v3567
    %v4346 = vpack.c.b16 %v3570, %v3568
    %v4347 = vpack.c.b16 %v3573, %v3571
    %v4348 = vpack.c.b16 %v3574, %v3572
    %v4349 = vpack.c.b16 %v3577, %v3575
    %v4350 = vpack.c.b16 %v3578, %v3576
    %v4351 = vpack.c.b16 %v3581, %v3579
    %v4352 = vpack.c.b16 %v3582, %v3580
    %v4353 = vpack.c.b16 %v3585, %v3583
    %v4354 = vpack.c.b16 %v3586, %v3584
    %5123 = vmatprep.subr.bf16.mxu0 %v3588
    %5124 = vmatpush1.bf16.msra.mxu0 %v3587
    %5125 = vmatprep.subr.bf16.mxu0 %v3590
    %5126 = vmatpush1.bf16.msra.mxu0 %v3589
    %5127 = vmatprep.subr.bf16.mxu0 %v3592
    %5128 = vmatpush1.bf16.msra.mxu0 %v3591
    %5129 = vmatprep.subr.bf16.mxu0 %v3594
    %5130 = vmatpush1.bf16.msra.mxu0 %v3593
    %5131 = vmatprep.subr.bf16.mxu0 %v3596
    %5132 = vmatpush1.bf16.msra.mxu0 %v3595
    %5133 = vmatprep.subr.bf16.mxu0 %v3598
    %5134 = vmatpush1.bf16.msra.mxu0 %v3597
    %5135 = vmatprep.subr.bf16.mxu0 %v3600
    %5136 = vmatpush1.bf16.msra.mxu0 %v3599
    %5137 = vmatprep.subr.bf16.mxu0 %v3602
    %5138 = vmatpush1.bf16.msra.mxu0 %v3601
    %5139 = vmatprep.subr.bf16.mxu0 %v3604
    %5140 = vmatpush1.bf16.msra.mxu0 %v3603
    %5141 = vmatprep.subr.bf16.mxu0 %v3606
    %5142 = vmatpush1.bf16.msra.mxu0 %v3605
    %5143 = vmatprep.subr.bf16.mxu0 %v3608
    %5144 = vmatpush1.bf16.msra.mxu0 %v3607
    %5145 = vmatprep.subr.bf16.mxu0 %v3610
    %5146 = vmatpush1.bf16.msra.mxu0 %v3609
    %5147 = vmatprep.subr.bf16.mxu0 %v3612
    %5148 = vmatpush1.bf16.msra.mxu0 %v3611
    %5149 = vmatprep.subr.bf16.mxu0 %v3614
    %5150 = vmatpush1.bf16.msra.mxu0 %v3613
    %5151 = vmatprep.subr.bf16.mxu0 %v3616
    %5152 = vmatpush1.bf16.msra.mxu0 %v3615
    %5153 = vmatprep.subr.bf16.mxu0 %v3618
    %5154 = vmatpush1.bf16.msra.mxu0 %v3617
    %5155 = vmatprep.mubr.bf16.mxu0 %v1188
    %5156 = vmatmul.mubr.bf16.gmra.mrb[0].mxu0 %v1187
    %v5157 = vpop.f32.mrb[0].mxu0
    %v5158 = vadd.f32 0.0, %v5157
    %v5159 = vpop.f32.mrb[0].mxu0
    %v5160 = vadd.f32 0.0, %v5159
    %v5161 = vpop.f32.mrb[0].mxu0
    %v5162 = vpop.f32.mrb[0].mxu0
    %5163 = vdwg.mxu0
    %5164 = vmatprep.subr.bf16.mxu0 %v3620
    %5165 = vmatpush1.bf16.msra.mxu0 %v3619
    %5166 = vmatprep.subr.bf16.mxu0 %v3622
    %5167 = vmatpush1.bf16.msra.mxu0 %v3621
    %5168 = vmatprep.subr.bf16.mxu0 %v3624
    %5169 = vmatpush1.bf16.msra.mxu0 %v3623
    %5170 = vmatprep.subr.bf16.mxu0 %v3626
    %5171 = vmatpush1.bf16.msra.mxu0 %v3625
    %5172 = vmatprep.subr.bf16.mxu0 %v3628
    %5173 = vmatpush1.bf16.msra.mxu0 %v3627
    %5174 = vmatprep.subr.bf16.mxu0 %v3630
    %5175 = vmatpush1.bf16.msra.mxu0 %v3629
    %5176 = vmatprep.subr.bf16.mxu0 %v3632
    %5177 = vmatpush1.bf16.msra.mxu0 %v3631
    %5178 = vmatprep.subr.bf16.mxu0 %v3634
    %5179 = vmatpush1.bf16.msra.mxu0 %v3633
    %5180 = vmatprep.subr.bf16.mxu0 %v3636
    %5181 = vmatpush1.bf16.msra.mxu0 %v3635
    %5182 = vmatprep.subr.bf16.mxu0 %v3638
    %5183 = vmatpush1.bf16.msra.mxu0 %v3637
    %5184 = vmatprep.subr.bf16.mxu0 %v3640
    %5185 = vmatpush1.bf16.msra.mxu0 %v3639
    %5186 = vmatprep.subr.bf16.mxu0 %v3642
    %5187 = vmatpush1.bf16.msra.mxu0 %v3641
    %5188 = vmatprep.subr.bf16.mxu0 %v3644
    %5189 = vmatpush1.bf16.msra.mxu0 %v3643
    %5190 = vmatprep.subr.bf16.mxu0 %v3646
    %5191 = vmatpush1.bf16.msra.mxu0 %v3645
    %5192 = vmatprep.subr.bf16.mxu0 %v3648
    %5193 = vmatpush1.bf16.msra.mxu0 %v3647
    %5194 = vmatprep.subr.bf16.mxu0 %v3650
    %5195 = vmatpush1.bf16.msra.mxu0 %v3649
    %5196 = vmatprep.mubr.bf16.mxu0 %v1190
    %5197 = vmatmul.mubr.bf16.gmra.mrb[0].mxu0 %v1189
    %v5198 = vpop.f32.mrb[0].mxu0
    %v5199 = vadd.f32 %v5158, %v5198
    %v5200 = vpop.f32.mrb[0].mxu0
    %v5201 = vadd.f32 %v5160, %v5200
    %v5202 = vpop.f32.mrb[0].mxu0
    %v5203 = vpop.f32.mrb[0].mxu0
    %5204 = vdwg.mxu0
    %5205 = vmatprep.subr.bf16.mxu0 %v3652
    %5206 = vmatpush1.bf16.msra.mxu0 %v3651
    %5207 = vmatprep.subr.bf16.mxu0 %v3654
    %5208 = vmatpush1.bf16.msra.mxu0 %v3653
    %5209 = vmatprep.subr.bf16.mxu0 %v3656
    %5210 = vmatpush1.bf16.msra.mxu0 %v3655
    %5211 = vmatprep.subr.bf16.mxu0 %v3658
    %5212 = vmatpush1.bf16.msra.mxu0 %v3657
    %5213 = vmatprep.subr.bf16.mxu0 %v3660
    %5214 = vmatpush1.bf16.msra.mxu0 %v3659
    %5215 = vmatprep.subr.bf16.mxu0 %v3662
    %5216 = vmatpush1.bf16.msra.mxu0 %v3661
    %5217 = vmatprep.subr.bf16.mxu0 %v3664
    %5218 = vmatpush1.bf16.msra.mxu0 %v3663
    %5219 = vmatprep.subr.bf16.mxu0 %v3666
    %5220 = vmatpush1.bf16.msra.mxu0 %v3665
    %5221 = vmatprep.subr.bf16.mxu0 %v3668
    %5222 = vmatpush1.bf16.msra.mxu0 %v3667
    %5223 = vmatprep.subr.bf16.mxu0 %v3670
    %5224 = vmatpush1.bf16.msra.mxu0 %v3669
    %5225 = vmatprep.subr.bf16.mxu0 %v3672
    %5226 = vmatpush1.bf16.msra.mxu0 %v3671
    %5227 = vmatprep.subr.bf16.mxu0 %v3674
    %5228 = vmatpush1.bf16.msra.mxu0 %v3673
    %5229 = vmatprep.subr.bf16.mxu0 %v3676
    %5230 = vmatpush1.bf16.msra.mxu0 %v3675
    %5231 = vmatprep.subr.bf16.mxu0 %v3678
    %5232 = vmatpush1.bf16.msra.mxu0 %v3677
    %5233 = vmatprep.subr.bf16.mxu0 %v3680
    %5234 = vmatpush1.bf16.msra.mxu0 %v3679
    %5235 = vmatprep.subr.bf16.mxu0 %v3682
    %5236 = vmatpush1.bf16.msra.mxu0 %v3681
    %5237 = vmatprep.mubr.bf16.mxu0 %v1192
    %5238 = vmatmul.mubr.bf16.gmra.mrb[0].mxu0 %v1191
    %v5239 = vpop.f32.mrb[0].mxu0
    %v5240 = vadd.f32 %v5199, %v5239
    %v5241 = vpop.f32.mrb[0].mxu0
    %v5242 = vadd.f32 %v5201, %v5241
    %v5243 = vpop.f32.mrb[0].mxu0
    %v5244 = vpop.f32.mrb[0].mxu0
    %5245 = vdwg.mxu0
    %5246 = vmatprep.subr.bf16.mxu0 %v3684
    %5247 = vmatpush1.bf16.msra.mxu0 %v3683
    %5248 = vmatprep.subr.bf16.mxu0 %v3686
    %5249 = vmatpush1.bf16.msra.mxu0 %v3685
    %5250 = vmatprep.subr.bf16.mxu0 %v3688
    %5251 = vmatpush1.bf16.msra.mxu0 %v3687
    %5252 = vmatprep.subr.bf16.mxu0 %v3690
    %5253 = vmatpush1.bf16.msra.mxu0 %v3689
    %5254 = vmatprep.subr.bf16.mxu0 %v3692
    %5255 = vmatpush1.bf16.msra.mxu0 %v3691
    %5256 = vmatprep.subr.bf16.mxu0 %v3694
    %5257 = vmatpush1.bf16.msra.mxu0 %v3693
    %5258 = vmatprep.subr.bf16.mxu0 %v3696
    %5259 = vmatpush1.bf16.msra.mxu0 %v3695
    %5260 = vmatprep.subr.bf16.mxu0 %v3698
    %5261 = vmatpush1.bf16.msra.mxu0 %v3697
    %5262 = vmatprep.subr.bf16.mxu0 %v3700
    %5263 = vmatpush1.bf16.msra.mxu0 %v3699
    %5264 = vmatprep.subr.bf16.mxu0 %v3702
    %5265 = vmatpush1.bf16.msra.mxu0 %v3701
    %5266 = vmatprep.subr.bf16.mxu0 %v3704
    %5267 = vmatpush1.bf16.msra.mxu0 %v3703
    %5268 = vmatprep.subr.bf16.mxu0 %v3706
    %5269 = vmatpush1.bf16.msra.mxu0 %v3705
    %5270 = vmatprep.subr.bf16.mxu0 %v3708
    %5271 = vmatpush1.bf16.msra.mxu0 %v3707
    %5272 = vmatprep.subr.bf16.mxu0 %v3710
    %5273 = vmatpush1.bf16.msra.mxu0 %v3709
    %5274 = vmatprep.subr.bf16.mxu0 %v3712
    %5275 = vmatpush1.bf16.msra.mxu0 %v3711
    %5276 = vmatprep.subr.bf16.mxu0 %v3714
    %5277 = vmatpush1.bf16.msra.mxu0 %v3713
    %5278 = vmatprep.mubr.bf16.mxu0 %v1194
    %5279 = vmatmul.mubr.bf16.gmra.mrb[0].mxu0 %v1193
    %v5280 = vpop.f32.mrb[0].mxu0
    %v5281 = vadd.f32 %v5240, %v5280
    %v5282 = vpop.f32.mrb[0].mxu0
    %v5283 = vadd.f32 %v5242, %v5282
    %v5284 = vpop.f32.mrb[0].mxu0
    %v5285 = vpop.f32.mrb[0].mxu0
    %5286 = vdwg.mxu0
    %5287 = vmatprep.subr.bf16.mxu0 %v3716
    %5288 = vmatpush1.bf16.msra.mxu0 %v3715
    %5289 = vmatprep.subr.bf16.mxu0 %v3718
    %5290 = vmatpush1.bf16.msra.mxu0 %v3717
    %5291 = vmatprep.subr.bf16.mxu0 %v3720
    %5292 = vmatpush1.bf16.msra.mxu0 %v3719
    %5293 = vmatprep.subr.bf16.mxu0 %v3722
    %5294 = vmatpush1.bf16.msra.mxu0 %v3721
    %5295 = vmatprep.subr.bf16.mxu0 %v3724
    %5296 = vmatpush1.bf16.msra.mxu0 %v3723
    %5297 = vmatprep.subr.bf16.mxu0 %v3726
    %5298 = vmatpush1.bf16.msra.mxu0 %v3725
    %5299 = vmatprep.subr.bf16.mxu0 %v3728
    %5300 = vmatpush1.bf16.msra.mxu0 %v3727
    %5301 = vmatprep.subr.bf16.mxu0 %v3730
    %5302 = vmatpush1.bf16.msra.mxu0 %v3729
    %5303 = vmatprep.subr.bf16.mxu0 %v3732
    %5304 = vmatpush1.bf16.msra.mxu0 %v3731
    %5305 = vmatprep.subr.bf16.mxu0 %v3734
    %5306 = vmatpush1.bf16.msra.mxu0 %v3733
    %5307 = vmatprep.subr.bf16.mxu0 %v3736
    %5308 = vmatpush1.bf16.msra.mxu0 %v3735
    %5309 = vmatprep.subr.bf16.mxu0 %v3738
    %5310 = vmatpush1.bf16.msra.mxu0 %v3737
    %5311 = vmatprep.subr.bf16.mxu0 %v3740
    %5312 = vmatpush1.bf16.msra.mxu0 %v3739
    %5313 = vmatprep.subr.bf16.mxu0 %v3742
    %5314 = vmatpush1.bf16.msra.mxu0 %v3741
    %5315 = vmatprep.subr.bf16.mxu0 %v3744
    %5316 = vmatpush1.bf16.msra.mxu0 %v3743
    %5317 = vmatprep.subr.bf16.mxu0 %v3746
    %5318 = vmatpush1.bf16.msra.mxu0 %v3745
    %5319 = vmatprep.mubr.bf16.mxu0 %v1196
    %5320 = vmatmul.mubr.bf16.gmra.mrb[0].mxu0 %v1195
    %v5321 = vpop.f32.mrb[0].mxu0
    %v5322 = vadd.f32 %v5281, %v5321
    %v5323 = vpop.f32.mrb[0].mxu0
    %v5324 = vadd.f32 %v5283, %v5323
    %v5325 = vpop.f32.mrb[0].mxu0
    %v5326 = vpop.f32.mrb[0].mxu0
    %5327 = vdwg.mxu0
    %5328 = vmatprep.subr.bf16.mxu0 %v3748
    %5329 = vmatpush1.bf16.msra.mxu0 %v3747
    %5330 = vmatprep.subr.bf16.mxu0 %v3750
    %5331 = vmatpush1.bf16.msra.mxu0 %v3749
    %5332 = vmatprep.subr.bf16.mxu0 %v3752
    %5333 = vmatpush1.bf16.msra.mxu0 %v3751
    %5334 = vmatprep.subr.bf16.mxu0 %v3754
    %5335 = vmatpush1.bf16.msra.mxu0 %v3753
    %5336 = vmatprep.subr.bf16.mxu0 %v3756
    %5337 = vmatpush1.bf16.msra.mxu0 %v3755
    %5338 = vmatprep.subr.bf16.mxu0 %v3758
    %5339 = vmatpush1.bf16.msra.mxu0 %v3757
    %5340 = vmatprep.subr.bf16.mxu0 %v3760
    %5341 = vmatpush1.bf16.msra.mxu0 %v3759
    %5342 = vmatprep.subr.bf16.mxu0 %v3762
    %5343 = vmatpush1.bf16.msra.mxu0 %v3761
    %5344 = vmatprep.subr.bf16.mxu0 %v3764
    %5345 = vmatpush1.bf16.msra.mxu0 %v3763
    %5346 = vmatprep.subr.bf16.mxu0 %v3766
    %5347 = vmatpush1.bf16.msra.mxu0 %v3765
    %5348 = vmatprep.subr.bf16.mxu0 %v3768
    %5349 = vmatpush1.bf16.msra.mxu0 %v3767
    %5350 = vmatprep.subr.bf16.mxu0 %v3770
    %5351 = vmatpush1.bf16.msra.mxu0 %v3769
    %5352 = vmatprep.subr.bf16.mxu0 %v3772
    %5353 = vmatpush1.bf16.msra.mxu0 %v3771
    %5354 = vmatprep.subr.bf16.mxu0 %v3774
    %5355 = vmatpush1.bf16.msra.mxu0 %v3773
    %5356 = vmatprep.subr.bf16.mxu0 %v3776
    %5357 = vmatpush1.bf16.msra.mxu0 %v3775
    %5358 = vmatprep.subr.bf16.mxu0 %v3778
    %5359 = vmatpush1.bf16.msra.mxu0 %v3777
    %5360 = vmatprep.mubr.bf16.mxu0 %v1198
    %5361 = vmatmul.mubr.bf16.gmra.mrb[0].mxu0 %v1197
    %v5362 = vpop.f32.mrb[0].mxu0
    %v5363 = vadd.f32 %v5322, %v5362
    %v5364 = vpop.f32.mrb[0].mxu0
    %v5365 = vadd.f32 %v5324, %v5364
    %v5366 = vpop.f32.mrb[0].mxu0
    %v5367 = vpop.f32.mrb[0].mxu0
    %5368 = vdwg.mxu0
    %5369 = vmatprep.subr.bf16.mxu0 %v3780
    %5370 = vmatpush1.bf16.msra.mxu0 %v3779
    %5371 = vmatprep.subr.bf16.mxu0 %v3782
    %5372 = vmatpush1.bf16.msra.mxu0 %v3781
    %5373 = vmatprep.subr.bf16.mxu0 %v3784
    %5374 = vmatpush1.bf16.msra.mxu0 %v3783
    %5375 = vmatprep.subr.bf16.mxu0 %v3786
    %5376 = vmatpush1.bf16.msra.mxu0 %v3785
    %5377 = vmatprep.subr.bf16.mxu0 %v3788
    %5378 = vmatpush1.bf16.msra.mxu0 %v3787
    %5379 = vmatprep.subr.bf16.mxu0 %v3790
    %5380 = vmatpush1.bf16.msra.mxu0 %v3789
    %5381 = vmatprep.subr.bf16.mxu0 %v3792
    %5382 = vmatpush1.bf16.msra.mxu0 %v3791
    %5383 = vmatprep.subr.bf16.mxu0 %v3794
    %5384 = vmatpush1.bf16.msra.mxu0 %v3793
    %5385 = vmatprep.subr.bf16.mxu0 %v3796
    %5386 = vmatpush1.bf16.msra.mxu0 %v3795
    %5387 = vmatprep.subr.bf16.mxu0 %v3798
    %5388 = vmatpush1.bf16.msra.mxu0 %v3797
    %5389 = vmatprep.subr.bf16.mxu0 %v3800
    %5390 = vmatpush1.bf16.msra.mxu0 %v3799
    %5391 = vmatprep.subr.bf16.mxu0 %v3802
    %5392 = vmatpush1.bf16.msra.mxu0 %v3801
    %5393 = vmatprep.subr.bf16.mxu0 %v3804
    %5394 = vmatpush1.bf16.msra.mxu0 %v3803
    %5395 = vmatprep.subr.bf16.mxu0 %v3806
    %5396 = vmatpush1.bf16.msra.mxu0 %v3805
    %5397 = vmatprep.subr.bf16.mxu0 %v3808
    %5398 = vmatpush1.bf16.msra.mxu0 %v3807
    %5399 = vmatprep.subr.bf16.mxu0 %v3810
    %5400 = vmatpush1.bf16.msra.mxu0 %v3809
    %5401 = vmatprep.mubr.bf16.mxu0 %v1200
    %5402 = vmatmul.mubr.bf16.gmra.mrb[0].mxu0 %v1199
    %v5403 = vpop.f32.mrb[0].mxu0
    %v5404 = vadd.f32 %v5363, %v5403
    %v5405 = vpop.f32.mrb[0].mxu0
    %v5406 = vadd.f32 %v5365, %v5405
    %v5407 = vpop.f32.mrb[0].mxu0
    %v5408 = vpop.f32.mrb[0].mxu0
    %5409 = vdwg.mxu0
    %5410 = vmatprep.subr.bf16.mxu0 %v3812
    %5411 = vmatpush1.bf16.msra.mxu0 %v3811
    %5412 = vmatprep.subr.bf16.mxu0 %v3814
    %5413 = vmatpush1.bf16.msra.mxu0 %v3813
    %5414 = vmatprep.subr.bf16.mxu0 %v3816
    %5415 = vmatpush1.bf16.msra.mxu0 %v3815
    %5416 = vmatprep.subr.bf16.mxu0 %v3818
    %5417 = vmatpush1.bf16.msra.mxu0 %v3817
    %5418 = vmatprep.subr.bf16.mxu0 %v3820
    %5419 = vmatpush1.bf16.msra.mxu0 %v3819
    %5420 = vmatprep.subr.bf16.mxu0 %v3822
    %5421 = vmatpush1.bf16.msra.mxu0 %v3821
    %5422 = vmatprep.subr.bf16.mxu0 %v3824
    %5423 = vmatpush1.bf16.msra.mxu0 %v3823
    %5424 = vmatprep.subr.bf16.mxu0 %v3826
    %5425 = vmatpush1.bf16.msra.mxu0 %v3825
    %5426 = vmatprep.subr.bf16.mxu0 %v3828
    %5427 = vmatpush1.bf16.msra.mxu0 %v3827
    %5428 = vmatprep.subr.bf16.mxu0 %v3830
    %5429 = vmatpush1.bf16.msra.mxu0 %v3829
    %5430 = vmatprep.subr.bf16.mxu0 %v3832
    %5431 = vmatpush1.bf16.msra.mxu0 %v3831
    %5432 = vmatprep.subr.bf16.mxu0 %v3834
    %5433 = vmatpush1.bf16.msra.mxu0 %v3833
    %5434 = vmatprep.subr.bf16.mxu0 %v3836
    %5435 = vmatpush1.bf16.msra.mxu0 %v3835
    %5436 = vmatprep.subr.bf16.mxu0 %v3838
    %5437 = vmatpush1.bf16.msra.mxu0 %v3837
    %5438 = vmatprep.subr.bf16.mxu0 %v3840
    %5439 = vmatpush1.bf16.msra.mxu0 %v3839
    %5440 = vmatprep.subr.bf16.mxu0 %v3842
    %5441 = vmatpush1.bf16.msra.mxu0 %v3841
    %5442 = vmatprep.mubr.bf16.mxu0 %v1202
    %5443 = vmatmul.mubr.bf16.gmra.mrb[0].mxu0 %v1201
    %v5444 = vpop.f32.mrb[0].mxu0
    %v5445 = vadd.f32 %v5404, %v5444
    %v5446 = vpop.f32.mrb[0].mxu0
    %v5447 = vadd.f32 %v5406, %v5446
    %v5448 = vpop.f32.mrb[0].mxu0
    %v5449 = vpop.f32.mrb[0].mxu0
    %5450 = vdwg.mxu0
    %5451 = vmatprep.subr.bf16.mxu0 %v3844
    %5452 = vmatpush1.bf16.msra.mxu0 %v3843
    %5453 = vmatprep.subr.bf16.mxu0 %v3846
    %5454 = vmatpush1.bf16.msra.mxu0 %v3845
    %5455 = vmatprep.subr.bf16.mxu0 %v3848
    %5456 = vmatpush1.bf16.msra.mxu0 %v3847
    %5457 = vmatprep.subr.bf16.mxu0 %v3850
    %5458 = vmatpush1.bf16.msra.mxu0 %v3849
    %5459 = vmatprep.subr.bf16.mxu0 %v3852
    %5460 = vmatpush1.bf16.msra.mxu0 %v3851
    %5461 = vmatprep.subr.bf16.mxu0 %v3854
    %5462 = vmatpush1.bf16.msra.mxu0 %v3853
    %5463 = vmatprep.subr.bf16.mxu0 %v3856
    %5464 = vmatpush1.bf16.msra.mxu0 %v3855
    %5465 = vmatprep.subr.bf16.mxu0 %v3858
    %5466 = vmatpush1.bf16.msra.mxu0 %v3857
    %5467 = vmatprep.subr.bf16.mxu0 %v3860
    %5468 = vmatpush1.bf16.msra.mxu0 %v3859
    %5469 = vmatprep.subr.bf16.mxu0 %v3862
    %5470 = vmatpush1.bf16.msra.mxu0 %v3861
    %5471 = vmatprep.subr.bf16.mxu0 %v3864
    %5472 = vmatpush1.bf16.msra.mxu0 %v3863
    %5473 = vmatprep.subr.bf16.mxu0 %v3866
    %5474 = vmatpush1.bf16.msra.mxu0 %v3865
    %5475 = vmatprep.subr.bf16.mxu0 %v3868
    %5476 = vmatpush1.bf16.msra.mxu0 %v3867
    %5477 = vmatprep.subr.bf16.mxu0 %v3870
    %5478 = vmatpush1.bf16.msra.mxu0 %v3869
    %5479 = vmatprep.subr.bf16.mxu0 %v3872
    %5480 = vmatpush1.bf16.msra.mxu0 %v3871
    %5481 = vmatprep.subr.bf16.mxu0 %v3874
    %5482 = vmatpush1.bf16.msra.mxu0 %v3873
    %5483 = vmatprep.mubr.bf16.mxu0 %v1204
    %5484 = vmatmul.mubr.bf16.gmra.mrb[0].mxu0 %v1203
    %v5485 = vpop.f32.mrb[0].mxu0
    %v5486 = vadd.f32 %v5445, %v5485
    %v5487 = vpop.f32.mrb[0].mxu0
    %v5488 = vadd.f32 %v5447, %v5487
    %v5489 = vpop.f32.mrb[0].mxu0
    %v5490 = vpop.f32.mrb[0].mxu0
    %5491 = vdwg.mxu0
    %5492 = vmatprep.subr.bf16.mxu0 %v3876
    %5493 = vmatpush1.bf16.msra.mxu0 %v3875
    %5494 = vmatprep.subr.bf16.mxu0 %v3878
    %5495 = vmatpush1.bf16.msra.mxu0 %v3877
    %5496 = vmatprep.subr.bf16.mxu0 %v3880
    %5497 = vmatpush1.bf16.msra.mxu0 %v3879
    %5498 = vmatprep.subr.bf16.mxu0 %v3882
    %5499 = vmatpush1.bf16.msra.mxu0 %v3881
    %5500 = vmatprep.subr.bf16.mxu0 %v3884
    %5501 = vmatpush1.bf16.msra.mxu0 %v3883
    %5502 = vmatprep.subr.bf16.mxu0 %v3886
    %5503 = vmatpush1.bf16.msra.mxu0 %v3885
    %5504 = vmatprep.subr.bf16.mxu0 %v3888
    %5505 = vmatpush1.bf16.msra.mxu0 %v3887
    %5506 = vmatprep.subr.bf16.mxu0 %v3890
    %5507 = vmatpush1.bf16.msra.mxu0 %v3889
    %5508 = vmatprep.subr.bf16.mxu0 %v3892
    %5509 = vmatpush1.bf16.msra.mxu0 %v3891
    %5510 = vmatprep.subr.bf16.mxu0 %v3894
    %5511 = vmatpush1.bf16.msra.mxu0 %v3893
    %5512 = vmatprep.subr.bf16.mxu0 %v3896
    %5513 = vmatpush1.bf16.msra.mxu0 %v3895
    %5514 = vmatprep.subr.bf16.mxu0 %v3898
    %5515 = vmatpush1.bf16.msra.mxu0 %v3897
    %5516 = vmatprep.subr.bf16.mxu0 %v3900
    %5517 = vmatpush1.bf16.msra.mxu0 %v3899
    %5518 = vmatprep.subr.bf16.mxu0 %v3902
    %5519 = vmatpush1.bf16.msra.mxu0 %v3901
    %5520 = vmatprep.subr.bf16.mxu0 %v3904
    %5521 = vmatpush1.bf16.msra.mxu0 %v3903
    %5522 = vmatprep.subr.bf16.mxu0 %v3906
    %5523 = vmatpush1.bf16.msra.mxu0 %v3905
    %5524 = vmatprep.mubr.bf16.mxu0 %v1206
    %5525 = vmatmul.mubr.bf16.gmra.mrb[0].mxu0 %v1205
    %v5526 = vpop.f32.mrb[0].mxu0
    %v5527 = vadd.f32 %v5486, %v5526
    %v5528 = vpop.f32.mrb[0].mxu0
    %v5529 = vadd.f32 %v5488, %v5528
    %v5530 = vpop.f32.mrb[0].mxu0
    %v5531 = vpop.f32.mrb[0].mxu0
    %5532 = vdwg.mxu0
    %5533 = vmatprep.subr.bf16.mxu0 %v3908
    %5534 = vmatpush1.bf16.msra.mxu0 %v3907
    %5535 = vmatprep.subr.bf16.mxu0 %v3910
    %5536 = vmatpush1.bf16.msra.mxu0 %v3909
    %5537 = vmatprep.subr.bf16.mxu0 %v3912
    %5538 = vmatpush1.bf16.msra.mxu0 %v3911
    %5539 = vmatprep.subr.bf16.mxu0 %v3914
    %5540 = vmatpush1.bf16.msra.mxu0 %v3913
    %5541 = vmatprep.subr.bf16.mxu0 %v3916
    %5542 = vmatpush1.bf16.msra.mxu0 %v3915
    %5543 = vmatprep.subr.bf16.mxu0 %v3918
    %5544 = vmatpush1.bf16.msra.mxu0 %v3917
    %5545 = vmatprep.subr.bf16.mxu0 %v3920
    %5546 = vmatpush1.bf16.msra.mxu0 %v3919
    %5547 = vmatprep.subr.bf16.mxu0 %v3922
    %5548 = vmatpush1.bf16.msra.mxu0 %v3921
    %5549 = vmatprep.subr.bf16.mxu0 %v3924
    %5550 = vmatpush1.bf16.msra.mxu0 %v3923
    %5551 = vmatprep.subr.bf16.mxu0 %v3926
    %5552 = vmatpush1.bf16.msra.mxu0 %v3925
    %5553 = vmatprep.subr.bf16.mxu0 %v3928
    %5554 = vmatpush1.bf16.msra.mxu0 %v3927
    %5555 = vmatprep.subr.bf16.mxu0 %v3930
    %5556 = vmatpush1.bf16.msra.mxu0 %v3929
    %5557 = vmatprep.subr.bf16.mxu0 %v3932
    %5558 = vmatpush1.bf16.msra.mxu0 %v3931
    %5559 = vmatprep.subr.bf16.mxu0 %v3934
    %5560 = vmatpush1.bf16.msra.mxu0 %v3933
    %5561 = vmatprep.subr.bf16.mxu0 %v3936
    %5562 = vmatpush1.bf16.msra.mxu0 %v3935
    %5563 = vmatprep.subr.bf16.mxu0 %v3938
    %5564 = vmatpush1.bf16.msra.mxu0 %v3937
    %5565 = vmatprep.mubr.bf16.mxu0 %v1208
    %5566 = vmatmul.mubr.bf16.gmra.mrb[0].mxu0 %v1207
    %v5567 = vpop.f32.mrb[0].mxu0
    %v5568 = vadd.f32 %v5527, %v5567
    %v5569 = vpop.f32.mrb[0].mxu0
    %v5570 = vadd.f32 %v5529, %v5569
    %v5571 = vpop.f32.mrb[0].mxu0
    %v5572 = vpop.f32.mrb[0].mxu0
    %5573 = vdwg.mxu0
    %5574 = vmatprep.subr.bf16.mxu0 %v3940
    %5575 = vmatpush1.bf16.msra.mxu0 %v3939
    %5576 = vmatprep.subr.bf16.mxu0 %v3942
    %5577 = vmatpush1.bf16.msra.mxu0 %v3941
    %5578 = vmatprep.subr.bf16.mxu0 %v3944
    %5579 = vmatpush1.bf16.msra.mxu0 %v3943
    %5580 = vmatprep.subr.bf16.mxu0 %v3946
    %5581 = vmatpush1.bf16.msra.mxu0 %v3945
    %5582 = vmatprep.subr.bf16.mxu0 %v3948
    %5583 = vmatpush1.bf16.msra.mxu0 %v3947
    %5584 = vmatprep.subr.bf16.mxu0 %v3950
    %5585 = vmatpush1.bf16.msra.mxu0 %v3949
    %5586 = vmatprep.subr.bf16.mxu0 %v3952
    %5587 = vmatpush1.bf16.msra.mxu0 %v3951
    %5588 = vmatprep.subr.bf16.mxu0 %v3954
    %5589 = vmatpush1.bf16.msra.mxu0 %v3953
    %5590 = vmatprep.subr.bf16.mxu0 %v3956
    %5591 = vmatpush1.bf16.msra.mxu0 %v3955
    %5592 = vmatprep.subr.bf16.mxu0 %v3958
    %5593 = vmatpush1.bf16.msra.mxu0 %v3957
    %5594 = vmatprep.subr.bf16.mxu0 %v3960
    %5595 = vmatpush1.bf16.msra.mxu0 %v3959
    %5596 = vmatprep.subr.bf16.mxu0 %v3962
    %5597 = vmatpush1.bf16.msra.mxu0 %v3961
    %5598 = vmatprep.subr.bf16.mxu0 %v3964
    %5599 = vmatpush1.bf16.msra.mxu0 %v3963
    %5600 = vmatprep.subr.bf16.mxu0 %v3966
    %5601 = vmatpush1.bf16.msra.mxu0 %v3965
    %5602 = vmatprep.subr.bf16.mxu0 %v3968
    %5603 = vmatpush1.bf16.msra.mxu0 %v3967
    %5604 = vmatprep.subr.bf16.mxu0 %v3970
    %5605 = vmatpush1.bf16.msra.mxu0 %v3969
    %5606 = vmatprep.mubr.bf16.mxu0 %v1210
    %5607 = vmatmul.mubr.bf16.gmra.mrb[0].mxu0 %v1209
    %v5608 = vpop.f32.mrb[0].mxu0
    %v5609 = vadd.f32 %v5568, %v5608
    %v5610 = vpop.f32.mrb[0].mxu0
    %v5611 = vadd.f32 %v5570, %v5610
    %v5612 = vpop.f32.mrb[0].mxu0
    %v5613 = vpop.f32.mrb[0].mxu0
    %5614 = vdwg.mxu0
    %5615 = vmatprep.subr.bf16.mxu0 %v3972
    %5616 = vmatpush1.bf16.msra.mxu0 %v3971
    %5617 = vmatprep.subr.bf16.mxu0 %v3974
    %5618 = vmatpush1.bf16.msra.mxu0 %v3973
    %5619 = vmatprep.subr.bf16.mxu0 %v3976
    %5620 = vmatpush1.bf16.msra.mxu0 %v3975
    %5621 = vmatprep.subr.bf16.mxu0 %v3978
    %5622 = vmatpush1.bf16.msra.mxu0 %v3977
    %5623 = vmatprep.subr.bf16.mxu0 %v3980
    %5624 = vmatpush1.bf16.msra.mxu0 %v3979
    %5625 = vmatprep.subr.bf16.mxu0 %v3982
    %5626 = vmatpush1.bf16.msra.mxu0 %v3981
    %5627 = vmatprep.subr.bf16.mxu0 %v3984
    %5628 = vmatpush1.bf16.msra.mxu0 %v3983
    %5629 = vmatprep.subr.bf16.mxu0 %v3986
    %5630 = vmatpush1.bf16.msra.mxu0 %v3985
    %5631 = vmatprep.subr.bf16.mxu0 %v3988
    %5632 = vmatpush1.bf16.msra.mxu0 %v3987
    %5633 = vmatprep.subr.bf16.mxu0 %v3990
    %5634 = vmatpush1.bf16.msra.mxu0 %v3989
    %5635 = vmatprep.subr.bf16.mxu0 %v3992
    %5636 = vmatpush1.bf16.msra.mxu0 %v3991
    %5637 = vmatprep.subr.bf16.mxu0 %v3994
    %5638 = vmatpush1.bf16.msra.mxu0 %v3993
    %5639 = vmatprep.subr.bf16.mxu0 %v3996
    %5640 = vmatpush1.bf16.msra.mxu0 %v3995
    %5641 = vmatprep.subr.bf16.mxu0 %v3998
    %5642 = vmatpush1.bf16.msra.mxu0 %v3997
    %5643 = vmatprep.subr.bf16.mxu0 %v4000
    %5644 = vmatpush1.bf16.msra.mxu0 %v3999
    %5645 = vmatprep.subr.bf16.mxu0 %v4002
    %5646 = vmatpush1.bf16.msra.mxu0 %v4001
    %5647 = vmatprep.mubr.bf16.mxu0 %v1212
    %5648 = vmatmul.mubr.bf16.gmra.mrb[0].mxu0 %v1211
    %v5649 = vpop.f32.mrb[0].mxu0
    %v5650 = vadd.f32 %v5609, %v5649
    %v5651 = vpop.f32.mrb[0].mxu0
    %v5652 = vadd.f32 %v5611, %v5651
    %v5653 = vpop.f32.mrb[0].mxu0
    %v5654 = vpop.f32.mrb[0].mxu0
    %5655 = vdwg.mxu0
    %5656 = vmatprep.subr.bf16.mxu0 %v4004
    %5657 = vmatpush1.bf16.msra.mxu0 %v4003
    %5658 = vmatprep.subr.bf16.mxu0 %v4006
    %5659 = vmatpush1.bf16.msra.mxu0 %v4005
    %5660 = vmatprep.subr.bf16.mxu0 %v4008
    %5661 = vmatpush1.bf16.msra.mxu0 %v4007
    %5662 = vmatprep.subr.bf16.mxu0 %v4010
    %5663 = vmatpush1.bf16.msra.mxu0 %v4009
    %5664 = vmatprep.subr.bf16.mxu0 %v4012
    %5665 = vmatpush1.bf16.msra.mxu0 %v4011
    %5666 = vmatprep.subr.bf16.mxu0 %v4014
    %5667 = vmatpush1.bf16.msra.mxu0 %v4013
    %5668 = vmatprep.subr.bf16.mxu0 %v4016
    %5669 = vmatpush1.bf16.msra.mxu0 %v4015
    %5670 = vmatprep.subr.bf16.mxu0 %v4018
    %5671 = vmatpush1.bf16.msra.mxu0 %v4017
    %5672 = vmatprep.subr.bf16.mxu0 %v4020
    %5673 = vmatpush1.bf16.msra.mxu0 %v4019
    %5674 = vmatprep.subr.bf16.mxu0 %v4022
    %5675 = vmatpush1.bf16.msra.mxu0 %v4021
    %5676 = vmatprep.subr.bf16.mxu0 %v4024
    %5677 = vmatpush1.bf16.msra.mxu0 %v4023
    %5678 = vmatprep.subr.bf16.mxu0 %v4026
    %5679 = vmatpush1.bf16.msra.mxu0 %v4025
    %5680 = vmatprep.subr.bf16.mxu0 %v4028
    %5681 = vmatpush1.bf16.msra.mxu0 %v4027
    %5682 = vmatprep.subr.bf16.mxu0 %v4030
    %5683 = vmatpush1.bf16.msra.mxu0 %v4029
    %5684 = vmatprep.subr.bf16.mxu0 %v4032
    %5685 = vmatpush1.bf16.msra.mxu0 %v4031
    %5686 = vmatprep.subr.bf16.mxu0 %v4034
    %5687 = vmatpush1.bf16.msra.mxu0 %v4033
    %5688 = vmatprep.mubr.bf16.mxu0 %v1214
    %5689 = vmatmul.mubr.bf16.gmra.mrb[0].mxu0 %v1213
    %v5690 = vpop.f32.mrb[0].mxu0
    %v5691 = vadd.f32 %v5650, %v5690
    %v5692 = vpop.f32.mrb[0].mxu0
    %v5693 = vadd.f32 %v5652, %v5692
    %v5694 = vpop.f32.mrb[0].mxu0
    %v5695 = vpop.f32.mrb[0].mxu0
    %5696 = vdwg.mxu0
    %5697 = vmatprep.subr.bf16.mxu0 %v4036
    %5698 = vmatpush1.bf16.msra.mxu0 %v4035
    %5699 = vmatprep.subr.bf16.mxu0 %v4038
    %5700 = vmatpush1.bf16.msra.mxu0 %v4037
    %5701 = vmatprep.subr.bf16.mxu0 %v4040
    %5702 = vmatpush1.bf16.msra.mxu0 %v4039
    %5703 = vmatprep.subr.bf16.mxu0 %v4042
    %5704 = vmatpush1.bf16.msra.mxu0 %v4041
    %5705 = vmatprep.subr.bf16.mxu0 %v4044
    %5706 = vmatpush1.bf16.msra.mxu0 %v4043
    %5707 = vmatprep.subr.bf16.mxu0 %v4046
    %5708 = vmatpush1.bf16.msra.mxu0 %v4045
    %5709 = vmatprep.subr.bf16.mxu0 %v4048
    %5710 = vmatpush1.bf16.msra.mxu0 %v4047
    %5711 = vmatprep.subr.bf16.mxu0 %v4050
    %5712 = vmatpush1.bf16.msra.mxu0 %v4049
    %5713 = vmatprep.subr.bf16.mxu0 %v4052
    %5714 = vmatpush1.bf16.msra.mxu0 %v4051
    %5715 = vmatprep.subr.bf16.mxu0 %v4054
    %5716 = vmatpush1.bf16.msra.mxu0 %v4053
    %5717 = vmatprep.subr.bf16.mxu0 %v4056
    %5718 = vmatpush1.bf16.msra.mxu0 %v4055
    %5719 = vmatprep.subr.bf16.mxu0 %v4058
    %5720 = vmatpush1.bf16.msra.mxu0 %v4057
    %5721 = vmatprep.subr.bf16.mxu0 %v4060
    %5722 = vmatpush1.bf16.msra.mxu0 %v4059
    %5723 = vmatprep.subr.bf16.mxu0 %v4062
    %5724 = vmatpush1.bf16.msra.mxu0 %v4061
    %5725 = vmatprep.subr.bf16.mxu0 %v4064
    %5726 = vmatpush1.bf16.msra.mxu0 %v4063
    %5727 = vmatprep.subr.bf16.mxu0 %v4066
    %5728 = vmatpush1.bf16.msra.mxu0 %v4065
    %5729 = vmatprep.mubr.bf16.mxu0 %v1216
    %5730 = vmatmul.mubr.bf16.gmra.mrb[0].mxu0 %v1215
    %v5731 = vpop.f32.mrb[0].mxu0
    %v5732 = vadd.f32 %v5691, %v5731
    %v5733 = vpop.f32.mrb[0].mxu0
    %v5734 = vadd.f32 %v5693, %v5733
    %v5735 = vpop.f32.mrb[0].mxu0
    %v5736 = vpop.f32.mrb[0].mxu0
    %5737 = vdwg.mxu0
    %5738 = vmatprep.subr.bf16.mxu0 %v4068
    %5739 = vmatpush1.bf16.msra.mxu0 %v4067
    %5740 = vmatprep.subr.bf16.mxu0 %v4070
    %5741 = vmatpush1.bf16.msra.mxu0 %v4069
    %5742 = vmatprep.subr.bf16.mxu0 %v4072
    %5743 = vmatpush1.bf16.msra.mxu0 %v4071
    %5744 = vmatprep.subr.bf16.mxu0 %v4074
    %5745 = vmatpush1.bf16.msra.mxu0 %v4073
    %5746 = vmatprep.subr.bf16.mxu0 %v4076
    %5747 = vmatpush1.bf16.msra.mxu0 %v4075
    %5748 = vmatprep.subr.bf16.mxu0 %v4078
    %5749 = vmatpush1.bf16.msra.mxu0 %v4077
    %5750 = vmatprep.subr.bf16.mxu0 %v4080
    %5751 = vmatpush1.bf16.msra.mxu0 %v4079
    %5752 = vmatprep.subr.bf16.mxu0 %v4082
    %5753 = vmatpush1.bf16.msra.mxu0 %v4081
    %5754 = vmatprep.subr.bf16.mxu0 %v4084
    %5755 = vmatpush1.bf16.msra.mxu0 %v4083
    %5756 = vmatprep.subr.bf16.mxu0 %v4086
    %5757 = vmatpush1.bf16.msra.mxu0 %v4085
    %5758 = vmatprep.subr.bf16.mxu0 %v4088
    %5759 = vmatpush1.bf16.msra.mxu0 %v4087
    %5760 = vmatprep.subr.bf16.mxu0 %v4090
    %5761 = vmatpush1.bf16.msra.mxu0 %v4089
    %5762 = vmatprep.subr.bf16.mxu0 %v4092
    %5763 = vmatpush1.bf16.msra.mxu0 %v4091
    %5764 = vmatprep.subr.bf16.mxu0 %v4094
    %5765 = vmatpush1.bf16.msra.mxu0 %v4093
    %5766 = vmatprep.subr.bf16.mxu0 %v4096
    %5767 = vmatpush1.bf16.msra.mxu0 %v4095
    %5768 = vmatprep.subr.bf16.mxu0 %v4098
    %5769 = vmatpush1.bf16.msra.mxu0 %v4097
    %5770 = vmatprep.mubr.bf16.mxu0 %v1218
    %5771 = vmatmul.mubr.bf16.gmra.mrb[0].mxu0 %v1217
    %v5772 = vpop.f32.mrb[0].mxu0
    %v5773 = vadd.f32 %v5732, %v5772
    %v5774 = vpop.f32.mrb[0].mxu0
    %v5775 = vadd.f32 %v5734, %v5774
    %v5776 = vpop.f32.mrb[0].mxu0
    %v5777 = vpop.f32.mrb[0].mxu0
    %5778 = vdwg.mxu0
    %5779 = vmatprep.subr.bf16.mxu0 %v4100
    %5780 = vmatpush1.bf16.msra.mxu0 %v4099
    %5781 = vmatprep.subr.bf16.mxu0 %v4102
    %5782 = vmatpush1.bf16.msra.mxu0 %v4101
    %5783 = vmatprep.subr.bf16.mxu0 %v4104
    %5784 = vmatpush1.bf16.msra.mxu0 %v4103
    %5785 = vmatprep.subr.bf16.mxu0 %v4106
    %5786 = vmatpush1.bf16.msra.mxu0 %v4105
    %5787 = vmatprep.subr.bf16.mxu0 %v4108
    %5788 = vmatpush1.bf16.msra.mxu0 %v4107
    %5789 = vmatprep.subr.bf16.mxu0 %v4110
    %5790 = vmatpush1.bf16.msra.mxu0 %v4109
    %5791 = vmatprep.subr.bf16.mxu0 %v4112
    %5792 = vmatpush1.bf16.msra.mxu0 %v4111
    %5793 = vmatprep.subr.bf16.mxu0 %v4114
    %5794 = vmatpush1.bf16.msra.mxu0 %v4113
    %5795 = vmatprep.subr.bf16.mxu0 %v4116
    %5796 = vmatpush1.bf16.msra.mxu0 %v4115
    %5797 = vmatprep.subr.bf16.mxu0 %v4118
    %5798 = vmatpush1.bf16.msra.mxu0 %v4117
    %5799 = vmatprep.subr.bf16.mxu0 %v4120
    %5800 = vmatpush1.bf16.msra.mxu0 %v4119
    %5801 = vmatprep.subr.bf16.mxu0 %v4122
    %5802 = vmatpush1.bf16.msra.mxu0 %v4121
    %5803 = vmatprep.subr.bf16.mxu0 %v4124
    %5804 = vmatpush1.bf16.msra.mxu0 %v4123
    %5805 = vmatprep.subr.bf16.mxu0 %v4126
    %5806 = vmatpush1.bf16.msra.mxu0 %v4125
    %5807 = vmatprep.subr.bf16.mxu0 %v4128
    %5808 = vmatpush1.bf16.msra.mxu0 %v4127
    %5809 = vmatprep.subr.bf16.mxu0 %v4130
    %5810 = vmatpush1.bf16.msra.mxu0 %v4129
    %5811 = vmatprep.mubr.bf16.mxu0 %v1220
    %5812 = vmatmul.mubr.bf16.gmra.mrb[0].mxu0 %v1219
    %v5813 = vpop.f32.mrb[0].mxu0
    %v5814 = vadd.f32 %v5773, %v5813
    %v5815 = vpop.f32.mrb[0].mxu0
    %v5816 = vadd.f32 %v5775, %v5815
    %v5817 = vpop.f32.mrb[0].mxu0
    %v5818 = vpop.f32.mrb[0].mxu0
    %5819 = vdwg.mxu0
    %5820 = vmatprep.subr.bf16.mxu0 %v4132
    %5821 = vmatpush1.bf16.msra.mxu0 %v4131
    %5822 = vmatprep.subr.bf16.mxu0 %v4134
    %5823 = vmatpush1.bf16.msra.mxu0 %v4133
    %5824 = vmatprep.subr.bf16.mxu0 %v4136
    %5825 = vmatpush1.bf16.msra.mxu0 %v4135
    %5826 = vmatprep.subr.bf16.mxu0 %v4138
    %5827 = vmatpush1.bf16.msra.mxu0 %v4137
    %5828 = vmatprep.subr.bf16.mxu0 %v4140
    %5829 = vmatpush1.bf16.msra.mxu0 %v4139
    %5830 = vmatprep.subr.bf16.mxu0 %v4142
    %5831 = vmatpush1.bf16.msra.mxu0 %v4141
    %5832 = vmatprep.subr.bf16.mxu0 %v4144
    %5833 = vmatpush1.bf16.msra.mxu0 %v4143
    %5834 = vmatprep.subr.bf16.mxu0 %v4146
    %5835 = vmatpush1.bf16.msra.mxu0 %v4145
    %5836 = vmatprep.subr.bf16.mxu0 %v4148
    %5837 = vmatpush1.bf16.msra.mxu0 %v4147
    %5838 = vmatprep.subr.bf16.mxu0 %v4150
    %5839 = vmatpush1.bf16.msra.mxu0 %v4149
    %5840 = vmatprep.subr.bf16.mxu0 %v4152
    %5841 = vmatpush1.bf16.msra.mxu0 %v4151
    %5842 = vmatprep.subr.bf16.mxu0 %v4154
    %5843 = vmatpush1.bf16.msra.mxu0 %v4153
    %5844 = vmatprep.subr.bf16.mxu0 %v4156
    %5845 = vmatpush1.bf16.msra.mxu0 %v4155
    %5846 = vmatprep.subr.bf16.mxu0 %v4158
    %5847 = vmatpush1.bf16.msra.mxu0 %v4157
    %5848 = vmatprep.subr.bf16.mxu0 %v4160
    %5849 = vmatpush1.bf16.msra.mxu0 %v4159
    %5850 = vmatprep.subr.bf16.mxu0 %v4162
    %5851 = vmatpush1.bf16.msra.mxu0 %v4161
    %5852 = vmatprep.mubr.bf16.mxu0 %v1222
    %5853 = vmatmul.mubr.bf16.gmra.mrb[0].mxu0 %v1221
    %v5854 = vpop.f32.mrb[0].mxu0
    %v5855 = vadd.f32 %v5814, %v5854
    %v5856 = vpop.f32.mrb[0].mxu0
    %v5857 = vadd.f32 %v5816, %v5856
    %v5858 = vpop.f32.mrb[0].mxu0
    %v5859 = vpop.f32.mrb[0].mxu0
    %5860 = vdwg.mxu0
    %5861 = vmatprep.subr.bf16.mxu0 %v4164
    %5862 = vmatpush1.bf16.msra.mxu0 %v4163
    %5863 = vmatprep.subr.bf16.mxu0 %v4166
    %5864 = vmatpush1.bf16.msra.mxu0 %v4165
    %5865 = vmatprep.subr.bf16.mxu0 %v4168
    %5866 = vmatpush1.bf16.msra.mxu0 %v4167
    %5867 = vmatprep.subr.bf16.mxu0 %v4170
    %5868 = vmatpush1.bf16.msra.mxu0 %v4169
    %5869 = vmatprep.subr.bf16.mxu0 %v4172
    %5870 = vmatpush1.bf16.msra.mxu0 %v4171
    %5871 = vmatprep.subr.bf16.mxu0 %v4174
    %5872 = vmatpush1.bf16.msra.mxu0 %v4173
    %5873 = vmatprep.subr.bf16.mxu0 %v4176
    %5874 = vmatpush1.bf16.msra.mxu0 %v4175
    %5875 = vmatprep.subr.bf16.mxu0 %v4178
    %5876 = vmatpush1.bf16.msra.mxu0 %v4177
    %5877 = vmatprep.subr.bf16.mxu0 %v4180
    %5878 = vmatpush1.bf16.msra.mxu0 %v4179
    %5879 = vmatprep.subr.bf16.mxu0 %v4182
    %5880 = vmatpush1.bf16.msra.mxu0 %v4181
    %5881 = vmatprep.subr.bf16.mxu0 %v4184
    %5882 = vmatpush1.bf16.msra.mxu0 %v4183
    %5883 = vmatprep.subr.bf16.mxu0 %v4186
    %5884 = vmatpush1.bf16.msra.mxu0 %v4185
    %5885 = vmatprep.subr.bf16.mxu0 %v4188
    %5886 = vmatpush1.bf16.msra.mxu0 %v4187
    %5887 = vmatprep.subr.bf16.mxu0 %v4190
    %5888 = vmatpush1.bf16.msra.mxu0 %v4189
    %5889 = vmatprep.subr.bf16.mxu0 %v4192
    %5890 = vmatpush1.bf16.msra.mxu0 %v4191
    %5891 = vmatprep.subr.bf16.mxu0 %v4194
    %5892 = vmatpush1.bf16.msra.mxu0 %v4193
    %5893 = vmatprep.mubr.bf16.mxu0 %v1224
    %5894 = vmatmul.mubr.bf16.gmra.mrb[0].mxu0 %v1223
    %v5895 = vpop.f32.mrb[0].mxu0
    %v5896 = vadd.f32 %v5855, %v5895
    %v5897 = vpop.f32.mrb[0].mxu0
    %v5898 = vadd.f32 %v5857, %v5897
    %v5899 = vpop.f32.mrb[0].mxu0
    %v5900 = vpop.f32.mrb[0].mxu0
    %5901 = vdwg.mxu0
    %5902 = vmatprep.subr.bf16.mxu0 %v4196
    %5903 = vmatpush1.bf16.msra.mxu0 %v4195
    %5904 = vmatprep.subr.bf16.mxu0 %v4198
    %5905 = vmatpush1.bf16.msra.mxu0 %v4197
    %5906 = vmatprep.subr.bf16.mxu0 %v4200
    %5907 = vmatpush1.bf16.msra.mxu0 %v4199
    %5908 = vmatprep.subr.bf16.mxu0 %v4202
    %5909 = vmatpush1.bf16.msra.mxu0 %v4201
    %5910 = vmatprep.subr.bf16.mxu0 %v4204
    %5911 = vmatpush1.bf16.msra.mxu0 %v4203
    %5912 = vmatprep.subr.bf16.mxu0 %v4206
    %5913 = vmatpush1.bf16.msra.mxu0 %v4205
    %5914 = vmatprep.subr.bf16.mxu0 %v4208
    %5915 = vmatpush1.bf16.msra.mxu0 %v4207
    %5916 = vmatprep.subr.bf16.mxu0 %v4210
    %5917 = vmatpush1.bf16.msra.mxu0 %v4209
    %5918 = vmatprep.subr.bf16.mxu0 %v4212
    %5919 = vmatpush1.bf16.msra.mxu0 %v4211
    %5920 = vmatprep.subr.bf16.mxu0 %v4214
    %5921 = vmatpush1.bf16.msra.mxu0 %v4213
    %5922 = vmatprep.subr.bf16.mxu0 %v4216
    %5923 = vmatpush1.bf16.msra.mxu0 %v4215
    %5924 = vmatprep.subr.bf16.mxu0 %v4218
    %5925 = vmatpush1.bf16.msra.mxu0 %v4217
    %5926 = vmatprep.subr.bf16.mxu0 %v4220
    %5927 = vmatpush1.bf16.msra.mxu0 %v4219
    %5928 = vmatprep.subr.bf16.mxu0 %v4222
    %5929 = vmatpush1.bf16.msra.mxu0 %v4221
    %5930 = vmatprep.subr.bf16.mxu0 %v4224
    %5931 = vmatpush1.bf16.msra.mxu0 %v4223
    %5932 = vmatprep.subr.bf16.mxu0 %v4226
    %5933 = vmatpush1.bf16.msra.mxu0 %v4225
    %5934 = vmatprep.mubr.bf16.mxu0 %v1226
    %5935 = vmatmul.mubr.bf16.gmra.mrb[0].mxu0 %v1225
    %v5936 = vpop.f32.mrb[0].mxu0
    %v5937 = vadd.f32 %v5896, %v5936
    %v5938 = vpop.f32.mrb[0].mxu0
    %v5939 = vadd.f32 %v5898, %v5938
    %v5940 = vpop.f32.mrb[0].mxu0
    %v5941 = vpop.f32.mrb[0].mxu0
    %5942 = vdwg.mxu0
    %5943 = vmatprep.subr.bf16.mxu0 %v4228
    %5944 = vmatpush1.bf16.msra.mxu0 %v4227
    %5945 = vmatprep.subr.bf16.mxu0 %v4230
    %5946 = vmatpush1.bf16.msra.mxu0 %v4229
    %5947 = vmatprep.subr.bf16.mxu0 %v4232
    %5948 = vmatpush1.bf16.msra.mxu0 %v4231
    %5949 = vmatprep.subr.bf16.mxu0 %v4234
    %5950 = vmatpush1.bf16.msra.mxu0 %v4233
    %5951 = vmatprep.subr.bf16.mxu0 %v4236
    %5952 = vmatpush1.bf16.msra.mxu0 %v4235
    %5953 = vmatprep.subr.bf16.mxu0 %v4238
    %5954 = vmatpush1.bf16.msra.mxu0 %v4237
    %5955 = vmatprep.subr.bf16.mxu0 %v4240
    %5956 = vmatpush1.bf16.msra.mxu0 %v4239
    %5957 = vmatprep.subr.bf16.mxu0 %v4242
    %5958 = vmatpush1.bf16.msra.mxu0 %v4241
    %5959 = vmatprep.subr.bf16.mxu0 %v4244
    %5960 = vmatpush1.bf16.msra.mxu0 %v4243
    %5961 = vmatprep.subr.bf16.mxu0 %v4246
    %5962 = vmatpush1.bf16.msra.mxu0 %v4245
    %5963 = vmatprep.subr.bf16.mxu0 %v4248
    %5964 = vmatpush1.bf16.msra.mxu0 %v4247
    %5965 = vmatprep.subr.bf16.mxu0 %v4250
    %5966 = vmatpush1.bf16.msra.mxu0 %v4249
    %5967 = vmatprep.subr.bf16.mxu0 %v4252
    %5968 = vmatpush1.bf16.msra.mxu0 %v4251
    %5969 = vmatprep.subr.bf16.mxu0 %v4254
    %5970 = vmatpush1.bf16.msra.mxu0 %v4253
    %5971 = vmatprep.subr.bf16.mxu0 %v4256
    %5972 = vmatpush1.bf16.msra.mxu0 %v4255
    %5973 = vmatprep.subr.bf16.mxu0 %v4258
    %5974 = vmatpush1.bf16.msra.mxu0 %v4257
    %5975 = vmatprep.mubr.bf16.mxu0 %v1228
    %5976 = vmatmul.mubr.bf16.gmra.mrb[0].mxu0 %v1227
    %v5977 = vpop.f32.mrb[0].mxu0
    %v5978 = vadd.f32 %v5937, %v5977
    %v5979 = vpop.f32.mrb[0].mxu0
    %v5980 = vadd.f32 %v5939, %v5979
    %v5981 = vpop.f32.mrb[0].mxu0
    %v5982 = vpop.f32.mrb[0].mxu0
    %5983 = vdwg.mxu0
    %5984 = vmatprep.subr.bf16.mxu0 %v4260
    %5985 = vmatpush1.bf16.msra.mxu0 %v4259
    %5986 = vmatprep.subr.bf16.mxu0 %v4262
    %5987 = vmatpush1.bf16.msra.mxu0 %v4261
    %5988 = vmatprep.subr.bf16.mxu0 %v4264
    %5989 = vmatpush1.bf16.msra.mxu0 %v4263
    %5990 = vmatprep.subr.bf16.mxu0 %v4266
    %5991 = vmatpush1.bf16.msra.mxu0 %v4265
    %5992 = vmatprep.subr.bf16.mxu0 %v4268
    %5993 = vmatpush1.bf16.msra.mxu0 %v4267
    %5994 = vmatprep.subr.bf16.mxu0 %v4270
    %5995 = vmatpush1.bf16.msra.mxu0 %v4269
    %5996 = vmatprep.subr.bf16.mxu0 %v4272
    %5997 = vmatpush1.bf16.msra.mxu0 %v4271
    %5998 = vmatprep.subr.bf16.mxu0 %v4274
    %5999 = vmatpush1.bf16.msra.mxu0 %v4273
    %6000 = vmatprep.subr.bf16.mxu0 %v4276
    %6001 = vmatpush1.bf16.msra.mxu0 %v4275
    %6002 = vmatprep.subr.bf16.mxu0 %v4278
    %6003 = vmatpush1.bf16.msra.mxu0 %v4277
    %6004 = vmatprep.subr.bf16.mxu0 %v4280
    %6005 = vmatpush1.bf16.msra.mxu0 %v4279
    %6006 = vmatprep.subr.bf16.mxu0 %v4282
    %6007 = vmatpush1.bf16.msra.mxu0 %v4281
    %6008 = vmatprep.subr.bf16.mxu0 %v4284
    %6009 = vmatpush1.bf16.msra.mxu0 %v4283
    %6010 = vmatprep.subr.bf16.mxu0 %v4286
    %6011 = vmatpush1.bf16.msra.mxu0 %v4285
    %6012 = vmatprep.subr.bf16.mxu0 %v4288
    %6013 = vmatpush1.bf16.msra.mxu0 %v4287
    %6014 = vmatprep.subr.bf16.mxu0 %v4290
    %6015 = vmatpush1.bf16.msra.mxu0 %v4289
    %6016 = vmatprep.mubr.bf16.mxu0 %v1230
    %6017 = vmatmul.mubr.bf16.gmra.mrb[0].mxu0 %v1229
    %v6018 = vpop.f32.mrb[0].mxu0
    %v6019 = vadd.f32 %v5978, %v6018
    %v6020 = vpop.f32.mrb[0].mxu0
    %v6021 = vadd.f32 %v5980, %v6020
    %v6022 = vpop.f32.mrb[0].mxu0
    %v6023 = vpop.f32.mrb[0].mxu0
    %6024 = vdwg.mxu0
    %6025 = vmatprep.subr.bf16.mxu0 %v4292
    %6026 = vmatpush1.bf16.msra.mxu0 %v4291
    %6027 = vmatprep.subr.bf16.mxu0 %v4294
    %6028 = vmatpush1.bf16.msra.mxu0 %v4293
    %6029 = vmatprep.subr.bf16.mxu0 %v4296
    %6030 = vmatpush1.bf16.msra.mxu0 %v4295
    %6031 = vmatprep.subr.bf16.mxu0 %v4298
    %6032 = vmatpush1.bf16.msra.mxu0 %v4297
    %6033 = vmatprep.subr.bf16.mxu0 %v4300
    %6034 = vmatpush1.bf16.msra.mxu0 %v4299
    %6035 = vmatprep.subr.bf16.mxu0 %v4302
    %6036 = vmatpush1.bf16.msra.mxu0 %v4301
    %6037 = vmatprep.subr.bf16.mxu0 %v4304
    %6038 = vmatpush1.bf16.msra.mxu0 %v4303
    %6039 = vmatprep.subr.bf16.mxu0 %v4306
    %6040 = vmatpush1.bf16.msra.mxu0 %v4305
    %6041 = vmatprep.subr.bf16.mxu0 %v4308
    %6042 = vmatpush1.bf16.msra.mxu0 %v4307
    %6043 = vmatprep.subr.bf16.mxu0 %v4310
    %6044 = vmatpush1.bf16.msra.mxu0 %v4309
    %6045 = vmatprep.subr.bf16.mxu0 %v4312
    %6046 = vmatpush1.bf16.msra.mxu0 %v4311
    %6047 = vmatprep.subr.bf16.mxu0 %v4314
    %6048 = vmatpush1.bf16.msra.mxu0 %v4313
    %6049 = vmatprep.subr.bf16.mxu0 %v4316
    %6050 = vmatpush1.bf16.msra.mxu0 %v4315
    %6051 = vmatprep.subr.bf16.mxu0 %v4318
    %6052 = vmatpush1.bf16.msra.mxu0 %v4317
    %6053 = vmatprep.subr.bf16.mxu0 %v4320
    %6054 = vmatpush1.bf16.msra.mxu0 %v4319
    %6055 = vmatprep.subr.bf16.mxu0 %v4322
    %6056 = vmatpush1.bf16.msra.mxu0 %v4321
    %6057 = vmatprep.mubr.bf16.mxu0 %v1232
    %6058 = vmatmul.mubr.bf16.gmra.mrb[0].mxu0 %v1231
    %v6059 = vpop.f32.mrb[0].mxu0
    %v6060 = vadd.f32 %v6019, %v6059
    %v6061 = vpop.f32.mrb[0].mxu0
    %v6062 = vadd.f32 %v6021, %v6061
    %v6063 = vpop.f32.mrb[0].mxu0
    %v6064 = vpop.f32.mrb[0].mxu0
    %6065 = vdwg.mxu0
    %6066 = vmatprep.subr.bf16.mxu0 %v4324
    %6067 = vmatpush1.bf16.msra.mxu0 %v4323
    %6068 = vmatprep.subr.bf16.mxu0 %v4326
    %6069 = vmatpush1.bf16.msra.mxu0 %v4325
    %6070 = vmatprep.subr.bf16.mxu0 %v4328
    %6071 = vmatpush1.bf16.msra.mxu0 %v4327
    %6072 = vmatprep.subr.bf16.mxu0 %v4330
    %6073 = vmatpush1.bf16.msra.mxu0 %v4329
    %6074 = vmatprep.subr.bf16.mxu0 %v4332
    %6075 = vmatpush1.bf16.msra.mxu0 %v4331
    %6076 = vmatprep.subr.bf16.mxu0 %v4334
    %6077 = vmatpush1.bf16.msra.mxu0 %v4333
    %6078 = vmatprep.subr.bf16.mxu0 %v4336
    %6079 = vmatpush1.bf16.msra.mxu0 %v4335
    %6080 = vmatprep.subr.bf16.mxu0 %v4338
    %6081 = vmatpush1.bf16.msra.mxu0 %v4337
    %6082 = vmatprep.subr.bf16.mxu0 %v4340
    %6083 = vmatpush1.bf16.msra.mxu0 %v4339
    %6084 = vmatprep.subr.bf16.mxu0 %v4342
    %6085 = vmatpush1.bf16.msra.mxu0 %v4341
    %6086 = vmatprep.subr.bf16.mxu0 %v4344
    %6087 = vmatpush1.bf16.msra.mxu0 %v4343
    %6088 = vmatprep.subr.bf16.mxu0 %v4346
    %6089 = vmatpush1.bf16.msra.mxu0 %v4345
    %6090 = vmatprep.subr.bf16.mxu0 %v4348
    %6091 = vmatpush1.bf16.msra.mxu0 %v4347
    %6092 = vmatprep.subr.bf16.mxu0 %v4350
    %6093 = vmatpush1.bf16.msra.mxu0 %v4349
    %6094 = vmatprep.subr.bf16.mxu0 %v4352
    %6095 = vmatpush1.bf16.msra.mxu0 %v4351
    %6096 = vmatprep.subr.bf16.mxu0 %v4354
    %6097 = vmatpush1.bf16.msra.mxu0 %v4353
    %6098 = vmatprep.mubr.bf16.mxu0 %v1234
    %6099 = vmatmul.mubr.bf16.gmra.mrb[0].mxu0 %v1233
    %v6100 = vpop.f32.mrb[0].mxu0
    %v6101 = vadd.f32 %v6060, %v6100
    %v6102 = vpop.f32.mrb[0].mxu0
    %v6103 = vadd.f32 %v6062, %v6102
    %v6104 = vpop.f32.mrb[0].mxu0
    %v6105 = vpop.f32.mrb[0].mxu0
    %6106 = vdwg.mxu0
    %v6115 = vunpack.c.l.b16 %v59
    %v6116 = vunpack.c.h.b16 %v59
    %v6117 = vunpack.c.l.b16 %v60
    %v6118 = vunpack.c.h.b16 %v60
    %v6119 = vunpack.c.l.b16 %v61
    %v6120 = vunpack.c.h.b16 %v61
    %v6121 = vunpack.c.l.b16 %v62
    %v6122 = vunpack.c.h.b16 %v62
    %v6123 = vunpack.c.l.b16 %v63
    %v6124 = vunpack.c.h.b16 %v63
    %v6125 = vunpack.c.l.b16 %v64
    %v6126 = vunpack.c.h.b16 %v64
    %v6127 = vunpack.c.l.b16 %v65
    %v6128 = vunpack.c.h.b16 %v65
    %v6129 = vunpack.c.l.b16 %v66
    %v6130 = vunpack.c.h.b16 %v66
    %v6131 = vpack.c.b16 %v6115, %v6115
    %v6132 = vpack.c.b16 %v6116, %v6116
    %v6133 = vpack.c.b16 %v6117, %v6117
    %v6134 = vpack.c.b16 %v6118, %v6118
    %v6135 = vpack.c.b16 %v6119, %v6119
    %v6136 = vpack.c.b16 %v6120, %v6120
    %v6137 = vpack.c.b16 %v6121, %v6121
    %v6138 = vpack.c.b16 %v6122, %v6122
    %v6139 = vpack.c.b16 %v6123, %v6123
    %v6140 = vpack.c.b16 %v6124, %v6124
    %v6141 = vpack.c.b16 %v6125, %v6125
    %v6142 = vpack.c.b16 %v6126, %v6126
    %v6143 = vpack.c.b16 %v6127, %v6127
    %v6144 = vpack.c.b16 %v6128, %v6128
    %v6145 = vpack.c.b16 %v6129, %v6129
    %v6146 = vpack.c.b16 %v6130, %v6130
    %v6419 = vunpack.c.l.b16 %v67
    %v6420 = vunpack.c.h.b16 %v67
    %v6421 = vunpack.c.l.b16 %v68
    %v6422 = vunpack.c.h.b16 %v68
    %v6423 = vunpack.c.l.b16 %v69
    %v6424 = vunpack.c.h.b16 %v69
    %v6425 = vunpack.c.l.b16 %v70
    %v6426 = vunpack.c.h.b16 %v70
    %v6427 = vunpack.c.l.b16 %v71
    %v6428 = vunpack.c.h.b16 %v71
    %v6429 = vunpack.c.l.b16 %v72
    %v6430 = vunpack.c.h.b16 %v72
    %v6431 = vunpack.c.l.b16 %v73
    %v6432 = vunpack.c.h.b16 %v73
    %v6433 = vunpack.c.l.b16 %v74
    %v6434 = vunpack.c.h.b16 %v74
    %v6435 = vunpack.c.l.b16 %v75
    %v6436 = vunpack.c.h.b16 %v75
    %v6437 = vunpack.c.l.b16 %v76
    %v6438 = vunpack.c.h.b16 %v76
    %v6439 = vunpack.c.l.b16 %v77
    %v6440 = vunpack.c.h.b16 %v77
    %v6441 = vunpack.c.l.b16 %v78
    %v6442 = vunpack.c.h.b16 %v78
    %v6443 = vunpack.c.l.b16 %v79
    %v6444 = vunpack.c.h.b16 %v79
    %v6445 = vunpack.c.l.b16 %v80
    %v6446 = vunpack.c.h.b16 %v80
    %v6447 = vunpack.c.l.b16 %v81
    %v6448 = vunpack.c.h.b16 %v81
    %v6449 = vunpack.c.l.b16 %v82
    %v6450 = vunpack.c.h.b16 %v82
    %v6451 = vunpack.c.l.b16 %v83
    %v6452 = vunpack.c.h.b16 %v83
    %v6453 = vunpack.c.l.b16 %v84
    %v6454 = vunpack.c.h.b16 %v84
    %v6455 = vunpack.c.l.b16 %v85
    %v6456 = vunpack.c.h.b16 %v85
    %v6457 = vunpack.c.l.b16 %v86
    %v6458 = vunpack.c.h.b16 %v86
    %v6459 = vunpack.c.l.b16 %v87
    %v6460 = vunpack.c.h.b16 %v87
    %v6461 = vunpack.c.l.b16 %v88
    %v6462 = vunpack.c.h.b16 %v88
    %v6463 = vunpack.c.l.b16 %v89
    %v6464 = vunpack.c.h.b16 %v89
    %v6465 = vunpack.c.l.b16 %v90
    %v6466 = vunpack.c.h.b16 %v90
    %v6467 = vunpack.c.l.b16 %v91
    %v6468 = vunpack.c.h.b16 %v91
    %v6469 = vunpack.c.l.b16 %v92
    %v6470 = vunpack.c.h.b16 %v92
    %v6471 = vunpack.c.l.b16 %v93
    %v6472 = vunpack.c.h.b16 %v93
    %v6473 = vunpack.c.l.b16 %v94
    %v6474 = vunpack.c.h.b16 %v94
    %v6475 = vunpack.c.l.b16 %v95
    %v6476 = vunpack.c.h.b16 %v95
    %v6477 = vunpack.c.l.b16 %v96
    %v6478 = vunpack.c.h.b16 %v96
    %v6479 = vunpack.c.l.b16 %v97
    %v6480 = vunpack.c.h.b16 %v97
    %v6481 = vunpack.c.l.b16 %v98
    %v6482 = vunpack.c.h.b16 %v98
    %v6483 = vunpack.c.l.b16 %v99
    %v6484 = vunpack.c.h.b16 %v99
    %v6485 = vunpack.c.l.b16 %v100
    %v6486 = vunpack.c.h.b16 %v100
    %v6487 = vunpack.c.l.b16 %v101
    %v6488 = vunpack.c.h.b16 %v101
    %v6489 = vunpack.c.l.b16 %v102
    %v6490 = vunpack.c.h.b16 %v102
    %v6491 = vunpack.c.l.b16 %v103
    %v6492 = vunpack.c.h.b16 %v103
    %v6493 = vunpack.c.l.b16 %v104
    %v6494 = vunpack.c.h.b16 %v104
    %v6495 = vunpack.c.l.b16 %v105
    %v6496 = vunpack.c.h.b16 %v105
    %v6497 = vunpack.c.l.b16 %v106
    %v6498 = vunpack.c.h.b16 %v106
    %v6499 = vunpack.c.l.b16 %v107
    %v6500 = vunpack.c.h.b16 %v107
    %v6501 = vunpack.c.l.b16 %v108
    %v6502 = vunpack.c.h.b16 %v108
    %v6503 = vunpack.c.l.b16 %v109
    %v6504 = vunpack.c.h.b16 %v109
    %v6505 = vunpack.c.l.b16 %v110
    %v6506 = vunpack.c.h.b16 %v110
    %v6507 = vunpack.c.l.b16 %v111
    %v6508 = vunpack.c.h.b16 %v111
    %v6509 = vunpack.c.l.b16 %v112
    %v6510 = vunpack.c.h.b16 %v112
    %v6511 = vunpack.c.l.b16 %v113
    %v6512 = vunpack.c.h.b16 %v113
    %v6513 = vunpack.c.l.b16 %v114
    %v6514 = vunpack.c.h.b16 %v114
    %v6515 = vunpack.c.l.b16 %v115
    %v6516 = vunpack.c.h.b16 %v115
    %v6517 = vunpack.c.l.b16 %v116
    %v6518 = vunpack.c.h.b16 %v116
    %v6519 = vunpack.c.l.b16 %v117
    %v6520 = vunpack.c.h.b16 %v117
    %v6521 = vunpack.c.l.b16 %v118
    %v6522 = vunpack.c.h.b16 %v118
    %v6523 = vunpack.c.l.b16 %v119
    %v6524 = vunpack.c.h.b16 %v119
    %v6525 = vunpack.c.l.b16 %v120
    %v6526 = vunpack.c.h.b16 %v120
    %v6527 = vunpack.c.l.b16 %v121
    %v6528 = vunpack.c.h.b16 %v121
    %v6529 = vunpack.c.l.b16 %v122
    %v6530 = vunpack.c.h.b16 %v122
    %v6531 = vunpack.c.l.b16 %v123
    %v6532 = vunpack.c.h.b16 %v123
    %v6533 = vunpack.c.l.b16 %v124
    %v6534 = vunpack.c.h.b16 %v124
    %v6535 = vunpack.c.l.b16 %v125
    %v6536 = vunpack.c.h.b16 %v125
    %v6537 = vunpack.c.l.b16 %v126
    %v6538 = vunpack.c.h.b16 %v126
    %v6539 = vunpack.c.l.b16 %v127
    %v6540 = vunpack.c.h.b16 %v127
    %v6541 = vunpack.c.l.b16 %v128
    %v6542 = vunpack.c.h.b16 %v128
    %v6543 = vunpack.c.l.b16 %v129
    %v6544 = vunpack.c.h.b16 %v129
    %v6545 = vunpack.c.l.b16 %v130
    %v6546 = vunpack.c.h.b16 %v130
    %v6547 = vunpack.c.l.b16 %v131
    %v6548 = vunpack.c.h.b16 %v131
    %v6549 = vunpack.c.l.b16 %v132
    %v6550 = vunpack.c.h.b16 %v132
    %v6551 = vunpack.c.l.b16 %v133
    %v6552 = vunpack.c.h.b16 %v133
    %v6553 = vunpack.c.l.b16 %v134
    %v6554 = vunpack.c.h.b16 %v134
    %v6555 = vunpack.c.l.b16 %v135
    %v6556 = vunpack.c.h.b16 %v135
    %v6557 = vunpack.c.l.b16 %v136
    %v6558 = vunpack.c.h.b16 %v136
    %v6559 = vunpack.c.l.b16 %v137
    %v6560 = vunpack.c.h.b16 %v137
    %v6561 = vunpack.c.l.b16 %v138
    %v6562 = vunpack.c.h.b16 %v138
    %v6563 = vunpack.c.l.b16 %v139
    %v6564 = vunpack.c.h.b16 %v139
    %v6565 = vunpack.c.l.b16 %v140
    %v6566 = vunpack.c.h.b16 %v140
    %v6567 = vunpack.c.l.b16 %v141
    %v6568 = vunpack.c.h.b16 %v141
    %v6569 = vunpack.c.l.b16 %v142
    %v6570 = vunpack.c.h.b16 %v142
    %v6571 = vunpack.c.l.b16 %v143
    %v6572 = vunpack.c.h.b16 %v143
    %v6573 = vunpack.c.l.b16 %v144
    %v6574 = vunpack.c.h.b16 %v144
    %v6575 = vunpack.c.l.b16 %v145
    %v6576 = vunpack.c.h.b16 %v145
    %v6577 = vunpack.c.l.b16 %v146
    %v6578 = vunpack.c.h.b16 %v146
    %v6579 = vunpack.c.l.b16 %v147
    %v6580 = vunpack.c.h.b16 %v147
    %v6581 = vunpack.c.l.b16 %v148
    %v6582 = vunpack.c.h.b16 %v148
    %v6583 = vunpack.c.l.b16 %v149
    %v6584 = vunpack.c.h.b16 %v149
    %v6585 = vunpack.c.l.b16 %v150
    %v6586 = vunpack.c.h.b16 %v150
    %v6587 = vunpack.c.l.b16 %v151
    %v6588 = vunpack.c.h.b16 %v151
    %v6589 = vunpack.c.l.b16 %v152
    %v6590 = vunpack.c.h.b16 %v152
    %v6591 = vunpack.c.l.b16 %v153
    %v6592 = vunpack.c.h.b16 %v153
    %v6593 = vunpack.c.l.b16 %v154
    %v6594 = vunpack.c.h.b16 %v154
    %v6595 = vunpack.c.l.b16 %v155
    %v6596 = vunpack.c.h.b16 %v155
    %v6597 = vunpack.c.l.b16 %v156
    %v6598 = vunpack.c.h.b16 %v156
    %v6599 = vunpack.c.l.b16 %v157
    %v6600 = vunpack.c.h.b16 %v157
    %v6601 = vunpack.c.l.b16 %v158
    %v6602 = vunpack.c.h.b16 %v158
    %v6603 = vunpack.c.l.b16 %v159
    %v6604 = vunpack.c.h.b16 %v159
    %v6605 = vunpack.c.l.b16 %v160
    %v6606 = vunpack.c.h.b16 %v160
    %v6607 = vunpack.c.l.b16 %v161
    %v6608 = vunpack.c.h.b16 %v161
    %v6609 = vunpack.c.l.b16 %v162
    %v6610 = vunpack.c.h.b16 %v162
    %v6611 = vunpack.c.l.b16 %v163
    %v6612 = vunpack.c.h.b16 %v163
    %v6613 = vunpack.c.l.b16 %v164
    %v6614 = vunpack.c.h.b16 %v164
    %v6615 = vunpack.c.l.b16 %v165
    %v6616 = vunpack.c.h.b16 %v165
    %v6617 = vunpack.c.l.b16 %v166
    %v6618 = vunpack.c.h.b16 %v166
    %v6619 = vunpack.c.l.b16 %v167
    %v6620 = vunpack.c.h.b16 %v167
    %v6621 = vunpack.c.l.b16 %v168
    %v6622 = vunpack.c.h.b16 %v168
    %v6623 = vunpack.c.l.b16 %v169
    %v6624 = vunpack.c.h.b16 %v169
    %v6625 = vunpack.c.l.b16 %v170
    %v6626 = vunpack.c.h.b16 %v170
    %v6627 = vunpack.c.l.b16 %v171
    %v6628 = vunpack.c.h.b16 %v171
    %v6629 = vunpack.c.l.b16 %v172
    %v6630 = vunpack.c.h.b16 %v172
    %v6631 = vunpack.c.l.b16 %v173
    %v6632 = vunpack.c.h.b16 %v173
    %v6633 = vunpack.c.l.b16 %v174
    %v6634 = vunpack.c.h.b16 %v174
    %v6635 = vunpack.c.l.b16 %v175
    %v6636 = vunpack.c.h.b16 %v175
    %v6637 = vunpack.c.l.b16 %v176
    %v6638 = vunpack.c.h.b16 %v176
    %v6639 = vunpack.c.l.b16 %v177
    %v6640 = vunpack.c.h.b16 %v177
    %v6641 = vunpack.c.l.b16 %v178
    %v6642 = vunpack.c.h.b16 %v178
    %v6643 = vunpack.c.l.b16 %v179
    %v6644 = vunpack.c.h.b16 %v179
    %v6645 = vunpack.c.l.b16 %v180
    %v6646 = vunpack.c.h.b16 %v180
    %v6647 = vunpack.c.l.b16 %v181
    %v6648 = vunpack.c.h.b16 %v181
    %v6649 = vunpack.c.l.b16 %v182
    %v6650 = vunpack.c.h.b16 %v182
    %v6651 = vunpack.c.l.b16 %v183
    %v6652 = vunpack.c.h.b16 %v183
    %v6653 = vunpack.c.l.b16 %v184
    %v6654 = vunpack.c.h.b16 %v184
    %v6655 = vunpack.c.l.b16 %v185
    %v6656 = vunpack.c.h.b16 %v185
    %v6657 = vunpack.c.l.b16 %v186
    %v6658 = vunpack.c.h.b16 %v186
    %v6659 = vunpack.c.l.b16 %v187
    %v6660 = vunpack.c.h.b16 %v187
    %v6661 = vunpack.c.l.b16 %v188
    %v6662 = vunpack.c.h.b16 %v188
    %v6663 = vunpack.c.l.b16 %v189
    %v6664 = vunpack.c.h.b16 %v189
    %v6665 = vunpack.c.l.b16 %v190
    %v6666 = vunpack.c.h.b16 %v190
    %v6667 = vunpack.c.l.b16 %v191
    %v6668 = vunpack.c.h.b16 %v191
    %v6669 = vunpack.c.l.b16 %v192
    %v6670 = vunpack.c.h.b16 %v192
    %v6671 = vunpack.c.l.b16 %v193
    %v6672 = vunpack.c.h.b16 %v193
    %v6673 = vunpack.c.l.b16 %v194
    %v6674 = vunpack.c.h.b16 %v194
    %v6675 = vunpack.c.l.b16 %v195
    %v6676 = vunpack.c.h.b16 %v195
    %v6677 = vunpack.c.l.b16 %v196
    %v6678 = vunpack.c.h.b16 %v196
    %v6679 = vunpack.c.l.b16 %v197
    %v6680 = vunpack.c.h.b16 %v197
    %v6681 = vunpack.c.l.b16 %v198
    %v6682 = vunpack.c.h.b16 %v198
    %v6683 = vunpack.c.l.b16 %v199
    %v6684 = vunpack.c.h.b16 %v199
    %v6685 = vunpack.c.l.b16 %v200
    %v6686 = vunpack.c.h.b16 %v200
    %v6687 = vunpack.c.l.b16 %v201
    %v6688 = vunpack.c.h.b16 %v201
    %v6689 = vunpack.c.l.b16 %v202
    %v6690 = vunpack.c.h.b16 %v202
    %v6691 = vunpack.c.l.b16 %v203
    %v6692 = vunpack.c.h.b16 %v203
    %v6693 = vunpack.c.l.b16 %v204
    %v6694 = vunpack.c.h.b16 %v204
    %v6695 = vunpack.c.l.b16 %v205
    %v6696 = vunpack.c.h.b16 %v205
    %v6697 = vunpack.c.l.b16 %v206
    %v6698 = vunpack.c.h.b16 %v206
    %v6699 = vunpack.c.l.b16 %v207
    %v6700 = vunpack.c.h.b16 %v207
    %v6701 = vunpack.c.l.b16 %v208
    %v6702 = vunpack.c.h.b16 %v208
    %v6703 = vunpack.c.l.b16 %v209
    %v6704 = vunpack.c.h.b16 %v209
    %v6705 = vunpack.c.l.b16 %v210
    %v6706 = vunpack.c.h.b16 %v210
    %v6707 = vunpack.c.l.b16 %v211
    %v6708 = vunpack.c.h.b16 %v211
    %v6709 = vunpack.c.l.b16 %v212
    %v6710 = vunpack.c.h.b16 %v212
    %v6711 = vunpack.c.l.b16 %v213
    %v6712 = vunpack.c.h.b16 %v213
    %v6713 = vunpack.c.l.b16 %v214
    %v6714 = vunpack.c.h.b16 %v214
    %v6715 = vunpack.c.l.b16 %v215
    %v6716 = vunpack.c.h.b16 %v215
    %v6717 = vunpack.c.l.b16 %v216
    %v6718 = vunpack.c.h.b16 %v216
    %v6719 = vunpack.c.l.b16 %v217
    %v6720 = vunpack.c.h.b16 %v217
    %v6721 = vunpack.c.l.b16 %v218
    %v6722 = vunpack.c.h.b16 %v218
    %v6723 = vunpack.c.l.b16 %v219
    %v6724 = vunpack.c.h.b16 %v219
    %v6725 = vunpack.c.l.b16 %v220
    %v6726 = vunpack.c.h.b16 %v220
    %v6727 = vunpack.c.l.b16 %v221
    %v6728 = vunpack.c.h.b16 %v221
    %v6729 = vunpack.c.l.b16 %v222
    %v6730 = vunpack.c.h.b16 %v222
    %v6731 = vunpack.c.l.b16 %v223
    %v6732 = vunpack.c.h.b16 %v223
    %v6733 = vunpack.c.l.b16 %v224
    %v6734 = vunpack.c.h.b16 %v224
    %v6735 = vunpack.c.l.b16 %v225
    %v6736 = vunpack.c.h.b16 %v225
    %v6737 = vunpack.c.l.b16 %v226
    %v6738 = vunpack.c.h.b16 %v226
    %v6739 = vunpack.c.l.b16 %v227
    %v6740 = vunpack.c.h.b16 %v227
    %v6741 = vunpack.c.l.b16 %v228
    %v6742 = vunpack.c.h.b16 %v228
    %v6743 = vunpack.c.l.b16 %v229
    %v6744 = vunpack.c.h.b16 %v229
    %v6745 = vunpack.c.l.b16 %v230
    %v6746 = vunpack.c.h.b16 %v230
    %v6747 = vunpack.c.l.b16 %v231
    %v6748 = vunpack.c.h.b16 %v231
    %v6749 = vunpack.c.l.b16 %v232
    %v6750 = vunpack.c.h.b16 %v232
    %v6751 = vunpack.c.l.b16 %v233
    %v6752 = vunpack.c.h.b16 %v233
    %v6753 = vunpack.c.l.b16 %v234
    %v6754 = vunpack.c.h.b16 %v234
    %v6755 = vunpack.c.l.b16 %v235
    %v6756 = vunpack.c.h.b16 %v235
    %v6757 = vunpack.c.l.b16 %v236
    %v6758 = vunpack.c.h.b16 %v236
    %v6759 = vunpack.c.l.b16 %v237
    %v6760 = vunpack.c.h.b16 %v237
    %v6761 = vunpack.c.l.b16 %v238
    %v6762 = vunpack.c.h.b16 %v238
    %v6763 = vunpack.c.l.b16 %v239
    %v6764 = vunpack.c.h.b16 %v239
    %v6765 = vunpack.c.l.b16 %v240
    %v6766 = vunpack.c.h.b16 %v240
    %v6767 = vunpack.c.l.b16 %v241
    %v6768 = vunpack.c.h.b16 %v241
    %v6769 = vunpack.c.l.b16 %v242
    %v6770 = vunpack.c.h.b16 %v242
    %v6771 = vunpack.c.l.b16 %v243
    %v6772 = vunpack.c.h.b16 %v243
    %v6773 = vunpack.c.l.b16 %v244
    %v6774 = vunpack.c.h.b16 %v244
    %v6775 = vunpack.c.l.b16 %v245
    %v6776 = vunpack.c.h.b16 %v245
    %v6777 = vunpack.c.l.b16 %v246
    %v6778 = vunpack.c.h.b16 %v246
    %v6779 = vunpack.c.l.b16 %v247
    %v6780 = vunpack.c.h.b16 %v247
    %v6781 = vunpack.c.l.b16 %v248
    %v6782 = vunpack.c.h.b16 %v248
    %v6783 = vunpack.c.l.b16 %v249
    %v6784 = vunpack.c.h.b16 %v249
    %v6785 = vunpack.c.l.b16 %v250
    %v6786 = vunpack.c.h.b16 %v250
    %v6787 = vunpack.c.l.b16 %v251
    %v6788 = vunpack.c.h.b16 %v251
    %v6789 = vunpack.c.l.b16 %v252
    %v6790 = vunpack.c.h.b16 %v252
    %v6791 = vunpack.c.l.b16 %v253
    %v6792 = vunpack.c.h.b16 %v253
    %v6793 = vunpack.c.l.b16 %v254
    %v6794 = vunpack.c.h.b16 %v254
    %v6795 = vunpack.c.l.b16 %v255
    %v6796 = vunpack.c.h.b16 %v255
    %v6797 = vunpack.c.l.b16 %v256
    %v6798 = vunpack.c.h.b16 %v256
    %v6799 = vunpack.c.l.b16 %v257
    %v6800 = vunpack.c.h.b16 %v257
    %v6801 = vunpack.c.l.b16 %v258
    %v6802 = vunpack.c.h.b16 %v258
    %v6803 = vunpack.c.l.b16 %v259
    %v6804 = vunpack.c.h.b16 %v259
    %v6805 = vunpack.c.l.b16 %v260
    %v6806 = vunpack.c.h.b16 %v260
    %v6807 = vunpack.c.l.b16 %v261
    %v6808 = vunpack.c.h.b16 %v261
    %v6809 = vunpack.c.l.b16 %v262
    %v6810 = vunpack.c.h.b16 %v262
    %v6811 = vunpack.c.l.b16 %v263
    %v6812 = vunpack.c.h.b16 %v263
    %v6813 = vunpack.c.l.b16 %v264
    %v6814 = vunpack.c.h.b16 %v264
    %v6815 = vunpack.c.l.b16 %v265
    %v6816 = vunpack.c.h.b16 %v265
    %v6817 = vunpack.c.l.b16 %v266
    %v6818 = vunpack.c.h.b16 %v266
    %v6819 = vunpack.c.l.b16 %v267
    %v6820 = vunpack.c.h.b16 %v267
    %v6821 = vunpack.c.l.b16 %v268
    %v6822 = vunpack.c.h.b16 %v268
    %v6823 = vunpack.c.l.b16 %v269
    %v6824 = vunpack.c.h.b16 %v269
    %v6825 = vunpack.c.l.b16 %v270
    %v6826 = vunpack.c.h.b16 %v270
    %v6827 = vunpack.c.l.b16 %v271
    %v6828 = vunpack.c.h.b16 %v271
    %v6829 = vunpack.c.l.b16 %v272
    %v6830 = vunpack.c.h.b16 %v272
    %v6831 = vunpack.c.l.b16 %v273
    %v6832 = vunpack.c.h.b16 %v273
    %v6833 = vunpack.c.l.b16 %v274
    %v6834 = vunpack.c.h.b16 %v274
    %v6835 = vunpack.c.l.b16 %v275
    %v6836 = vunpack.c.h.b16 %v275
    %v6837 = vunpack.c.l.b16 %v276
    %v6838 = vunpack.c.h.b16 %v276
    %v6839 = vunpack.c.l.b16 %v277
    %v6840 = vunpack.c.h.b16 %v277
    %v6841 = vunpack.c.l.b16 %v278
    %v6842 = vunpack.c.h.b16 %v278
    %v6843 = vunpack.c.l.b16 %v279
    %v6844 = vunpack.c.h.b16 %v279
    %v6845 = vunpack.c.l.b16 %v280
    %v6846 = vunpack.c.h.b16 %v280
    %v6847 = vunpack.c.l.b16 %v281
    %v6848 = vunpack.c.h.b16 %v281
    %v6849 = vunpack.c.l.b16 %v282
    %v6850 = vunpack.c.h.b16 %v282
    %v6851 = vunpack.c.l.b16 %v283
    %v6852 = vunpack.c.h.b16 %v283
    %v6853 = vunpack.c.l.b16 %v284
    %v6854 = vunpack.c.h.b16 %v284
    %v6855 = vunpack.c.l.b16 %v285
    %v6856 = vunpack.c.h.b16 %v285
    %v6857 = vunpack.c.l.b16 %v286
    %v6858 = vunpack.c.h.b16 %v286
    %v6859 = vunpack.c.l.b16 %v287
    %v6860 = vunpack.c.h.b16 %v287
    %v6861 = vunpack.c.l.b16 %v288
    %v6862 = vunpack.c.h.b16 %v288
    %v6863 = vunpack.c.l.b16 %v289
    %v6864 = vunpack.c.h.b16 %v289
    %v6865 = vunpack.c.l.b16 %v290
    %v6866 = vunpack.c.h.b16 %v290
    %v6867 = vunpack.c.l.b16 %v291
    %v6868 = vunpack.c.h.b16 %v291
    %v6869 = vunpack.c.l.b16 %v292
    %v6870 = vunpack.c.h.b16 %v292
    %v6871 = vunpack.c.l.b16 %v293
    %v6872 = vunpack.c.h.b16 %v293
    %v6873 = vunpack.c.l.b16 %v294
    %v6874 = vunpack.c.h.b16 %v294
    %v6875 = vunpack.c.l.b16 %v295
    %v6876 = vunpack.c.h.b16 %v295
    %v6877 = vunpack.c.l.b16 %v296
    %v6878 = vunpack.c.h.b16 %v296
    %v6879 = vunpack.c.l.b16 %v297
    %v6880 = vunpack.c.h.b16 %v297
    %v6881 = vunpack.c.l.b16 %v298
    %v6882 = vunpack.c.h.b16 %v298
    %v6883 = vunpack.c.l.b16 %v299
    %v6884 = vunpack.c.h.b16 %v299
    %v6885 = vunpack.c.l.b16 %v300
    %v6886 = vunpack.c.h.b16 %v300
    %v6887 = vunpack.c.l.b16 %v301
    %v6888 = vunpack.c.h.b16 %v301
    %v6889 = vunpack.c.l.b16 %v302
    %v6890 = vunpack.c.h.b16 %v302
    %v6891 = vunpack.c.l.b16 %v303
    %v6892 = vunpack.c.h.b16 %v303
    %v6893 = vunpack.c.l.b16 %v304
    %v6894 = vunpack.c.h.b16 %v304
    %v6895 = vunpack.c.l.b16 %v305
    %v6896 = vunpack.c.h.b16 %v305
    %v6897 = vunpack.c.l.b16 %v306
    %v6898 = vunpack.c.h.b16 %v306
    %v6899 = vunpack.c.l.b16 %v307
    %v6900 = vunpack.c.h.b16 %v307
    %v6901 = vunpack.c.l.b16 %v308
    %v6902 = vunpack.c.h.b16 %v308
    %v6903 = vunpack.c.l.b16 %v309
    %v6904 = vunpack.c.h.b16 %v309
    %v6905 = vunpack.c.l.b16 %v310
    %v6906 = vunpack.c.h.b16 %v310
    %v6907 = vunpack.c.l.b16 %v311
    %v6908 = vunpack.c.h.b16 %v311
    %v6909 = vunpack.c.l.b16 %v312
    %v6910 = vunpack.c.h.b16 %v312
    %v6911 = vunpack.c.l.b16 %v313
    %v6912 = vunpack.c.h.b16 %v313
    %v6913 = vunpack.c.l.b16 %v314
    %v6914 = vunpack.c.h.b16 %v314
    %v6915 = vunpack.c.l.b16 %v315
    %v6916 = vunpack.c.h.b16 %v315
    %v6917 = vunpack.c.l.b16 %v316
    %v6918 = vunpack.c.h.b16 %v316
    %v6919 = vunpack.c.l.b16 %v317
    %v6920 = vunpack.c.h.b16 %v317
    %v6921 = vunpack.c.l.b16 %v318
    %v6922 = vunpack.c.h.b16 %v318
    %v6923 = vunpack.c.l.b16 %v319
    %v6924 = vunpack.c.h.b16 %v319
    %v6925 = vunpack.c.l.b16 %v320
    %v6926 = vunpack.c.h.b16 %v320
    %v6927 = vunpack.c.l.b16 %v321
    %v6928 = vunpack.c.h.b16 %v321
    %v6929 = vunpack.c.l.b16 %v322
    %v6930 = vunpack.c.h.b16 %v322
    %v6931 = vpack.c.b16 %v6421, %v6419
    %v6932 = vpack.c.b16 %v6422, %v6420
    %v6933 = vpack.c.b16 %v6425, %v6423
    %v6934 = vpack.c.b16 %v6426, %v6424
    %v6935 = vpack.c.b16 %v6429, %v6427
    %v6936 = vpack.c.b16 %v6430, %v6428
    %v6937 = vpack.c.b16 %v6433, %v6431
    %v6938 = vpack.c.b16 %v6434, %v6432
    %v6939 = vpack.c.b16 %v6437, %v6435
    %v6940 = vpack.c.b16 %v6438, %v6436
    %v6941 = vpack.c.b16 %v6441, %v6439
    %v6942 = vpack.c.b16 %v6442, %v6440
    %v6943 = vpack.c.b16 %v6445, %v6443
    %v6944 = vpack.c.b16 %v6446, %v6444
    %v6945 = vpack.c.b16 %v6449, %v6447
    %v6946 = vpack.c.b16 %v6450, %v6448
    %v6947 = vpack.c.b16 %v6453, %v6451
    %v6948 = vpack.c.b16 %v6454, %v6452
    %v6949 = vpack.c.b16 %v6457, %v6455
    %v6950 = vpack.c.b16 %v6458, %v6456
    %v6951 = vpack.c.b16 %v6461, %v6459
    %v6952 = vpack.c.b16 %v6462, %v6460
    %v6953 = vpack.c.b16 %v6465, %v6463
    %v6954 = vpack.c.b16 %v6466, %v6464
    %v6955 = vpack.c.b16 %v6469, %v6467
    %v6956 = vpack.c.b16 %v6470, %v6468
    %v6957 = vpack.c.b16 %v6473, %v6471
    %v6958 = vpack.c.b16 %v6474, %v6472
    %v6959 = vpack.c.b16 %v6477, %v6475
    %v6960 = vpack.c.b16 %v6478, %v6476
    %v6961 = vpack.c.b16 %v6481, %v6479
    %v6962 = vpack.c.b16 %v6482, %v6480
    %v6963 = vpack.c.b16 %v6485, %v6483
    %v6964 = vpack.c.b16 %v6486, %v6484
    %v6965 = vpack.c.b16 %v6489, %v6487
    %v6966 = vpack.c.b16 %v6490, %v6488
    %v6967 = vpack.c.b16 %v6493, %v6491
    %v6968 = vpack.c.b16 %v6494, %v6492
    %v6969 = vpack.c.b16 %v6497, %v6495
    %v6970 = vpack.c.b16 %v6498, %v6496
    %v6971 = vpack.c.b16 %v6501, %v6499
    %v6972 = vpack.c.b16 %v6502, %v6500
    %v6973 = vpack.c.b16 %v6505, %v6503
    %v6974 = vpack.c.b16 %v6506, %v6504
    %v6975 = vpack.c.b16 %v6509, %v6507
    %v6976 = vpack.c.b16 %v6510, %v6508
    %v6977 = vpack.c.b16 %v6513, %v6511
    %v6978 = vpack.c.b16 %v6514, %v6512
    %v6979 = vpack.c.b16 %v6517, %v6515
    %v6980 = vpack.c.b16 %v6518, %v6516
    %v6981 = vpack.c.b16 %v6521, %v6519
    %v6982 = vpack.c.b16 %v6522, %v6520
    %v6983 = vpack.c.b16 %v6525, %v6523
    %v6984 = vpack.c.b16 %v6526, %v6524
    %v6985 = vpack.c.b16 %v6529, %v6527
    %v6986 = vpack.c.b16 %v6530, %v6528
    %v6987 = vpack.c.b16 %v6533, %v6531
    %v6988 = vpack.c.b16 %v6534, %v6532
    %v6989 = vpack.c.b16 %v6537, %v6535
    %v6990 = vpack.c.b16 %v6538, %v6536
    %v6991 = vpack.c.b16 %v6541, %v6539
    %v6992 = vpack.c.b16 %v6542, %v6540
    %v6993 = vpack.c.b16 %v6545, %v6543
    %v6994 = vpack.c.b16 %v6546, %v6544
    %v6995 = vpack.c.b16 %v6549, %v6547
    %v6996 = vpack.c.b16 %v6550, %v6548
    %v6997 = vpack.c.b16 %v6553, %v6551
    %v6998 = vpack.c.b16 %v6554, %v6552
    %v6999 = vpack.c.b16 %v6557, %v6555
    %v7000 = vpack.c.b16 %v6558, %v6556
    %v7001 = vpack.c.b16 %v6561, %v6559
    %v7002 = vpack.c.b16 %v6562, %v6560
    %v7003 = vpack.c.b16 %v6565, %v6563
    %v7004 = vpack.c.b16 %v6566, %v6564
    %v7005 = vpack.c.b16 %v6569, %v6567
    %v7006 = vpack.c.b16 %v6570, %v6568
    %v7007 = vpack.c.b16 %v6573, %v6571
    %v7008 = vpack.c.b16 %v6574, %v6572
    %v7009 = vpack.c.b16 %v6577, %v6575
    %v7010 = vpack.c.b16 %v6578, %v6576
    %v7011 = vpack.c.b16 %v6581, %v6579
    %v7012 = vpack.c.b16 %v6582, %v6580
    %v7013 = vpack.c.b16 %v6585, %v6583
    %v7014 = vpack.c.b16 %v6586, %v6584
    %v7015 = vpack.c.b16 %v6589, %v6587
    %v7016 = vpack.c.b16 %v6590, %v6588
    %v7017 = vpack.c.b16 %v6593, %v6591
    %v7018 = vpack.c.b16 %v6594, %v6592
    %v7019 = vpack.c.b16 %v6597, %v6595
    %v7020 = vpack.c.b16 %v6598, %v6596
    %v7021 = vpack.c.b16 %v6601, %v6599
    %v7022 = vpack.c.b16 %v6602, %v6600
    %v7023 = vpack.c.b16 %v6605, %v6603
    %v7024 = vpack.c.b16 %v6606, %v6604
    %v7025 = vpack.c.b16 %v6609, %v6607
    %v7026 = vpack.c.b16 %v6610, %v6608
    %v7027 = vpack.c.b16 %v6613, %v6611
    %v7028 = vpack.c.b16 %v6614, %v6612
    %v7029 = vpack.c.b16 %v6617, %v6615
    %v7030 = vpack.c.b16 %v6618, %v6616
    %v7031 = vpack.c.b16 %v6621, %v6619
    %v7032 = vpack.c.b16 %v6622, %v6620
    %v7033 = vpack.c.b16 %v6625, %v6623
    %v7034 = vpack.c.b16 %v6626, %v6624
    %v7035 = vpack.c.b16 %v6629, %v6627
    %v7036 = vpack.c.b16 %v6630, %v6628
    %v7037 = vpack.c.b16 %v6633, %v6631
    %v7038 = vpack.c.b16 %v6634, %v6632
    %v7039 = vpack.c.b16 %v6637, %v6635
    %v7040 = vpack.c.b16 %v6638, %v6636
    %v7041 = vpack.c.b16 %v6641, %v6639
    %v7042 = vpack.c.b16 %v6642, %v6640
    %v7043 = vpack.c.b16 %v6645, %v6643
    %v7044 = vpack.c.b16 %v6646, %v6644
    %v7045 = vpack.c.b16 %v6649, %v6647
    %v7046 = vpack.c.b16 %v6650, %v6648
    %v7047 = vpack.c.b16 %v6653, %v6651
    %v7048 = vpack.c.b16 %v6654, %v6652
    %v7049 = vpack.c.b16 %v6657, %v6655
    %v7050 = vpack.c.b16 %v6658, %v6656
    %v7051 = vpack.c.b16 %v6661, %v6659
    %v7052 = vpack.c.b16 %v6662, %v6660
    %v7053 = vpack.c.b16 %v6665, %v6663
    %v7054 = vpack.c.b16 %v6666, %v6664
    %v7055 = vpack.c.b16 %v6669, %v6667
    %v7056 = vpack.c.b16 %v6670, %v6668
    %v7057 = vpack.c.b16 %v6673, %v6671
    %v7058 = vpack.c.b16 %v6674, %v6672
    %v7059 = vpack.c.b16 %v6677, %v6675
    %v7060 = vpack.c.b16 %v6678, %v6676
    %v7061 = vpack.c.b16 %v6681, %v6679
    %v7062 = vpack.c.b16 %v6682, %v6680
    %v7063 = vpack.c.b16 %v6685, %v6683
    %v7064 = vpack.c.b16 %v6686, %v6684
    %v7065 = vpack.c.b16 %v6689, %v6687
    %v7066 = vpack.c.b16 %v6690, %v6688
    %v7067 = vpack.c.b16 %v6693, %v6691
    %v7068 = vpack.c.b16 %v6694, %v6692
    %v7069 = vpack.c.b16 %v6697, %v6695
    %v7070 = vpack.c.b16 %v6698, %v6696
    %v7071 = vpack.c.b16 %v6701, %v6699
    %v7072 = vpack.c.b16 %v6702, %v6700
    %v7073 = vpack.c.b16 %v6705, %v6703
    %v7074 = vpack.c.b16 %v6706, %v6704
    %v7075 = vpack.c.b16 %v6709, %v6707
    %v7076 = vpack.c.b16 %v6710, %v6708
    %v7077 = vpack.c.b16 %v6713, %v6711
    %v7078 = vpack.c.b16 %v6714, %v6712
    %v7079 = vpack.c.b16 %v6717, %v6715
    %v7080 = vpack.c.b16 %v6718, %v6716
    %v7081 = vpack.c.b16 %v6721, %v6719
    %v7082 = vpack.c.b16 %v6722, %v6720
    %v7083 = vpack.c.b16 %v6725, %v6723
    %v7084 = vpack.c.b16 %v6726, %v6724
    %v7085 = vpack.c.b16 %v6729, %v6727
    %v7086 = vpack.c.b16 %v6730, %v6728
    %v7087 = vpack.c.b16 %v6733, %v6731
    %v7088 = vpack.c.b16 %v6734, %v6732
    %v7089 = vpack.c.b16 %v6737, %v6735
    %v7090 = vpack.c.b16 %v6738, %v6736
    %v7091 = vpack.c.b16 %v6741, %v6739
    %v7092 = vpack.c.b16 %v6742, %v6740
    %v7093 = vpack.c.b16 %v6745, %v6743
    %v7094 = vpack.c.b16 %v6746, %v6744
    %v7095 = vpack.c.b16 %v6749, %v6747
    %v7096 = vpack.c.b16 %v6750, %v6748
    %v7097 = vpack.c.b16 %v6753, %v6751
    %v7098 = vpack.c.b16 %v6754, %v6752
    %v7099 = vpack.c.b16 %v6757, %v6755
    %v7100 = vpack.c.b16 %v6758, %v6756
    %v7101 = vpack.c.b16 %v6761, %v6759
    %v7102 = vpack.c.b16 %v6762, %v6760
    %v7103 = vpack.c.b16 %v6765, %v6763
    %v7104 = vpack.c.b16 %v6766, %v6764
    %v7105 = vpack.c.b16 %v6769, %v6767
    %v7106 = vpack.c.b16 %v6770, %v6768
    %v7107 = vpack.c.b16 %v6773, %v6771
    %v7108 = vpack.c.b16 %v6774, %v6772
    %v7109 = vpack.c.b16 %v6777, %v6775
    %v7110 = vpack.c.b16 %v6778, %v6776
    %v7111 = vpack.c.b16 %v6781, %v6779
    %v7112 = vpack.c.b16 %v6782, %v6780
    %v7113 = vpack.c.b16 %v6785, %v6783
    %v7114 = vpack.c.b16 %v6786, %v6784
    %v7115 = vpack.c.b16 %v6789, %v6787
    %v7116 = vpack.c.b16 %v6790, %v6788
    %v7117 = vpack.c.b16 %v6793, %v6791
    %v7118 = vpack.c.b16 %v6794, %v6792
    %v7119 = vpack.c.b16 %v6797, %v6795
    %v7120 = vpack.c.b16 %v6798, %v6796
    %v7121 = vpack.c.b16 %v6801, %v6799
    %v7122 = vpack.c.b16 %v6802, %v6800
    %v7123 = vpack.c.b16 %v6805, %v6803
    %v7124 = vpack.c.b16 %v6806, %v6804
    %v7125 = vpack.c.b16 %v6809, %v6807
    %v7126 = vpack.c.b16 %v6810, %v6808
    %v7127 = vpack.c.b16 %v6813, %v6811
    %v7128 = vpack.c.b16 %v6814, %v6812
    %v7129 = vpack.c.b16 %v6817, %v6815
    %v7130 = vpack.c.b16 %v6818, %v6816
    %v7131 = vpack.c.b16 %v6821, %v6819
    %v7132 = vpack.c.b16 %v6822, %v6820
    %v7133 = vpack.c.b16 %v6825, %v6823
    %v7134 = vpack.c.b16 %v6826, %v6824
    %v7135 = vpack.c.b16 %v6829, %v6827
    %v7136 = vpack.c.b16 %v6830, %v6828
    %v7137 = vpack.c.b16 %v6833, %v6831
    %v7138 = vpack.c.b16 %v6834, %v6832
    %v7139 = vpack.c.b16 %v6837, %v6835
    %v7140 = vpack.c.b16 %v6838, %v6836
    %v7141 = vpack.c.b16 %v6841, %v6839
    %v7142 = vpack.c.b16 %v6842, %v6840
    %v7143 = vpack.c.b16 %v6845, %v6843
    %v7144 = vpack.c.b16 %v6846, %v6844
    %v7145 = vpack.c.b16 %v6849, %v6847
    %v7146 = vpack.c.b16 %v6850, %v6848
    %v7147 = vpack.c.b16 %v6853, %v6851
    %v7148 = vpack.c.b16 %v6854, %v6852
    %v7149 = vpack.c.b16 %v6857, %v6855
    %v7150 = vpack.c.b16 %v6858, %v6856
    %v7151 = vpack.c.b16 %v6861, %v6859
    %v7152 = vpack.c.b16 %v6862, %v6860
    %v7153 = vpack.c.b16 %v6865, %v6863
    %v7154 = vpack.c.b16 %v6866, %v6864
    %v7155 = vpack.c.b16 %v6869, %v6867
    %v7156 = vpack.c.b16 %v6870, %v6868
    %v7157 = vpack.c.b16 %v6873, %v6871
    %v7158 = vpack.c.b16 %v6874, %v6872
    %v7159 = vpack.c.b16 %v6877, %v6875
    %v7160 = vpack.c.b16 %v6878, %v6876
    %v7161 = vpack.c.b16 %v6881, %v6879
    %v7162 = vpack.c.b16 %v6882, %v6880
    %v7163 = vpack.c.b16 %v6885, %v6883
    %v7164 = vpack.c.b16 %v6886, %v6884
    %v7165 = vpack.c.b16 %v6889, %v6887
    %v7166 = vpack.c.b16 %v6890, %v6888
    %v7167 = vpack.c.b16 %v6893, %v6891
    %v7168 = vpack.c.b16 %v6894, %v6892
    %v7169 = vpack.c.b16 %v6897, %v6895
    %v7170 = vpack.c.b16 %v6898, %v6896
    %v7171 = vpack.c.b16 %v6901, %v6899
    %v7172 = vpack.c.b16 %v6902, %v6900
    %v7173 = vpack.c.b16 %v6905, %v6903
    %v7174 = vpack.c.b16 %v6906, %v6904
    %v7175 = vpack.c.b16 %v6909, %v6907
    %v7176 = vpack.c.b16 %v6910, %v6908
    %v7177 = vpack.c.b16 %v6913, %v6911
    %v7178 = vpack.c.b16 %v6914, %v6912
    %v7179 = vpack.c.b16 %v6917, %v6915
    %v7180 = vpack.c.b16 %v6918, %v6916
    %v7181 = vpack.c.b16 %v6921, %v6919
    %v7182 = vpack.c.b16 %v6922, %v6920
    %v7183 = vpack.c.b16 %v6925, %v6923
    %v7184 = vpack.c.b16 %v6926, %v6924
    %v7185 = vpack.c.b16 %v6929, %v6927
    %v7186 = vpack.c.b16 %v6930, %v6928
    %7443 = vmatprep.subr.bf16.mxu0 %v6932
    %7444 = vmatpush1.bf16.msra.mxu0 %v6931
    %7445 = vmatprep.subr.bf16.mxu0 %v6934
    %7446 = vmatpush1.bf16.msra.mxu0 %v6933
    %7447 = vmatprep.subr.bf16.mxu0 %v6936
    %7448 = vmatpush1.bf16.msra.mxu0 %v6935
    %7449 = vmatprep.subr.bf16.mxu0 %v6938
    %7450 = vmatpush1.bf16.msra.mxu0 %v6937
    %7451 = vmatprep.subr.bf16.mxu0 %v6940
    %7452 = vmatpush1.bf16.msra.mxu0 %v6939
    %7453 = vmatprep.subr.bf16.mxu0 %v6942
    %7454 = vmatpush1.bf16.msra.mxu0 %v6941
    %7455 = vmatprep.subr.bf16.mxu0 %v6944
    %7456 = vmatpush1.bf16.msra.mxu0 %v6943
    %7457 = vmatprep.subr.bf16.mxu0 %v6946
    %7458 = vmatpush1.bf16.msra.mxu0 %v6945
    %7459 = vmatprep.subr.bf16.mxu0 %v6948
    %7460 = vmatpush1.bf16.msra.mxu0 %v6947
    %7461 = vmatprep.subr.bf16.mxu0 %v6950
    %7462 = vmatpush1.bf16.msra.mxu0 %v6949
    %7463 = vmatprep.subr.bf16.mxu0 %v6952
    %7464 = vmatpush1.bf16.msra.mxu0 %v6951
    %7465 = vmatprep.subr.bf16.mxu0 %v6954
    %7466 = vmatpush1.bf16.msra.mxu0 %v6953
    %7467 = vmatprep.subr.bf16.mxu0 %v6956
    %7468 = vmatpush1.bf16.msra.mxu0 %v6955
    %7469 = vmatprep.subr.bf16.mxu0 %v6958
    %7470 = vmatpush1.bf16.msra.mxu0 %v6957
    %7471 = vmatprep.subr.bf16.mxu0 %v6960
    %7472 = vmatpush1.bf16.msra.mxu0 %v6959
    %7473 = vmatprep.subr.bf16.mxu0 %v6962
    %7474 = vmatpush1.bf16.msra.mxu0 %v6961
    %7475 = vmatprep.mubr.bf16.mxu0 %v6132
    %7476 = vmatmul.mubr.bf16.gmra.mrb[0].mxu0 %v6131
    %v7477 = vpop.f32.mrb[0].mxu0
    %v7478 = vadd.f32 %v6101, %v7477
    %v7479 = vpop.f32.mrb[0].mxu0
    %v7480 = vadd.f32 %v6103, %v7479
    %v7481 = vpop.f32.mrb[0].mxu0
    %v7482 = vpop.f32.mrb[0].mxu0
    %7483 = vdwg.mxu0
    %7484 = vmatprep.subr.bf16.mxu0 %v6964
    %7485 = vmatpush1.bf16.msra.mxu0 %v6963
    %7486 = vmatprep.subr.bf16.mxu0 %v6966
    %7487 = vmatpush1.bf16.msra.mxu0 %v6965
    %7488 = vmatprep.subr.bf16.mxu0 %v6968
    %7489 = vmatpush1.bf16.msra.mxu0 %v6967
    %7490 = vmatprep.subr.bf16.mxu0 %v6970
    %7491 = vmatpush1.bf16.msra.mxu0 %v6969
    %7492 = vmatprep.subr.bf16.mxu0 %v6972
    %7493 = vmatpush1.bf16.msra.mxu0 %v6971
    %7494 = vmatprep.subr.bf16.mxu0 %v6974
    %7495 = vmatpush1.bf16.msra.mxu0 %v6973
    %7496 = vmatprep.subr.bf16.mxu0 %v6976
    %7497 = vmatpush1.bf16.msra.mxu0 %v6975
    %7498 = vmatprep.subr.bf16.mxu0 %v6978
    %7499 = vmatpush1.bf16.msra.mxu0 %v6977
    %7500 = vmatprep.subr.bf16.mxu0 %v6980
    %7501 = vmatpush1.bf16.msra.mxu0 %v6979
    %7502 = vmatprep.subr.bf16.mxu0 %v6982
    %7503 = vmatpush1.bf16.msra.mxu0 %v6981
    %7504 = vmatprep.subr.bf16.mxu0 %v6984
    %7505 = vmatpush1.bf16.msra.mxu0 %v6983
    %7506 = vmatprep.subr.bf16.mxu0 %v6986
    %7507 = vmatpush1.bf16.msra.mxu0 %v6985
    %7508 = vmatprep.subr.bf16.mxu0 %v6988
    %7509 = vmatpush1.bf16.msra.mxu0 %v6987
    %7510 = vmatprep.subr.bf16.mxu0 %v6990
    %7511 = vmatpush1.bf16.msra.mxu0 %v6989
    %7512 = vmatprep.subr.bf16.mxu0 %v6992
    %7513 = vmatpush1.bf16.msra.mxu0 %v6991
    %7514 = vmatprep.subr.bf16.mxu0 %v6994
    %7515 = vmatpush1.bf16.msra.mxu0 %v6993
    %7516 = vmatprep.mubr.bf16.mxu0 %v6134
    %7517 = vmatmul.mubr.bf16.gmra.mrb[0].mxu0 %v6133
    %v7518 = vpop.f32.mrb[0].mxu0
    %v7519 = vadd.f32 %v7478, %v7518
    %v7520 = vpop.f32.mrb[0].mxu0
    %v7521 = vadd.f32 %v7480, %v7520
    %v7522 = vpop.f32.mrb[0].mxu0
    %v7523 = vpop.f32.mrb[0].mxu0
    %7524 = vdwg.mxu0
    %7525 = vmatprep.subr.bf16.mxu0 %v6996
    %7526 = vmatpush1.bf16.msra.mxu0 %v6995
    %7527 = vmatprep.subr.bf16.mxu0 %v6998
    %7528 = vmatpush1.bf16.msra.mxu0 %v6997
    %7529 = vmatprep.subr.bf16.mxu0 %v7000
    %7530 = vmatpush1.bf16.msra.mxu0 %v6999
    %7531 = vmatprep.subr.bf16.mxu0 %v7002
    %7532 = vmatpush1.bf16.msra.mxu0 %v7001
    %7533 = vmatprep.subr.bf16.mxu0 %v7004
    %7534 = vmatpush1.bf16.msra.mxu0 %v7003
    %7535 = vmatprep.subr.bf16.mxu0 %v7006
    %7536 = vmatpush1.bf16.msra.mxu0 %v7005
    %7537 = vmatprep.subr.bf16.mxu0 %v7008
    %7538 = vmatpush1.bf16.msra.mxu0 %v7007
    %7539 = vmatprep.subr.bf16.mxu0 %v7010
    %7540 = vmatpush1.bf16.msra.mxu0 %v7009
    %7541 = vmatprep.subr.bf16.mxu0 %v7012
    %7542 = vmatpush1.bf16.msra.mxu0 %v7011
    %7543 = vmatprep.subr.bf16.mxu0 %v7014
    %7544 = vmatpush1.bf16.msra.mxu0 %v7013
    %7545 = vmatprep.subr.bf16.mxu0 %v7016
    %7546 = vmatpush1.bf16.msra.mxu0 %v7015
    %7547 = vmatprep.subr.bf16.mxu0 %v7018
    %7548 = vmatpush1.bf16.msra.mxu0 %v7017
    %7549 = vmatprep.subr.bf16.mxu0 %v7020
    %7550 = vmatpush1.bf16.msra.mxu0 %v7019
    %7551 = vmatprep.subr.bf16.mxu0 %v7022
    %7552 = vmatpush1.bf16.msra.mxu0 %v7021
    %7553 = vmatprep.subr.bf16.mxu0 %v7024
    %7554 = vmatpush1.bf16.msra.mxu0 %v7023
    %7555 = vmatprep.subr.bf16.mxu0 %v7026
    %7556 = vmatpush1.bf16.msra.mxu0 %v7025
    %7557 = vmatprep.mubr.bf16.mxu0 %v6136
    %7558 = vmatmul.mubr.bf16.gmra.mrb[0].mxu0 %v6135
    %v7559 = vpop.f32.mrb[0].mxu0
    %v7560 = vadd.f32 %v7519, %v7559
    %v7561 = vpop.f32.mrb[0].mxu0
    %v7562 = vadd.f32 %v7521, %v7561
    %v7563 = vpop.f32.mrb[0].mxu0
    %v7564 = vpop.f32.mrb[0].mxu0
    %7565 = vdwg.mxu0
    %7566 = vmatprep.subr.bf16.mxu0 %v7028
    %7567 = vmatpush1.bf16.msra.mxu0 %v7027
    %7568 = vmatprep.subr.bf16.mxu0 %v7030
    %7569 = vmatpush1.bf16.msra.mxu0 %v7029
    %7570 = vmatprep.subr.bf16.mxu0 %v7032
    %7571 = vmatpush1.bf16.msra.mxu0 %v7031
    %7572 = vmatprep.subr.bf16.mxu0 %v7034
    %7573 = vmatpush1.bf16.msra.mxu0 %v7033
    %7574 = vmatprep.subr.bf16.mxu0 %v7036
    %7575 = vmatpush1.bf16.msra.mxu0 %v7035
    %7576 = vmatprep.subr.bf16.mxu0 %v7038
    %7577 = vmatpush1.bf16.msra.mxu0 %v7037
    %7578 = vmatprep.subr.bf16.mxu0 %v7040
    %7579 = vmatpush1.bf16.msra.mxu0 %v7039
    %7580 = vmatprep.subr.bf16.mxu0 %v7042
    %7581 = vmatpush1.bf16.msra.mxu0 %v7041
    %7582 = vmatprep.subr.bf16.mxu0 %v7044
    %7583 = vmatpush1.bf16.msra.mxu0 %v7043
    %7584 = vmatprep.subr.bf16.mxu0 %v7046
    %7585 = vmatpush1.bf16.msra.mxu0 %v7045
    %7586 = vmatprep.subr.bf16.mxu0 %v7048
    %7587 = vmatpush1.bf16.msra.mxu0 %v7047
    %7588 = vmatprep.subr.bf16.mxu0 %v7050
    %7589 = vmatpush1.bf16.msra.mxu0 %v7049
    %7590 = vmatprep.subr.bf16.mxu0 %v7052
    %7591 = vmatpush1.bf16.msra.mxu0 %v7051
    %7592 = vmatprep.subr.bf16.mxu0 %v7054
    %7593 = vmatpush1.bf16.msra.mxu0 %v7053
    %7594 = vmatprep.subr.bf16.mxu0 %v7056
    %7595 = vmatpush1.bf16.msra.mxu0 %v7055
    %7596 = vmatprep.subr.bf16.mxu0 %v7058
    %7597 = vmatpush1.bf16.msra.mxu0 %v7057
    %7598 = vmatprep.mubr.bf16.mxu0 %v6138
    %7599 = vmatmul.mubr.bf16.gmra.mrb[0].mxu0 %v6137
    %v7600 = vpop.f32.mrb[0].mxu0
    %v7601 = vadd.f32 %v7560, %v7600
    %v7602 = vpop.f32.mrb[0].mxu0
    %v7603 = vadd.f32 %v7562, %v7602
    %v7604 = vpop.f32.mrb[0].mxu0
    %v7605 = vpop.f32.mrb[0].mxu0
    %7606 = vdwg.mxu0
    %7607 = vmatprep.subr.bf16.mxu0 %v7060
    %7608 = vmatpush1.bf16.msra.mxu0 %v7059
    %7609 = vmatprep.subr.bf16.mxu0 %v7062
    %7610 = vmatpush1.bf16.msra.mxu0 %v7061
    %7611 = vmatprep.subr.bf16.mxu0 %v7064
    %7612 = vmatpush1.bf16.msra.mxu0 %v7063
    %7613 = vmatprep.subr.bf16.mxu0 %v7066
    %7614 = vmatpush1.bf16.msra.mxu0 %v7065
    %7615 = vmatprep.subr.bf16.mxu0 %v7068
    %7616 = vmatpush1.bf16.msra.mxu0 %v7067
    %7617 = vmatprep.subr.bf16.mxu0 %v7070
    %7618 = vmatpush1.bf16.msra.mxu0 %v7069
    %7619 = vmatprep.subr.bf16.mxu0 %v7072
    %7620 = vmatpush1.bf16.msra.mxu0 %v7071
    %7621 = vmatprep.subr.bf16.mxu0 %v7074
    %7622 = vmatpush1.bf16.msra.mxu0 %v7073
    %7623 = vmatprep.subr.bf16.mxu0 %v7076
    %7624 = vmatpush1.bf16.msra.mxu0 %v7075
    %7625 = vmatprep.subr.bf16.mxu0 %v7078
    %7626 = vmatpush1.bf16.msra.mxu0 %v7077
    %7627 = vmatprep.subr.bf16.mxu0 %v7080
    %7628 = vmatpush1.bf16.msra.mxu0 %v7079
    %7629 = vmatprep.subr.bf16.mxu0 %v7082
    %7630 = vmatpush1.bf16.msra.mxu0 %v7081
    %7631 = vmatprep.subr.bf16.mxu0 %v7084
    %7632 = vmatpush1.bf16.msra.mxu0 %v7083
    %7633 = vmatprep.subr.bf16.mxu0 %v7086
    %7634 = vmatpush1.bf16.msra.mxu0 %v7085
    %7635 = vmatprep.subr.bf16.mxu0 %v7088
    %7636 = vmatpush1.bf16.msra.mxu0 %v7087
    %7637 = vmatprep.subr.bf16.mxu0 %v7090
    %7638 = vmatpush1.bf16.msra.mxu0 %v7089
    %7639 = vmatprep.mubr.bf16.mxu0 %v6140
    %7640 = vmatmul.mubr.bf16.gmra.mrb[0].mxu0 %v6139
    %v7641 = vpop.f32.mrb[0].mxu0
    %v7642 = vadd.f32 %v7601, %v7641
    %v7643 = vpop.f32.mrb[0].mxu0
    %v7644 = vadd.f32 %v7603, %v7643
    %v7645 = vpop.f32.mrb[0].mxu0
    %v7646 = vpop.f32.mrb[0].mxu0
    %7647 = vdwg.mxu0
    %7648 = vmatprep.subr.bf16.mxu0 %v7092
    %7649 = vmatpush1.bf16.msra.mxu0 %v7091
    %7650 = vmatprep.subr.bf16.mxu0 %v7094
    %7651 = vmatpush1.bf16.msra.mxu0 %v7093
    %7652 = vmatprep.subr.bf16.mxu0 %v7096
    %7653 = vmatpush1.bf16.msra.mxu0 %v7095
    %7654 = vmatprep.subr.bf16.mxu0 %v7098
    %7655 = vmatpush1.bf16.msra.mxu0 %v7097
    %7656 = vmatprep.subr.bf16.mxu0 %v7100
    %7657 = vmatpush1.bf16.msra.mxu0 %v7099
    %7658 = vmatprep.subr.bf16.mxu0 %v7102
    %7659 = vmatpush1.bf16.msra.mxu0 %v7101
    %7660 = vmatprep.subr.bf16.mxu0 %v7104
    %7661 = vmatpush1.bf16.msra.mxu0 %v7103
    %7662 = vmatprep.subr.bf16.mxu0 %v7106
    %7663 = vmatpush1.bf16.msra.mxu0 %v7105
    %7664 = vmatprep.subr.bf16.mxu0 %v7108
    %7665 = vmatpush1.bf16.msra.mxu0 %v7107
    %7666 = vmatprep.subr.bf16.mxu0 %v7110
    %7667 = vmatpush1.bf16.msra.mxu0 %v7109
    %7668 = vmatprep.subr.bf16.mxu0 %v7112
    %7669 = vmatpush1.bf16.msra.mxu0 %v7111
    %7670 = vmatprep.subr.bf16.mxu0 %v7114
    %7671 = vmatpush1.bf16.msra.mxu0 %v7113
    %7672 = vmatprep.subr.bf16.mxu0 %v7116
    %7673 = vmatpush1.bf16.msra.mxu0 %v7115
    %7674 = vmatprep.subr.bf16.mxu0 %v7118
    %7675 = vmatpush1.bf16.msra.mxu0 %v7117
    %7676 = vmatprep.subr.bf16.mxu0 %v7120
    %7677 = vmatpush1.bf16.msra.mxu0 %v7119
    %7678 = vmatprep.subr.bf16.mxu0 %v7122
    %7679 = vmatpush1.bf16.msra.mxu0 %v7121
    %7680 = vmatprep.mubr.bf16.mxu0 %v6142
    %7681 = vmatmul.mubr.bf16.gmra.mrb[0].mxu0 %v6141
    %v7682 = vpop.f32.mrb[0].mxu0
    %v7683 = vadd.f32 %v7642, %v7682
    %v7684 = vpop.f32.mrb[0].mxu0
    %v7685 = vadd.f32 %v7644, %v7684
    %v7686 = vpop.f32.mrb[0].mxu0
    %v7687 = vpop.f32.mrb[0].mxu0
    %7688 = vdwg.mxu0
    %7689 = vmatprep.subr.bf16.mxu0 %v7124
    %7690 = vmatpush1.bf16.msra.mxu0 %v7123
    %7691 = vmatprep.subr.bf16.mxu0 %v7126
    %7692 = vmatpush1.bf16.msra.mxu0 %v7125
    %7693 = vmatprep.subr.bf16.mxu0 %v7128
    %7694 = vmatpush1.bf16.msra.mxu0 %v7127
    %7695 = vmatprep.subr.bf16.mxu0 %v7130
    %7696 = vmatpush1.bf16.msra.mxu0 %v7129
    %7697 = vmatprep.subr.bf16.mxu0 %v7132
    %7698 = vmatpush1.bf16.msra.mxu0 %v7131
    %7699 = vmatprep.subr.bf16.mxu0 %v7134
    %7700 = vmatpush1.bf16.msra.mxu0 %v7133
    %7701 = vmatprep.subr.bf16.mxu0 %v7136
    %7702 = vmatpush1.bf16.msra.mxu0 %v7135
    %7703 = vmatprep.subr.bf16.mxu0 %v7138
    %7704 = vmatpush1.bf16.msra.mxu0 %v7137
    %7705 = vmatprep.subr.bf16.mxu0 %v7140
    %7706 = vmatpush1.bf16.msra.mxu0 %v7139
    %7707 = vmatprep.subr.bf16.mxu0 %v7142
    %7708 = vmatpush1.bf16.msra.mxu0 %v7141
    %7709 = vmatprep.subr.bf16.mxu0 %v7144
    %7710 = vmatpush1.bf16.msra.mxu0 %v7143
    %7711 = vmatprep.subr.bf16.mxu0 %v7146
    %7712 = vmatpush1.bf16.msra.mxu0 %v7145
    %7713 = vmatprep.subr.bf16.mxu0 %v7148
    %7714 = vmatpush1.bf16.msra.mxu0 %v7147
    %7715 = vmatprep.subr.bf16.mxu0 %v7150
    %7716 = vmatpush1.bf16.msra.mxu0 %v7149
    %7717 = vmatprep.subr.bf16.mxu0 %v7152
    %7718 = vmatpush1.bf16.msra.mxu0 %v7151
    %7719 = vmatprep.subr.bf16.mxu0 %v7154
    %7720 = vmatpush1.bf16.msra.mxu0 %v7153
    %7721 = vmatprep.mubr.bf16.mxu0 %v6144
    %7722 = vmatmul.mubr.bf16.gmra.mrb[0].mxu0 %v6143
    %v7723 = vpop.f32.mrb[0].mxu0
    %v7724 = vadd.f32 %v7683, %v7723
    %v7725 = vpop.f32.mrb[0].mxu0
    %v7726 = vadd.f32 %v7685, %v7725
    %v7727 = vpop.f32.mrb[0].mxu0
    %v7728 = vpop.f32.mrb[0].mxu0
    %7729 = vdwg.mxu0
    %7730 = vmatprep.subr.bf16.mxu0 %v7156
    %7731 = vmatpush1.bf16.msra.mxu0 %v7155
    %7732 = vmatprep.subr.bf16.mxu0 %v7158
    %7733 = vmatpush1.bf16.msra.mxu0 %v7157
    %7734 = vmatprep.subr.bf16.mxu0 %v7160
    %7735 = vmatpush1.bf16.msra.mxu0 %v7159
    %7736 = vmatprep.subr.bf16.mxu0 %v7162
    %7737 = vmatpush1.bf16.msra.mxu0 %v7161
    %7738 = vmatprep.subr.bf16.mxu0 %v7164
    %7739 = vmatpush1.bf16.msra.mxu0 %v7163
    %7740 = vmatprep.subr.bf16.mxu0 %v7166
    %7741 = vmatpush1.bf16.msra.mxu0 %v7165
    %7742 = vmatprep.subr.bf16.mxu0 %v7168
    %7743 = vmatpush1.bf16.msra.mxu0 %v7167
    %7744 = vmatprep.subr.bf16.mxu0 %v7170
    %7745 = vmatpush1.bf16.msra.mxu0 %v7169
    %7746 = vmatprep.subr.bf16.mxu0 %v7172
    %7747 = vmatpush1.bf16.msra.mxu0 %v7171
    %7748 = vmatprep.subr.bf16.mxu0 %v7174
    %7749 = vmatpush1.bf16.msra.mxu0 %v7173
    %7750 = vmatprep.subr.bf16.mxu0 %v7176
    %7751 = vmatpush1.bf16.msra.mxu0 %v7175
    %7752 = vmatprep.subr.bf16.mxu0 %v7178
    %7753 = vmatpush1.bf16.msra.mxu0 %v7177
    %7754 = vmatprep.subr.bf16.mxu0 %v7180
    %7755 = vmatpush1.bf16.msra.mxu0 %v7179
    %7756 = vmatprep.subr.bf16.mxu0 %v7182
    %7757 = vmatpush1.bf16.msra.mxu0 %v7181
    %7758 = vmatprep.subr.bf16.mxu0 %v7184
    %7759 = vmatpush1.bf16.msra.mxu0 %v7183
    %7760 = vmatprep.subr.bf16.mxu0 %v7186
    %7761 = vmatpush1.bf16.msra.mxu0 %v7185
    %7762 = vmatprep.mubr.bf16.mxu0 %v6146
    %7763 = vmatmul.mubr.bf16.gmra.mrb[0].mxu0 %v6145
    %v7764 = vpop.f32.mrb[0].mxu0
    %v7765 = vadd.f32 %v7724, %v7764
    %v7766 = vpop.f32.mrb[0].mxu0
    %v7767 = vadd.f32 %v7726, %v7766
    %v7768 = vpop.f32.mrb[0].mxu0
    %v7769 = vpop.f32.mrb[0].mxu0
    %7770 = vdwg.mxu0
    %v7771 = vld [vmem:[#allocation6] sm:$0x3]
    %v7773 = vlaneseq
    %v7774 = vshrl.u32 %v7773, 7
    %v7775 = vsub.s32 0, %v7774
    %v7776 = vrot.slane %v7771, %v7775
    %v7777 = vlaneseq
    %v7778 = vshrl.u32 %v7777, 7
    %v7779 = vsub.s32 1, %v7778
    %v7780 = vrot.slane %v7771, %v7779
    %v7783 = vadd.f32 %v7765, %v7776
    %v7784 = vadd.f32 %v7767, %v7780
    %v7785 = vmul.f32 %v7783, %v7783
    %v7786 = vmul.f32 %v7784, %v7784
    %v7787 = vadd.f32 %v7785, %v7786
    %7788 = vadd.xlane.f32.xlu0 %v7787
    %v7789 = vpop.xlane.xlu0 %7788
    %v7790 = vrsqrt.pop %v7789
    %v7791 = vmul.f32 %v7789, %v7790
    %vm7792 = vcmp.eq.f32.partialorder %v7789, inf
    %v7793 = vsel %vm7792, %v7789, %v7791
    %vm7794 = vcmp.eq.f32.partialorder %v7789, 0.0
    %v7795 = vand.u32 %v7789, 2147483648
    %v7796 = vsel %vm7794, %v7795, %v7793
    %v7797 = vsub.f32 0.0, %v7796
    %v7798 = vmul.f32 %v7797, 1.442695
    %v7799 = vpow.pop %v7798
    %v7801 = vlaneseq
    %v7802 = vand.u32 %v7801, 127
    %v7803 = vlaneseq
    %v7804 = vshrl.u32 %v7803, 7
    %v7805 = vsub.s32 %v7802, %v7804
    %v7806 = vrot.slane %v7799, %v7805
    %vm7808 = vcmask 57344
    %7809 = vst.msk [vmem:[%s5] sm:$0x1] %vm7808, %v7806
    // Predicated region
    $region34: #{siamese_forward.1} parent=1 // pred_check
      _
    $region35: #{siamese_forward.1} parent=1 // pred_check_branch
      %7811 = sbr.rel (0) target = $region37
    $region36: #{siamese_forward.1} parent=1 // pred_region
      _
    $region37: #{siamese_forward.1} parent=1 // pred_fallthru
      _
    // Predicated region
    $region38: #{siamese_forward.1} parent=1 // pred_check
      _
    $region39: #{siamese_forward.1} parent=1 // pred_check_branch
      %7813 = sbr.rel (0) target = $region41
    $region40: #{siamese_forward.1} parent=1 // pred_region
      _
    $region41: #{siamese_forward.1} parent=1 // pred_fallthru
      _
    %7814 = vsyncpa [#allocation3], 1
    %7815 = vsyncpa [#allocation5], 1

</llo_original>
